<compile_context>
chip_gen: v5e
topology: v5e:2x2
jax: 0.10.0
libtpu: 0.0.40
codegen_flags: <defaults>
</compile_context>

<pallas_src>
import functools

import jax
import jax.numpy as jnp
from jax import lax
from jax.experimental import pallas as pl
from jax.experimental.pallas import tpu as pltpu

GN_GROUPS = 32   # normalization(channels) == GroupNorm32(32, channels)
GN_EPS = 1e-5    # PyTorch GroupNorm default


def _pick_q_tile(T):
    """Largest lane-friendly query tile that divides T (else no tiling)."""
    for tq in (512, 384, 256, 128):
        if T % tq == 0:
            return tq
    return T


def _vmem_limit_bytes():
    """Generation-aware VMEM budget (3/4 of physical, capped at 100 MiB)."""
    try:
        cap = int(pltpu.get_tpu_info().vmem_capacity_bytes)
        return min((cap * 3) // 4, 100 * 1024 * 1024)
    except Exception:
        return 32 * 1024 * 1024


def _attention_block_kernel(x_ref, gr_ref, gb_ref, wqkv_ref, bqkv_ref,
                            wproj_ref, bproj_ref, o_ref,
                            qkv_ref, attn_ref, *, num_heads, q_tile):
    """One batch element per grid step. NCL-native: C on sublanes, T on lanes.

    x_ref:     (1, C, T)      input (and residual source)
    gr_ref:    (G, C)  f32    group reduce matrix (1/cg where member, else 0)
    gb_ref:    (C, G)  f32    group broadcast matrix (membership one-hot)
    wqkv_ref:  (3C, C) bf16   qkv weight; gamma/beta and q/k scale folded in
    bqkv_ref:  (3C, 1) f32    folded qkv bias
    wproj_ref: (C, C)  bf16   proj_out weight
    bproj_ref: (C, 1)  f32    proj_out bias
    o_ref:     (1, C, T)      output
    qkv_ref:   (3C, T) f32    VMEM scratch for qkv activations
    attn_ref:  (C, T)  f32    VMEM scratch for per-head attention outputs
    """
    C, T = x_ref.shape[1], x_ref.shape[2]
    ch = C // num_heads
    n_qt = T // q_tile
    inv_t = 1.0 / float(T)

    xf = x_ref[0, :, :].astype(jnp.float32)                       # (C, T)

    # ---- GroupNorm(32, C) statistics (f32) ---------------------------------
    # Per-channel moments over T (lane reduce), then ONE fused group matmul
    # on the stacked [mean, E[x^2]] operand: (G,C)@(C,2) then (C,G)@(G,2).
    m1 = jnp.sum(xf, axis=1, keepdims=True) * inv_t                # (C, 1)
    m2 = jnp.sum(xf * xf, axis=1, keepdims=True) * inv_t           # (C, 1)
    stats_c = jnp.concatenate([m1, m2], axis=1)                    # (C, 2)
    stats_g = jnp.dot(gr_ref[...], stats_c,
                      preferred_element_type=jnp.float32)          # (G, 2)
    stats = jnp.dot(gb_ref[...], stats_g,
                    preferred_element_type=jnp.float32)            # (C, 2)
    mu = stats[:, 0:1]
    var = stats[:, 1:2] - mu * mu
    # TODO(synk): E[x^2]-mu^2 can cancel for strongly offset activations; a
    # centered two-pass variance would be more robust (costs one more pass).
    xn = ((xf - mu) * lax.rsqrt(var + GN_EPS)).astype(jnp.bfloat16)  # (C,T) bf16
    # (GroupNorm affine is folded into wqkv/bqkv by the wrapper.)

    # ---- qkv 1x1 conv: one fused (3C,C)@(C,T) MXU matmul, bf16 ops, f32 acc
    qkv = jnp.dot(wqkv_ref[...], xn, preferred_element_type=jnp.float32)
    qkv_ref[...] = qkv + bqkv_ref[...]                             # (3C, T)

    # ---- QKVAttentionLegacy: channel layout [h][q|k|v][ch] ------------------
    # fori_loop over heads (bounded live ranges); query tiling bounds the
    # score/prob intermediates to (q_tile, T).  q/k pre-scaled in the weights.
    def head_body(h, carry):
        base = pl.multiple_of(h * (3 * ch), ch)
        hb = pl.multiple_of(h * ch, ch)
        k = qkv_ref[pl.ds(base + ch, ch), :].astype(jnp.bfloat16)      # (ch, T)
        v = qkv_ref[pl.ds(base + 2 * ch, ch), :].astype(jnp.bfloat16)  # (ch, T)

        def qt_body(t, c2):
            ts = pl.multiple_of(t * q_tile, q_tile)
            q_t = qkv_ref[pl.ds(base, ch),
                          pl.ds(ts, q_tile)].astype(jnp.bfloat16)      # (ch, tq)
            # w[t, s] = sum_c q[c, t] k[c, s]   ('bct,bcs->bts')
            # NOTE: verified-acceptable dim numbers; if lower_as_mlir ever
            # shows a hidden XLU transpose here, transpose the small q tile.
            s = lax.dot_general(q_t, k, (((0,), (0,)), ((), ())),
                                preferred_element_type=jnp.float32)    # (tq, T)
            s = s - jnp.max(s, axis=-1, keepdims=True)
            e = jnp.exp(s)
            p = e * pl.reciprocal(jnp.sum(e, axis=-1, keepdims=True),
                                  approx=True)
            # a[c, t] = sum_s p[t, s] v[c, s]   ('bts,bcs->bct')
            a = lax.dot_general(v, p.astype(jnp.bfloat16),
                                (((1,), (1,)), ((), ())),
                                preferred_element_type=jnp.float32)    # (ch, tq)
            attn_ref[pl.ds(hb, ch), pl.ds(ts, q_tile)] = a
            return c2

        return lax.fori_loop(0, n_qt, qt_body, carry)

    lax.fori_loop(0, num_heads, head_body, 0)

    # ---- proj_out 1x1 conv (one long-K matmul) + residual -------------------
    hp = jnp.dot(wproj_ref[...], attn_ref[...].astype(jnp.bfloat16),
                 preferred_element_type=jnp.float32)               # (C, T)
    o_ref[0, :, :] = (x_ref[0, :, :].astype(jnp.float32) + hp
                      + bproj_ref[...]).astype(o_ref.dtype)


def attention_block_forward(x, gn_w, gn_b, w_qkv, b_qkv, w_proj, b_proj,
                            *, num_heads):
    """AttentionBlock._forward(x, mask=None) as a fused Pallas TPU kernel.

    x:      [B, C, *spatial]            (PyTorch layout)
    gn_w, gn_b: [C]                     GroupNorm(32, C) affine params
    w_qkv:  [3C, C, 1], b_qkv: [3C]     qkv 1x1 conv
    w_proj: [C, C, 1],  b_proj: [C]     proj_out 1x1 conv
    returns [B, C, *spatial]
    """
    orig_shape = x.shape
    B, C = int(orig_shape[0]), int(orig_shape[1])
    T = 1
    for s in orig_shape[2:]:
        T *= int(s)
    G = GN_GROUPS
    assert C % G == 0, "channels must be divisible by 32 (GroupNorm32)"
    assert C % num_heads == 0
    ch = C // num_heads
    cg = C // G

    x3 = x.reshape(B, C, T)
    f32 = jnp.float32

    # ---- one-time parameter plumbing (no activation transpose / padding) ----
    gid = jnp.arange(C, dtype=jnp.int32) // cg
    onehot = (gid[None, :] == jnp.arange(G, dtype=jnp.int32)[:, None]).astype(f32)
    gr = onehot / float(cg)       # (G, C): averages channels within a group
    gb = onehot.T                 # (C, G): broadcasts group stat back to channels

    # Fold GroupNorm affine and the ch**-0.25 attention scale into qkv params.
    w1 = w_qkv.reshape(3 * C, C).astype(f32)
    b1 = b_qkv.astype(f32)
    w2 = w1 * gn_w.astype(f32)[None, :]          # fold gamma
    b2 = w1 @ gn_b.astype(f32) + b1              # fold beta
    scale = float(ch) ** (-0.25)                 # 1/sqrt(sqrt(ch))
    row_in_head = jnp.arange(3 * C, dtype=jnp.int32) % (3 * ch)
    qk_scale = jnp.where(row_in_head < 2 * ch, scale, 1.0).astype(f32)
    wqkv = (w2 * qk_scale[:, None]).astype(jnp.bfloat16)     # (3C, C) bf16
    bqkv = (b2 * qk_scale).reshape(3 * C, 1)                 # (3C, 1) f32
    wproj = w_proj.reshape(C, C).astype(jnp.bfloat16)        # (C, C)  bf16
    bproj = b_proj.reshape(C, 1).astype(f32)                 # (C, 1)  f32

    q_tile = _pick_q_tile(T)
    kernel = functools.partial(_attention_block_kernel,
                               num_heads=num_heads, q_tile=q_tile)

    def make_call(single_buffer_weights):
        def const_spec(shape):
            if single_buffer_weights:
                return pl.BlockSpec(shape, lambda b: (0,) * len(shape),
                                    pipeline_mode=pl.Buffered(1))
            return pl.BlockSpec(shape, lambda b: (0,) * len(shape))

        return pl.pallas_call(
            kernel,
            out_shape=jax.ShapeDtypeStruct((B, C, T), x.dtype),
            grid_spec=pltpu.PrefetchScalarGridSpec(
                num_scalar_prefetch=0,
                grid=(B,),
                in_specs=[
                    pl.BlockSpec((1, C, T), lambda b: (b, 0, 0)),   # x
                    const_spec((G, C)),                             # group reduce
                    const_spec((C, G)),                             # group broadcast
                    const_spec((3 * C, C)),                         # w_qkv (bf16)
                    const_spec((3 * C, 1)),                         # b_qkv
                    const_spec((C, C)),                             # w_proj (bf16)
                    const_spec((C, 1)),                             # b_proj
                ],
                out_specs=pl.BlockSpec((1, C, T), lambda b: (b, 0, 0)),
                scratch_shapes=[
                    pltpu.VMEM((3 * C, T), jnp.float32),   # qkv activations
                    pltpu.VMEM((C, T), jnp.float32),       # attention outputs
                ],
            ),
            compiler_params=pltpu.CompilerParams(
                dimension_semantics=("parallel",),
                vmem_limit_bytes=_vmem_limit_bytes(),
            ),
        )

    args = (x3, gr, gb, wqkv, bqkv, wproj, bproj)
    try:
        out = make_call(True)(*args)      # single-buffered constant operands
    except Exception:
        out = make_call(False)(*args)     # fallback: default double buffering

    return out.reshape(orig_shape)


def _ref_attention_block(x, gn_w, gn_b, w_qkv, b_qkv, w_proj, b_proj, num_heads):
    """Pure-JAX f32 reference with the exact PyTorch module semantics."""
    B, C, T = x.shape
    G = GN_GROUPS
    xf = x.astype(jnp.float32)
    xg = xf.reshape(B, G, (C // G) * T)
    mu = jnp.mean(xg, axis=-1, keepdims=True)
    var = jnp.var(xg, axis=-1, keepdims=True)
    xn = ((xg - mu) / jnp.sqrt(var + GN_EPS)).reshape(B, C, T)
    xn = xn * gn_w[None, :, None] + gn_b[None, :, None]
    qkv = jnp.einsum('oc,bct->bot', w_qkv[:, :, 0], xn) + b_qkv[None, :, None]
    ch = C // num_heads
    qkv_h = qkv.reshape(B * num_heads, 3 * ch, T)
    q, k, v = qkv_h[:, :ch], qkv_h[:, ch:2 * ch], qkv_h[:, 2 * ch:]
    scale = ch ** (-0.25)
    w = jnp.einsum('bct,bcs->bts', q * scale, k * scale)
    w = jax.nn.softmax(w, axis=-1)
    a = jnp.einsum('bts,bcs->bct', w, v).reshape(B, C, T)
    hp = jnp.einsum('oc,bct->bot', w_proj[:, :, 0], a) + b_proj[None, :, None]
    return x + hp


if __name__ == "__main__":
    # Small music-codes-like shapes: C divisible by 32 (GroupNorm32), T a
    # multiple of 128 so the lane axis is dense.
    B, C, T, H = 2, 64, 128, 2

    key = jax.random.PRNGKey(0)
    ks = jax.random.split(key, 7)
    x = jax.random.normal(ks[0], (B, C, T), dtype=jnp.float32)
    gn_w = 1.0 + 0.1 * jax.random.normal(ks[1], (C,), dtype=jnp.float32)
    gn_b = 0.1 * jax.random.normal(ks[2], (C,), dtype=jnp.float32)

    bound = 1.0 / (C ** 0.5)
    w_qkv = jax.random.uniform(ks[3], (3 * C, C, 1), jnp.float32,
                               minval=-bound, maxval=bound)
    b_qkv = jax.random.uniform(ks[4], (3 * C,), jnp.float32,
                               minval=-bound, maxval=bound)
    # proj_out is zero_module() at init; use non-zero weights so the test is
    # non-trivial (semantics are identical for any weight values).
    w_proj = jax.random.uniform(ks[5], (C, C, 1), jnp.float32,
                                minval=-bound, maxval=bound)
    b_proj = jax.random.uniform(ks[6], (C,), jnp.float32,
                                minval=-bound, maxval=bound)

    out = attention_block_forward(x, gn_w, gn_b, w_qkv, b_qkv, w_proj, b_proj,
                                  num_heads=H)
    out = jax.block_until_ready(out)

    ref = _ref_attention_block(x, gn_w, gn_b, w_qkv, b_qkv, w_proj, b_proj, H)
    assert out.shape == x.shape, out.shape
    # Tolerance reflects bf16 MXU operands (f32 accumulation, f32 softmax).
    assert jnp.allclose(out, ref, atol=3e-2, rtol=3e-2), \
        float(jnp.max(jnp.abs(out - ref)))

    print("KERNEL_OK")
</pallas_src>

<mosaic_0001>
module attributes {stable_mosaic.version = 11 : i64} {
  func.func @_attention_block_kernel(%arg0: i32, %arg1: memref<1x64x128xf32, #tpu.memory_space<vmem>>, %arg2: memref<32x64xf32, #tpu.memory_space<vmem>>, %arg3: memref<64x32xf32, #tpu.memory_space<vmem>>, %arg4: memref<192x64xbf16, #tpu.memory_space<vmem>>, %arg5: memref<192x1xf32, #tpu.memory_space<vmem>>, %arg6: memref<64x64xbf16, #tpu.memory_space<vmem>>, %arg7: memref<64x1xf32, #tpu.memory_space<vmem>>, %arg8: memref<1x64x128xf32, #tpu.memory_space<vmem>>, %arg9: memref<192x128xf32, #tpu.memory_space<vmem>>, %arg10: memref<64x128xf32, #tpu.memory_space<vmem>>) attributes {dimension_semantics = [#tpu.dimension_semantics<parallel>], iteration_bounds = array<i64: 2>, scalar_prefetch = 0 : i64, scratch_operands = 2 : i64, tpu.core_type = #tpu.core_type<tc>, window_params = [{transform_indices = @transform_0, window_bounds = array<i64: 1, 64, 128>}, {pipeline_mode = #tpu.pipeline_mode<synchronous>, transform_indices = @transform_1, window_bounds = array<i64: 32, 64>}, {pipeline_mode = #tpu.pipeline_mode<synchronous>, transform_indices = @transform_2, window_bounds = array<i64: 64, 32>}, {pipeline_mode = #tpu.pipeline_mode<synchronous>, transform_indices = @transform_3, window_bounds = array<i64: 192, 64>}, {pipeline_mode = #tpu.pipeline_mode<synchronous>, transform_indices = @transform_4, window_bounds = array<i64: 192, 1>}, {pipeline_mode = #tpu.pipeline_mode<synchronous>, transform_indices = @transform_5, window_bounds = array<i64: 64, 64>}, {pipeline_mode = #tpu.pipeline_mode<synchronous>, transform_indices = @transform_6, window_bounds = array<i64: 64, 1>}, {transform_indices = @transform_7, window_bounds = array<i64: 1, 64, 128>}]} {
    %c0 = arith.constant 0 : index
    %c0_0 = arith.constant 0 : index
    %c0_1 = arith.constant 0 : index
    %0 = vector.load %arg1[%c0, %c0_0, %c0_1] : memref<1x64x128xf32, #tpu.memory_space<vmem>>, vector<1x64x128xf32>
    %1 = vector.shape_cast %0 : vector<1x64x128xf32> to vector<64x128xf32>
    %cst = arith.constant dense<0.000000e+00> : vector<64xf32>
    %2 = vector.multi_reduction <add>, %1, %cst [1] : vector<64x128xf32> to vector<64xf32>
    %3 = vector.shape_cast %2 : vector<64xf32> to vector<64x1xf32>
    %cst_2 = arith.constant 7.812500e-03 : f32
    %4 = vector.broadcast %cst_2 : f32 to vector<64x1xf32>
    %5 = arith.mulf %3, %4 : vector<64x1xf32>
    %6 = arith.mulf %1, %1 : vector<64x128xf32>
    %cst_3 = arith.constant dense<0.000000e+00> : vector<64xf32>
    %7 = vector.multi_reduction <add>, %6, %cst_3 [1] : vector<64x128xf32> to vector<64xf32>
    %8 = vector.shape_cast %7 : vector<64xf32> to vector<64x1xf32>
    %cst_4 = arith.constant 7.812500e-03 : f32
    %9 = vector.broadcast %cst_4 : f32 to vector<64x1xf32>
    %10 = arith.mulf %8, %9 : vector<64x1xf32>
    %11 = tpu.concatenate %5, %10 in 1 : vector<64x1xf32>, vector<64x1xf32> -> vector<64x2xf32>
    %c0_5 = arith.constant 0 : index
    %c0_6 = arith.constant 0 : index
    %12 = vector.load %arg2[%c0_5, %c0_6] : memref<32x64xf32, #tpu.memory_space<vmem>>, vector<32x64xf32>
    %cst_7 = arith.constant dense<0.000000e+00> : vector<32x2xf32>
    %13 = tpu.matmul %12, %11, %cst_7 {dimension_numbers = #tpu.dot_dimension_numbers<[1], [0], [0], [1], [0, 0, 1, 1], [], []>} : vector<32x64xf32>, vector<64x2xf32>, vector<32x2xf32> -> vector<32x2xf32>
    %c0_8 = arith.constant 0 : index
    %c0_9 = arith.constant 0 : index
    %14 = vector.load %arg3[%c0_8, %c0_9] : memref<64x32xf32, #tpu.memory_space<vmem>>, vector<64x32xf32>
    %cst_10 = arith.constant dense<0.000000e+00> : vector<64x2xf32>
    %15 = tpu.matmul %14, %13, %cst_10 {dimension_numbers = #tpu.dot_dimension_numbers<[1], [0], [0], [1], [0, 0, 1, 1], [], []>} : vector<64x32xf32>, vector<32x2xf32>, vector<64x2xf32> -> vector<64x2xf32>
    %16 = vector.extract_strided_slice %15 {offsets = [0, 0], sizes = [64, 1], strides = [1, 1]} : vector<64x2xf32> to vector<64x1xf32>
    %17 = vector.extract_strided_slice %15 {offsets = [0, 1], sizes = [64, 1], strides = [1, 1]} : vector<64x2xf32> to vector<64x1xf32>
    %18 = arith.mulf %16, %16 : vector<64x1xf32>
    %19 = arith.subf %17, %18 : vector<64x1xf32>
    %20 = vector.broadcast %16 : vector<64x1xf32> to vector<64x128xf32>
    %21 = arith.subf %1, %20 : vector<64x128xf32>
    %cst_11 = arith.constant 9.99999974E-6 : f32
    %22 = vector.broadcast %cst_11 : f32 to vector<64x1xf32>
    %23 = arith.addf %19, %22 : vector<64x1xf32>
    %24 = math.rsqrt %23 : vector<64x1xf32>
    %25 = vector.broadcast %24 : vector<64x1xf32> to vector<64x128xf32>
    %26 = arith.mulf %21, %25 : vector<64x128xf32>
    %27 = arith.truncf %26 : vector<64x128xf32> to vector<64x128xbf16>
    %c0_12 = arith.constant 0 : index
    %c0_13 = arith.constant 0 : index
    %28 = vector.load %arg4[%c0_12, %c0_13] : memref<192x64xbf16, #tpu.memory_space<vmem>>, vector<192x64xbf16>
    %cst_14 = arith.constant dense<0.000000e+00> : vector<192x128xf32>
    %29 = tpu.matmul %28, %27, %cst_14 {dimension_numbers = #tpu.dot_dimension_numbers<[1], [0], [0], [1], [0, 0, 1, 1], [], []>} : vector<192x64xbf16>, vector<64x128xbf16>, vector<192x128xf32> -> vector<192x128xf32>
    %c0_15 = arith.constant 0 : index
    %c0_16 = arith.constant 0 : index
    %30 = vector.load %arg5[%c0_15, %c0_16] : memref<192x1xf32, #tpu.memory_space<vmem>>, vector<192x1xf32>
    %31 = vector.broadcast %30 : vector<192x1xf32> to vector<192x128xf32>
    %32 = arith.addf %29, %31 : vector<192x128xf32>
    %c0_17 = arith.constant 0 : index
    %c0_18 = arith.constant 0 : index
    %33 = vector.load %arg9[%c0_17, %c0_18] : memref<192x128xf32, #tpu.memory_space<vmem>>, vector<192x128xf32>
    tpu.vector_store %arg9[%c0_17, %c0_18], %32 {strides = array<i32>} : memref<192x128xf32, #tpu.memory_space<vmem>>, vector<192x128xf32>,
    %c0_i32 = arith.constant 0 : i32
    %c2_i32 = arith.constant 2 : i32
    %34 = arith.addi %c0_i32, %c2_i32 : i32
    %c1_i32 = arith.constant 1 : i32
    scf.for %arg11 = %c0_i32 to %34 step %c1_i32  : i32 {
      %c96_i32 = arith.constant 96 : i32
      %48 = arith.muli %arg11, %c96_i32 : i32
      %49 = tpu.assume_multiple %48, 32 : i32
      %c32_i32 = arith.constant 32 : i32
      %50 = arith.muli %arg11, %c32_i32 : i32
      %51 = tpu.assume_multiple %50, 32 : i32
      %c32_i32_33 = arith.constant 32 : i32
      %52 = arith.addi %49, %c32_i32_33 : i32
      %53 = arith.index_cast %52 : i32 to index
      %c0_34 = arith.constant 0 : index
      %54 = vector.load %arg9[%53, %c0_34] : memref<192x128xf32, #tpu.memory_space<vmem>>, vector<32x128xf32>
      %55 = arith.truncf %54 : vector<32x128xf32> to vector<32x128xbf16>
      %c64_i32 = arith.constant 64 : i32
      %56 = arith.addi %49, %c64_i32 : i32
      %57 = arith.index_cast %56 : i32 to index
      %c0_35 = arith.constant 0 : index
      %58 = vector.load %arg9[%57, %c0_35] : memref<192x128xf32, #tpu.memory_space<vmem>>, vector<32x128xf32>
      %59 = arith.truncf %58 : vector<32x128xf32> to vector<32x128xbf16>
      %c0_i32_36 = arith.constant 0 : i32
      %c128_i32 = arith.constant 128 : i32
      %60 = arith.muli %c0_i32_36, %c128_i32 : i32
      %61 = tpu.assume_multiple %60, 128 : i32
      %62 = arith.index_cast %49 : i32 to index
      %63 = arith.index_cast %61 : i32 to index
      %64 = vector.load %arg9[%62, %63] : memref<192x128xf32, #tpu.memory_space<vmem>>, vector<32x128xf32>
      %65 = arith.truncf %64 : vector<32x128xf32> to vector<32x128xbf16>
      %cst_37 = arith.constant dense<0.000000e+00> : vector<128x128xf32>
      %66 = tpu.matmul %65, %55, %cst_37 {dimension_numbers = #tpu.dot_dimension_numbers<[0], [0], [1], [1], [0, 1, 1, 1], [], []>} : vector<32x128xbf16>, vector<32x128xbf16>, vector<128x128xf32> -> vector<128x128xf32>
      %cst_38 = arith.constant dense<0xFF800000> : vector<128xf32>
      %67 = vector.multi_reduction <maximumf>, %66, %cst_38 [1] : vector<128x128xf32> to vector<128xf32>
      %68 = vector.shape_cast %67 : vector<128xf32> to vector<128x1xf32>
      %69 = vector.broadcast %68 : vector<128x1xf32> to vector<128x128xf32>
      %70 = arith.subf %66, %69 : vector<128x128xf32>
      %71 = math.exp %70 : vector<128x128xf32>
      %cst_39 = arith.constant dense<0.000000e+00> : vector<128xf32>
      %72 = vector.multi_reduction <add>, %71, %cst_39 [1] : vector<128x128xf32> to vector<128xf32>
      %73 = vector.shape_cast %72 : vector<128xf32> to vector<128x1xf32>
      %74 = tpu.reciprocal %73 {approx = true} : vector<128x1xf32> -> vector<128x1xf32>
      %75 = vector.broadcast %74 : vector<128x1xf32> to vector<128x128xf32>
      %76 = arith.mulf %71, %75 : vector<128x128xf32>
      %77 = arith.truncf %76 : vector<128x128xf32> to vector<128x128xbf16>
      %cst_40 = arith.constant dense<0.000000e+00> : vector<32x128xf32>
      %78 = tpu.matmul %59, %77, %cst_40 {dimension_numbers = #tpu.dot_dimension_numbers<[1], [1], [0], [0], [0, 0, 1, 0], [], []>} : vector<32x128xbf16>, vector<128x128xbf16>, vector<32x128xf32> -> vector<32x128xf32>
      %79 = arith.index_cast %51 : i32 to index
      %80 = arith.index_cast %61 : i32 to index
      %81 = vector.load %arg10[%79, %80] : memref<64x128xf32, #tpu.memory_space<vmem>>, vector<32x128xf32>
      tpu.vector_store %arg10[%79, %80], %78 {strides = array<i32>} : memref<64x128xf32, #tpu.memory_space<vmem>>, vector<32x128xf32>,
      %c1_i32_41 = arith.constant 1 : i32
    }
    %c2_i32_19 = arith.constant 2 : i32
    %c0_20 = arith.constant 0 : index
    %c0_21 = arith.constant 0 : index
    %35 = vector.load %arg6[%c0_20, %c0_21] : memref<64x64xbf16, #tpu.memory_space<vmem>>, vector<64x64xbf16>
    %c0_22 = arith.constant 0 : index
    %c0_23 = arith.constant 0 : index
    %36 = vector.load %arg10[%c0_22, %c0_23] : memref<64x128xf32, #tpu.memory_space<vmem>>, vector<64x128xf32>
    %37 = arith.truncf %36 : vector<64x128xf32> to vector<64x128xbf16>
    %cst_24 = arith.constant dense<0.000000e+00> : vector<64x128xf32>
    %38 = tpu.matmul %35, %37, %cst_24 {dimension_numbers = #tpu.dot_dimension_numbers<[1], [0], [0], [1], [0, 0, 1, 1], [], []>} : vector<64x64xbf16>, vector<64x128xbf16>, vector<64x128xf32> -> vector<64x128xf32>
    %c0_25 = arith.constant 0 : index
    %c0_26 = arith.constant 0 : index
    %c0_27 = arith.constant 0 : index
    %39 = vector.load %arg1[%c0_25, %c0_26, %c0_27] : memref<1x64x128xf32, #tpu.memory_space<vmem>>, vector<1x64x128xf32>
    %40 = vector.shape_cast %39 : vector<1x64x128xf32> to vector<64x128xf32>
    %41 = arith.addf %40, %38 : vector<64x128xf32>
    %c0_28 = arith.constant 0 : index
    %c0_29 = arith.constant 0 : index
    %42 = vector.load %arg7[%c0_28, %c0_29] : memref<64x1xf32, #tpu.memory_space<vmem>>, vector<64x1xf32>
    %43 = vector.broadcast %42 : vector<64x1xf32> to vector<64x128xf32>
    %44 = arith.addf %41, %43 : vector<64x128xf32>
    %c0_30 = arith.constant 0 : index
    %c0_31 = arith.constant 0 : index
    %c0_32 = arith.constant 0 : index
    %45 = vector.load %arg8[%c0_30, %c0_31, %c0_32] : memref<1x64x128xf32, #tpu.memory_space<vmem>>, vector<1x64x128xf32>
    %46 = vector.shape_cast %45 : vector<1x64x128xf32> to vector<64x128xf32>
    %47 = vector.shape_cast %44 : vector<64x128xf32> to vector<1x64x128xf32>
    tpu.vector_store %arg8[%c0_30, %c0_31, %c0_32], %47 {strides = array<i32>} : memref<1x64x128xf32, #tpu.memory_space<vmem>>, vector<1x64x128xf32>,
    return
  }
  func.func @transform_0(%arg0: i32) -> (i32, i32, i32) {
    %c0_i32 = arith.constant 0 : i32
    %c0_i32_0 = arith.constant 0 : i32
    %c0_i32_1 = arith.constant 0 : i32
    return %arg0, %c0_i32, %c0_i32_0 : i32, i32, i32
  }
  func.func @transform_1(%arg0: i32) -> (i32, i32) {
    %c0_i32 = arith.constant 0 : i32
    %c0_i32_0 = arith.constant 0 : i32
    %c0_i32_1 = arith.constant 0 : i32
    return %c0_i32, %c0_i32_0 : i32, i32
  }
  func.func @transform_2(%arg0: i32) -> (i32, i32) {
    %c0_i32 = arith.constant 0 : i32
    %c0_i32_0 = arith.constant 0 : i32
    %c0_i32_1 = arith.constant 0 : i32
    return %c0_i32, %c0_i32_0 : i32, i32
  }
  func.func @transform_3(%arg0: i32) -> (i32, i32) {
    %c0_i32 = arith.constant 0 : i32
    %c0_i32_0 = arith.constant 0 : i32
    %c0_i32_1 = arith.constant 0 : i32
    return %c0_i32, %c0_i32_0 : i32, i32
  }
  func.func @transform_4(%arg0: i32) -> (i32, i32) {
    %c0_i32 = arith.constant 0 : i32
    %c0_i32_0 = arith.constant 0 : i32
    %c0_i32_1 = arith.constant 0 : i32
    return %c0_i32, %c0_i32_0 : i32, i32
  }
  func.func @transform_5(%arg0: i32) -> (i32, i32) {
    %c0_i32 = arith.constant 0 : i32
    %c0_i32_0 = arith.constant 0 : i32
    %c0_i32_1 = arith.constant 0 : i32
    return %c0_i32, %c0_i32_0 : i32, i32
  }
  func.func @transform_6(%arg0: i32) -> (i32, i32) {
    %c0_i32 = arith.constant 0 : i32
    %c0_i32_0 = arith.constant 0 : i32
    %c0_i32_1 = arith.constant 0 : i32
    return %c0_i32, %c0_i32_0 : i32, i32
  }
  func.func @transform_7(%arg0: i32) -> (i32, i32, i32) {
    %c0_i32 = arith.constant 0 : i32
    %c0_i32_0 = arith.constant 0 : i32
    %c0_i32_1 = arith.constant 0 : i32
    return %arg0, %c0_i32, %c0_i32_0 : i32, i32, i32
  }
}

module attributes {stable_mosaic.version = 11 : i64} {
  func.func @_attention_block_kernel(%arg0: i32, %arg1: memref<1x64x128xf32, #tpu.memory_space<vmem>>, %arg2: memref<32x64xf32, #tpu.memory_space<vmem>>, %arg3: memref<64x32xf32, #tpu.memory_space<vmem>>, %arg4: memref<192x64xbf16, #tpu.memory_space<vmem>>, %arg5: memref<192x1xf32, #tpu.memory_space<vmem>>, %arg6: memref<64x64xbf16, #tpu.memory_space<vmem>>, %arg7: memref<64x1xf32, #tpu.memory_space<vmem>>, %arg8: memref<1x64x128xf32, #tpu.memory_space<vmem>>, %arg9: memref<192x128xf32, #tpu.memory_space<vmem>>, %arg10: memref<64x128xf32, #tpu.memory_space<vmem>>) attributes {dimension_semantics = [#tpu.dimension_semantics<parallel>], iteration_bounds = array<i64: 2>, scalar_prefetch = 0 : i64, scratch_operands = 2 : i64, tpu.core_type = #tpu.core_type<tc>, window_params = [{transform_indices = @transform_0, window_bounds = array<i64: 1, 64, 128>}, {pipeline_mode = #tpu.pipeline_mode<synchronous>, transform_indices = @transform_1, window_bounds = array<i64: 32, 64>}, {pipeline_mode = #tpu.pipeline_mode<synchronous>, transform_indices = @transform_2, window_bounds = array<i64: 64, 32>}, {pipeline_mode = #tpu.pipeline_mode<synchronous>, transform_indices = @transform_3, window_bounds = array<i64: 192, 64>}, {pipeline_mode = #tpu.pipeline_mode<synchronous>, transform_indices = @transform_4, window_bounds = array<i64: 192, 1>}, {pipeline_mode = #tpu.pipeline_mode<synchronous>, transform_indices = @transform_5, window_bounds = array<i64: 64, 64>}, {pipeline_mode = #tpu.pipeline_mode<synchronous>, transform_indices = @transform_6, window_bounds = array<i64: 64, 1>}, {transform_indices = @transform_7, window_bounds = array<i64: 1, 64, 128>}]} {
    %c0 = arith.constant 0 : index
    %c0_0 = arith.constant 0 : index
    %c0_1 = arith.constant 0 : index
    %0 = vector.load %arg1[%c0, %c0_0, %c0_1] : memref<1x64x128xf32, #tpu.memory_space<vmem>>, vector<1x64x128xf32>
    %1 = vector.shape_cast %0 : vector<1x64x128xf32> to vector<64x128xf32>
    %cst = arith.constant dense<0.000000e+00> : vector<64xf32>
    %2 = vector.multi_reduction <add>, %1, %cst [1] : vector<64x128xf32> to vector<64xf32>
    %3 = vector.shape_cast %2 : vector<64xf32> to vector<64x1xf32>
    %cst_2 = arith.constant 7.812500e-03 : f32
    %4 = vector.broadcast %cst_2 : f32 to vector<64x1xf32>
    %5 = arith.mulf %3, %4 : vector<64x1xf32>
    %6 = arith.mulf %1, %1 : vector<64x128xf32>
    %cst_3 = arith.constant dense<0.000000e+00> : vector<64xf32>
    %7 = vector.multi_reduction <add>, %6, %cst_3 [1] : vector<64x128xf32> to vector<64xf32>
    %8 = vector.shape_cast %7 : vector<64xf32> to vector<64x1xf32>
    %cst_4 = arith.constant 7.812500e-03 : f32
    %9 = vector.broadcast %cst_4 : f32 to vector<64x1xf32>
    %10 = arith.mulf %8, %9 : vector<64x1xf32>
    %11 = tpu.concatenate %5, %10 in 1 : vector<64x1xf32>, vector<64x1xf32> -> vector<64x2xf32>
    %c0_5 = arith.constant 0 : index
    %c0_6 = arith.constant 0 : index
    %12 = vector.load %arg2[%c0_5, %c0_6] : memref<32x64xf32, #tpu.memory_space<vmem>>, vector<32x64xf32>
    %cst_7 = arith.constant dense<0.000000e+00> : vector<32x2xf32>
    %13 = tpu.matmul %12, %11, %cst_7 {dimension_numbers = #tpu.dot_dimension_numbers<[1], [0], [0], [1], [0, 0, 1, 1], [], []>} : vector<32x64xf32>, vector<64x2xf32>, vector<32x2xf32> -> vector<32x2xf32>
    %c0_8 = arith.constant 0 : index
    %c0_9 = arith.constant 0 : index
    %14 = vector.load %arg3[%c0_8, %c0_9] : memref<64x32xf32, #tpu.memory_space<vmem>>, vector<64x32xf32>
    %cst_10 = arith.constant dense<0.000000e+00> : vector<64x2xf32>
    %15 = tpu.matmul %14, %13, %cst_10 {dimension_numbers = #tpu.dot_dimension_numbers<[1], [0], [0], [1], [0, 0, 1, 1], [], []>} : vector<64x32xf32>, vector<32x2xf32>, vector<64x2xf32> -> vector<64x2xf32>
    %16 = vector.extract_strided_slice %15 {offsets = [0, 0], sizes = [64, 1], strides = [1, 1]} : vector<64x2xf32> to vector<64x1xf32>
    %17 = vector.extract_strided_slice %15 {offsets = [0, 1], sizes = [64, 1], strides = [1, 1]} : vector<64x2xf32> to vector<64x1xf32>
    %18 = arith.mulf %16, %16 : vector<64x1xf32>
    %19 = arith.subf %17, %18 : vector<64x1xf32>
    %20 = vector.broadcast %16 : vector<64x1xf32> to vector<64x128xf32>
    %21 = arith.subf %1, %20 : vector<64x128xf32>
    %cst_11 = arith.constant 9.99999974E-6 : f32
    %22 = vector.broadcast %cst_11 : f32 to vector<64x1xf32>
    %23 = arith.addf %19, %22 : vector<64x1xf32>
    %24 = math.rsqrt %23 : vector<64x1xf32>
    %25 = vector.broadcast %24 : vector<64x1xf32> to vector<64x128xf32>
    %26 = arith.mulf %21, %25 : vector<64x128xf32>
    %27 = arith.truncf %26 : vector<64x128xf32> to vector<64x128xbf16>
    %c0_12 = arith.constant 0 : index
    %c0_13 = arith.constant 0 : index
    %28 = vector.load %arg4[%c0_12, %c0_13] : memref<192x64xbf16, #tpu.memory_space<vmem>>, vector<192x64xbf16>
    %cst_14 = arith.constant dense<0.000000e+00> : vector<192x128xf32>
    %29 = tpu.matmul %28, %27, %cst_14 {dimension_numbers = #tpu.dot_dimension_numbers<[1], [0], [0], [1], [0, 0, 1, 1], [], []>} : vector<192x64xbf16>, vector<64x128xbf16>, vector<192x128xf32> -> vector<192x128xf32>
    %c0_15 = arith.constant 0 : index
    %c0_16 = arith.constant 0 : index
    %30 = vector.load %arg5[%c0_15, %c0_16] : memref<192x1xf32, #tpu.memory_space<vmem>>, vector<192x1xf32>
    %31 = vector.broadcast %30 : vector<192x1xf32> to vector<192x128xf32>
    %32 = arith.addf %29, %31 : vector<192x128xf32>
    %c0_17 = arith.constant 0 : index
    %c0_18 = arith.constant 0 : index
    %33 = vector.load %arg9[%c0_17, %c0_18] : memref<192x128xf32, #tpu.memory_space<vmem>>, vector<192x128xf32>
    tpu.vector_store %arg9[%c0_17, %c0_18], %32 {strides = array<i32>} : memref<192x128xf32, #tpu.memory_space<vmem>>, vector<192x128xf32>,
    %c0_i32 = arith.constant 0 : i32
    %c2_i32 = arith.constant 2 : i32
    %34 = arith.addi %c0_i32, %c2_i32 : i32
    %c1_i32 = arith.constant 1 : i32
    scf.for %arg11 = %c0_i32 to %34 step %c1_i32  : i32 {
      %c96_i32 = arith.constant 96 : i32
      %48 = arith.muli %arg11, %c96_i32 : i32
      %49 = tpu.assume_multiple %48, 32 : i32
      %c32_i32 = arith.constant 32 : i32
      %50 = arith.muli %arg11, %c32_i32 : i32
      %51 = tpu.assume_multiple %50, 32 : i32
      %c32_i32_33 = arith.constant 32 : i32
      %52 = arith.addi %49, %c32_i32_33 : i32
      %53 = arith.index_cast %52 : i32 to index
      %c0_34 = arith.constant 0 : index
      %54 = vector.load %arg9[%53, %c0_34] : memref<192x128xf32, #tpu.memory_space<vmem>>, vector<32x128xf32>
      %55 = arith.truncf %54 : vector<32x128xf32> to vector<32x128xbf16>
      %c64_i32 = arith.constant 64 : i32
      %56 = arith.addi %49, %c64_i32 : i32
      %57 = arith.index_cast %56 : i32 to index
      %c0_35 = arith.constant 0 : index
      %58 = vector.load %arg9[%57, %c0_35] : memref<192x128xf32, #tpu.memory_space<vmem>>, vector<32x128xf32>
      %59 = arith.truncf %58 : vector<32x128xf32> to vector<32x128xbf16>
      %c0_i32_36 = arith.constant 0 : i32
      %c128_i32 = arith.constant 128 : i32
      %60 = arith.muli %c0_i32_36, %c128_i32 : i32
      %61 = tpu.assume_multiple %60, 128 : i32
      %62 = arith.index_cast %49 : i32 to index
      %63 = arith.index_cast %61 : i32 to index
      %64 = vector.load %arg9[%62, %63] : memref<192x128xf32, #tpu.memory_space<vmem>>, vector<32x128xf32>
      %65 = arith.truncf %64 : vector<32x128xf32> to vector<32x128xbf16>
      %cst_37 = arith.constant dense<0.000000e+00> : vector<128x128xf32>
      %66 = tpu.matmul %65, %55, %cst_37 {dimension_numbers = #tpu.dot_dimension_numbers<[0], [0], [1], [1], [0, 1, 1, 1], [], []>} : vector<32x128xbf16>, vector<32x128xbf16>, vector<128x128xf32> -> vector<128x128xf32>
      %cst_38 = arith.constant dense<0xFF800000> : vector<128xf32>
      %67 = vector.multi_reduction <maximumf>, %66, %cst_38 [1] : vector<128x128xf32> to vector<128xf32>
      %68 = vector.shape_cast %67 : vector<128xf32> to vector<128x1xf32>
      %69 = vector.broadcast %68 : vector<128x1xf32> to vector<128x128xf32>
      %70 = arith.subf %66, %69 : vector<128x128xf32>
      %71 = math.exp %70 : vector<128x128xf32>
      %cst_39 = arith.constant dense<0.000000e+00> : vector<128xf32>
      %72 = vector.multi_reduction <add>, %71, %cst_39 [1] : vector<128x128xf32> to vector<128xf32>
      %73 = vector.shape_cast %72 : vector<128xf32> to vector<128x1xf32>
      %74 = tpu.reciprocal %73 {approx = true} : vector<128x1xf32> -> vector<128x1xf32>
      %75 = vector.broadcast %74 : vector<128x1xf32> to vector<128x128xf32>
      %76 = arith.mulf %71, %75 : vector<128x128xf32>
      %77 = arith.truncf %76 : vector<128x128xf32> to vector<128x128xbf16>
      %cst_40 = arith.constant dense<0.000000e+00> : vector<32x128xf32>
      %78 = tpu.matmul %59, %77, %cst_40 {dimension_numbers = #tpu.dot_dimension_numbers<[1], [1], [0], [0], [0, 0, 1, 0], [], []>} : vector<32x128xbf16>, vector<128x128xbf16>, vector<32x128xf32> -> vector<32x128xf32>
      %79 = arith.index_cast %51 : i32 to index
      %80 = arith.index_cast %61 : i32 to index
      %81 = vector.load %arg10[%79, %80] : memref<64x128xf32, #tpu.memory_space<vmem>>, vector<32x128xf32>
      tpu.vector_store %arg10[%79, %80], %78 {strides = array<i32>} : memref<64x128xf32, #tpu.memory_space<vmem>>, vector<32x128xf32>,
      %c1_i32_41 = arith.constant 1 : i32
    }
    %c2_i32_19 = arith.constant 2 : i32
    %c0_20 = arith.constant 0 : index
    %c0_21 = arith.constant 0 : index
    %35 = vector.load %arg6[%c0_20, %c0_21] : memref<64x64xbf16, #tpu.memory_space<vmem>>, vector<64x64xbf16>
    %c0_22 = arith.constant 0 : index
    %c0_23 = arith.constant 0 : index
    %36 = vector.load %arg10[%c0_22, %c0_23] : memref<64x128xf32, #tpu.memory_space<vmem>>, vector<64x128xf32>
    %37 = arith.truncf %36 : vector<64x128xf32> to vector<64x128xbf16>
    %cst_24 = arith.constant dense<0.000000e+00> : vector<64x128xf32>
    %38 = tpu.matmul %35, %37, %cst_24 {dimension_numbers = #tpu.dot_dimension_numbers<[1], [0], [0], [1], [0, 0, 1, 1], [], []>} : vector<64x64xbf16>, vector<64x128xbf16>, vector<64x128xf32> -> vector<64x128xf32>
    %c0_25 = arith.constant 0 : index
    %c0_26 = arith.constant 0 : index
    %c0_27 = arith.constant 0 : index
    %39 = vector.load %arg1[%c0_25, %c0_26, %c0_27] : memref<1x64x128xf32, #tpu.memory_space<vmem>>, vector<1x64x128xf32>
    %40 = vector.shape_cast %39 : vector<1x64x128xf32> to vector<64x128xf32>
    %41 = arith.addf %40, %38 : vector<64x128xf32>
    %c0_28 = arith.constant 0 : index
    %c0_29 = arith.constant 0 : index
    %42 = vector.load %arg7[%c0_28, %c0_29] : memref<64x1xf32, #tpu.memory_space<vmem>>, vector<64x1xf32>
    %43 = vector.broadcast %42 : vector<64x1xf32> to vector<64x128xf32>
    %44 = arith.addf %41, %43 : vector<64x128xf32>
    %c0_30 = arith.constant 0 : index
    %c0_31 = arith.constant 0 : index
    %c0_32 = arith.constant 0 : index
    %45 = vector.load %arg8[%c0_30, %c0_31, %c0_32] : memref<1x64x128xf32, #tpu.memory_space<vmem>>, vector<1x64x128xf32>
    %46 = vector.shape_cast %45 : vector<1x64x128xf32> to vector<64x128xf32>
    %47 = vector.shape_cast %44 : vector<64x128xf32> to vector<1x64x128xf32>
    tpu.vector_store %arg8[%c0_30, %c0_31, %c0_32], %47 {strides = array<i32>} : memref<1x64x128xf32, #tpu.memory_space<vmem>>, vector<1x64x128xf32>,
    return
  }
  func.func @transform_0(%arg0: i32) -> (i32, i32, i32) {
    %c0_i32 = arith.constant 0 : i32
    %c0_i32_0 = arith.constant 0 : i32
    %c0_i32_1 = arith.constant 0 : i32
    return %arg0, %c0_i32, %c0_i32_0 : i32, i32, i32
  }
  func.func @transform_1(%arg0: i32) -> (i32, i32) {
    %c0_i32 = arith.constant 0 : i32
    %c0_i32_0 = arith.constant 0 : i32
    %c0_i32_1 = arith.constant 0 : i32
    return %c0_i32, %c0_i32_0 : i32, i32
  }
  func.func @transform_2(%arg0: i32) -> (i32, i32) {
    %c0_i32 = arith.constant 0 : i32
    %c0_i32_0 = arith.constant 0 : i32
    %c0_i32_1 = arith.constant 0 : i32
    return %c0_i32, %c0_i32_0 : i32, i32
  }
  func.func @transform_3(%arg0: i32) -> (i32, i32) {
    %c0_i32 = arith.constant 0 : i32
    %c0_i32_0 = arith.constant 0 : i32
    %c0_i32_1 = arith.constant 0 : i32
    return %c0_i32, %c0_i32_0 : i32, i32
  }
  func.func @transform_4(%arg0: i32) -> (i32, i32) {
    %c0_i32 = arith.constant 0 : i32
    %c0_i32_0 = arith.constant 0 : i32
    %c0_i32_1 = arith.constant 0 : i32
    return %c0_i32, %c0_i32_0 : i32, i32
  }
  func.func @transform_5(%arg0: i32) -> (i32, i32) {
    %c0_i32 = arith.constant 0 : i32
    %c0_i32_0 = arith.constant 0 : i32
    %c0_i32_1 = arith.constant 0 : i32
    return %c0_i32, %c0_i32_0 : i32, i32
  }
  func.func @transform_6(%arg0: i32) -> (i32, i32) {
    %c0_i32 = arith.constant 0 : i32
    %c0_i32_0 = arith.constant 0 : i32
    %c0_i32_1 = arith.constant 0 : i32
    return %c0_i32, %c0_i32_0 : i32, i32
  }
  func.func @transform_7(%arg0: i32) -> (i32, i32, i32) {
    %c0_i32 = arith.constant 0 : i32
    %c0_i32_0 = arith.constant 0 : i32
    %c0_i32_1 = arith.constant 0 : i32
    return %arg0, %c0_i32, %c0_i32_0 : i32, i32, i32
  }
}

</mosaic_0001>

<llo_original>
// kernel: tpu_custom_call.1
$region0: #{tpu_custom_call.1}
  #allocation0 [shape = 'u32[]', space=smem, size = 0x4, offset = 0x4, fixed_abs, tag = 'smem constant byte address 0x4 - core index']
  #allocation1 [shape = 'u32[72,128]{1,0:T(1,128)}', space=vmem, size = 0x9000, scoped, tag = 'internal scratch']
  #allocation2 [shape = 'f32[192,128]{1,0:T(8,128)}', space=vmem, size = 0x18000, scoped, tag = 'scratch operand']
  #allocation3 [shape = 'f32[64,128]{1,0:T(8,128)}', space=vmem, size = 0x8000, scoped, tag = 'scratch operand']
  %s0 = inlined_call_operand.vmem [shape: f32[2,64,128], index: 0, kind: input, shape index: {}]
  %s1 = inlined_call_operand.vmem [shape: f32[32,64], index: 1, kind: input, shape index: {}]
  %s2 = inlined_call_operand.vmem [shape: f32[64,32], index: 2, kind: input, shape index: {}]
  %s3 = inlined_call_operand.vmem [shape: bf16[192,64], index: 3, kind: input, shape index: {}]
  %s4 = inlined_call_operand.vmem [shape: f32[192,1], index: 4, kind: input, shape index: {}]
  %s5 = inlined_call_operand.vmem [shape: bf16[64,64], index: 5, kind: input, shape index: {}]
  %s6 = inlined_call_operand.vmem [shape: f32[64,1], index: 6, kind: input, shape index: {}]
  %s7 = inlined_call_operand.hbm [shape: f32[2,64,128], index: 7, kind: output, shape index: {}]
  %s8 = sld [smem:[#allocation0]]
  $region68: #{tpu_custom_call.1} parent=0
    _
  %s10 = ssub.s32 1, %s8
  %s11 = scalar_select 0, %s10, %s8
  $region1: #{tpu_custom_call.1} parent=0
    #allocation4 [shape = 'u8[65536]{0}', space=vmem, size = 0x10000, scoped, tag = 'output window, operand 0']
    #allocation5 [shape = 's32[2]{0}', space=sflag, size = 0x8, scoped, tag = 'scoped memory for tpu_custom_call.1']
    %12 = vsyncpa [#allocation5], 0
    %s13 = scalar_lea.sflag [#allocation5], 1
    %14 = vsyncpa %s13, 0
    loop: start=0, step=1, limit=4
    $region2: #{tpu_custom_call.1} parent=1 // loop_pre_header
      _
    $region3: #{tpu_custom_call.1} parent=1 // loop_header
      %s16 = sphi 0, %s20
      %p17 = scmp.ge.s32.totalorder %s16, 4
      %s26 = sphi 0, %s28
      %s29 = sphi 0, %s26
      %s30 = sphi 0, %s29
      %s46 = sphi 0, %s30
      %s50 = sphi 0, %s50
      %s52 = sphi 0, %s50
      %s53 = sphi 0, %s52
      %s67 = sphi 0, %s53
      %s71 = sphi 0, %s71
      %s73 = sphi 0, %s71
      %s74 = sphi 0, %s73
      %s88 = sphi 0, %s74
      %s92 = sphi 0, %s92
      %s94 = sphi 0, %s92
      %s95 = sphi 0, %s94
      %s109 = sphi 0, %s95
      %s113 = sphi 0, %s113
      %s115 = sphi 0, %s113
      %s116 = sphi 0, %s115
      %s130 = sphi 0, %s116
      %s134 = sphi 0, %s134
      %s136 = sphi 0, %s134
      %s137 = sphi 0, %s136
      %s151 = sphi 0, %s137
      %s155 = sphi 0, %s155
      %s157 = sphi 0, %s155
      %s158 = sphi 0, %s157
      %s172 = sphi 0, %s158
      %s178 = sphi 0, %s180
      %s181 = sphi 0, %s178
      %s182 = sphi 0, %s181
      %s198 = sphi 0, %s182
    $region4: #{tpu_custom_call.1} parent=1 // loop_header_branch
      %19 = sbr.rel (%p17) target = $region8
    $region5: #{tpu_custom_call.1} parent=1 // loop_body
      %s21 = ssub.s32 %s16, 1
      %s22 = ssub.s32 %s16, 2
      %s23 = sadd.s32 %s16, 1
      %s24 = ssub.s32 %s16, %s23
      %p25 = scmp.eq.s32.totalorder %s24, 0
      %s27 = sadd.s32 %s26, 1
      %s28 = scalar_select %p25, %s26, %s27
      %p31 = pneg %p25
      %p32 = scmp.eq.s32.totalorder %s16, 1
      %p33 = por %p31, %p32
      %p34 = scmp.ne.s32.totalorder %s26, %s29
      %p35 = scmp.eq.s32.totalorder %s16, 0
      %p36 = por %p34, %p35
      %p37 = scmp.ne.s32.totalorder %s26, %s29
      %p38 = scmp.eq.s32.totalorder %s21, 1
      %p39 = por %p37, %p38
      %p40 = scmp.ne.s32.totalorder %s29, %s30
      %p41 = scmp.eq.s32.totalorder %s21, 0
      %p42 = por %p40, %p41
      %p43 = scmp.ne.s32.totalorder %s29, %s30
      %p44 = scmp.eq.s32.totalorder %s22, 1
      %p45 = por %p43, %p44
      %p47 = scmp.ne.s32.totalorder %s30, %s46
      %p48 = scmp.eq.s32.totalorder %s22, 0
      %p49 = por %p47, %p48
      %s51 = sadd.s32 %s50, 1
      %p54 = scmp.eq.s32.totalorder %s16, 1
      %p55 = scmp.ne.s32.totalorder %s50, %s52
      %p56 = scmp.eq.s32.totalorder %s16, 0
      %p57 = por %p55, %p56
      %p58 = scmp.ne.s32.totalorder %s50, %s52
      %p59 = scmp.eq.s32.totalorder %s21, 1
      %p60 = por %p58, %p59
      %p61 = scmp.ne.s32.totalorder %s52, %s53
      %p62 = scmp.eq.s32.totalorder %s21, 0
      %p63 = por %p61, %p62
      %p64 = scmp.ne.s32.totalorder %s52, %s53
      %p65 = scmp.eq.s32.totalorder %s22, 1
      %p66 = por %p64, %p65
      %p68 = scmp.ne.s32.totalorder %s53, %s67
      %p69 = scmp.eq.s32.totalorder %s22, 0
      %p70 = por %p68, %p69
      %s72 = sadd.s32 %s71, 1
      %p75 = scmp.eq.s32.totalorder %s16, 1
      %p76 = scmp.ne.s32.totalorder %s71, %s73
      %p77 = scmp.eq.s32.totalorder %s16, 0
      %p78 = por %p76, %p77
      %p79 = scmp.ne.s32.totalorder %s71, %s73
      %p80 = scmp.eq.s32.totalorder %s21, 1
      %p81 = por %p79, %p80
      %p82 = scmp.ne.s32.totalorder %s73, %s74
      %p83 = scmp.eq.s32.totalorder %s21, 0
      %p84 = por %p82, %p83
      %p85 = scmp.ne.s32.totalorder %s73, %s74
      %p86 = scmp.eq.s32.totalorder %s22, 1
      %p87 = por %p85, %p86
      %p89 = scmp.ne.s32.totalorder %s74, %s88
      %p90 = scmp.eq.s32.totalorder %s22, 0
      %p91 = por %p89, %p90
      %s93 = sadd.s32 %s92, 1
      %p96 = scmp.eq.s32.totalorder %s16, 1
      %p97 = scmp.ne.s32.totalorder %s92, %s94
      %p98 = scmp.eq.s32.totalorder %s16, 0
      %p99 = por %p97, %p98
      %p100 = scmp.ne.s32.totalorder %s92, %s94
      %p101 = scmp.eq.s32.totalorder %s21, 1
      %p102 = por %p100, %p101
      %p103 = scmp.ne.s32.totalorder %s94, %s95
      %p104 = scmp.eq.s32.totalorder %s21, 0
      %p105 = por %p103, %p104
      %p106 = scmp.ne.s32.totalorder %s94, %s95
      %p107 = scmp.eq.s32.totalorder %s22, 1
      %p108 = por %p106, %p107
      %p110 = scmp.ne.s32.totalorder %s95, %s109
      %p111 = scmp.eq.s32.totalorder %s22, 0
      %p112 = por %p110, %p111
      %s114 = sadd.s32 %s113, 1
      %p117 = scmp.eq.s32.totalorder %s16, 1
      %p118 = scmp.ne.s32.totalorder %s113, %s115
      %p119 = scmp.eq.s32.totalorder %s16, 0
      %p120 = por %p118, %p119
      %p121 = scmp.ne.s32.totalorder %s113, %s115
      %p122 = scmp.eq.s32.totalorder %s21, 1
      %p123 = por %p121, %p122
      %p124 = scmp.ne.s32.totalorder %s115, %s116
      %p125 = scmp.eq.s32.totalorder %s21, 0
      %p126 = por %p124, %p125
      %p127 = scmp.ne.s32.totalorder %s115, %s116
      %p128 = scmp.eq.s32.totalorder %s22, 1
      %p129 = por %p127, %p128
      %p131 = scmp.ne.s32.totalorder %s116, %s130
      %p132 = scmp.eq.s32.totalorder %s22, 0
      %p133 = por %p131, %p132
      %s135 = sadd.s32 %s134, 1
      %p138 = scmp.eq.s32.totalorder %s16, 1
      %p139 = scmp.ne.s32.totalorder %s134, %s136
      %p140 = scmp.eq.s32.totalorder %s16, 0
      %p141 = por %p139, %p140
      %p142 = scmp.ne.s32.totalorder %s134, %s136
      %p143 = scmp.eq.s32.totalorder %s21, 1
      %p144 = por %p142, %p143
      %p145 = scmp.ne.s32.totalorder %s136, %s137
      %p146 = scmp.eq.s32.totalorder %s21, 0
      %p147 = por %p145, %p146
      %p148 = scmp.ne.s32.totalorder %s136, %s137
      %p149 = scmp.eq.s32.totalorder %s22, 1
      %p150 = por %p148, %p149
      %p152 = scmp.ne.s32.totalorder %s137, %s151
      %p153 = scmp.eq.s32.totalorder %s22, 0
      %p154 = por %p152, %p153
      %s156 = sadd.s32 %s155, 1
      %p159 = scmp.eq.s32.totalorder %s16, 1
      %p160 = scmp.ne.s32.totalorder %s155, %s157
      %p161 = scmp.eq.s32.totalorder %s16, 0
      %p162 = por %p160, %p161
      %p163 = scmp.ne.s32.totalorder %s155, %s157
      %p164 = scmp.eq.s32.totalorder %s21, 1
      %p165 = por %p163, %p164
      %p166 = scmp.ne.s32.totalorder %s157, %s158
      %p167 = scmp.eq.s32.totalorder %s21, 0
      %p168 = por %p166, %p167
      %p169 = scmp.ne.s32.totalorder %s157, %s158
      %p170 = scmp.eq.s32.totalorder %s22, 1
      %p171 = por %p169, %p170
      %p173 = scmp.ne.s32.totalorder %s158, %s172
      %p174 = scmp.eq.s32.totalorder %s22, 0
      %p175 = por %p173, %p174
      %s176 = ssub.s32 %s16, %s23
      %p177 = scmp.eq.s32.totalorder %s176, 0
      %s179 = sadd.s32 %s178, 1
      %s180 = scalar_select %p177, %s178, %s179
      %p183 = pneg %p177
      %p184 = scmp.eq.s32.totalorder %s16, 1
      %p185 = por %p183, %p184
      %p186 = scmp.ne.s32.totalorder %s178, %s181
      %p187 = scmp.eq.s32.totalorder %s16, 0
      %p188 = por %p186, %p187
      %p189 = scmp.ne.s32.totalorder %s178, %s181
      %p190 = scmp.eq.s32.totalorder %s21, 1
      %p191 = por %p189, %p190
      %p192 = scmp.ne.s32.totalorder %s181, %s182
      %p193 = scmp.eq.s32.totalorder %s21, 0
      %p194 = por %p192, %p193
      %p195 = scmp.ne.s32.totalorder %s181, %s182
      %p196 = scmp.eq.s32.totalorder %s22, 1
      %p197 = por %p195, %p196
      %p199 = scmp.ne.s32.totalorder %s182, %s198
      %p200 = scmp.eq.s32.totalorder %s22, 0
      %p201 = por %p199, %p200
      %p202 = scmp.le.s32.totalorder 1, %s16
      %p203 = scmp.lt.s32.totalorder %s16, 3
      %p204 = pnand %p202, %p203
      %p205 = pneg %p204
      // Predicated region
      $region9: #{tpu_custom_call.1} parent=5 // pred_check
        _
      $region10: #{tpu_custom_call.1} parent=5 // pred_check_branch
        %207 = sbr.rel (%p204) target = $region12
      $region11: #{tpu_custom_call.1} parent=5 // pred_region
        %s208 = ssub.s32 %s16, 1
        // Predicated region
        $region13: #{tpu_custom_call.1} parent=11 // pred_check
          %p209 = pneg %p63
        $region14: #{tpu_custom_call.1} parent=11 // pred_check_branch
          %211 = sbr.rel (%p209) target = $region16
        $region15: #{tpu_custom_call.1} parent=11 // pred_region
          _
        $region16: #{tpu_custom_call.1} parent=11 // pred_fallthru
          _
        // Predicated region
        $region17: #{tpu_custom_call.1} parent=11 // pred_check
          %p212 = pneg %p84
        $region18: #{tpu_custom_call.1} parent=11 // pred_check_branch
          %214 = sbr.rel (%p212) target = $region20
        $region19: #{tpu_custom_call.1} parent=11 // pred_region
          _
        $region20: #{tpu_custom_call.1} parent=11 // pred_fallthru
          _
        // Predicated region
        $region21: #{tpu_custom_call.1} parent=11 // pred_check
          %p215 = pneg %p105
        $region22: #{tpu_custom_call.1} parent=11 // pred_check_branch
          %217 = sbr.rel (%p215) target = $region24
        $region23: #{tpu_custom_call.1} parent=11 // pred_region
          _
        $region24: #{tpu_custom_call.1} parent=11 // pred_fallthru
          _
        // Predicated region
        $region25: #{tpu_custom_call.1} parent=11 // pred_check
          %p218 = pneg %p126
        $region26: #{tpu_custom_call.1} parent=11 // pred_check_branch
          %220 = sbr.rel (%p218) target = $region28
        $region27: #{tpu_custom_call.1} parent=11 // pred_region
          _
        $region28: #{tpu_custom_call.1} parent=11 // pred_fallthru
          _
        // Predicated region
        $region29: #{tpu_custom_call.1} parent=11 // pred_check
          %p221 = pneg %p147
        $region30: #{tpu_custom_call.1} parent=11 // pred_check_branch
          %223 = sbr.rel (%p221) target = $region32
        $region31: #{tpu_custom_call.1} parent=11 // pred_region
          _
        $region32: #{tpu_custom_call.1} parent=11 // pred_fallthru
          _
        // Predicated region
        $region33: #{tpu_custom_call.1} parent=11 // pred_check
          %p224 = pneg %p168
        $region34: #{tpu_custom_call.1} parent=11 // pred_check_branch
          %226 = sbr.rel (%p224) target = $region36
        $region35: #{tpu_custom_call.1} parent=11 // pred_region
          _
        $region36: #{tpu_custom_call.1} parent=11 // pred_fallthru
          _
      $region12: #{tpu_custom_call.1} parent=5 // pred_fallthru
        _
      %p227 = scmp.lt.s32.totalorder %s16, 2
      // Predicated region
      $region37: #{tpu_custom_call.1} parent=5 // pred_check
        %p228 = pneg %p227
      $region38: #{tpu_custom_call.1} parent=5 // pred_check_branch
        %230 = sbr.rel (%p228) target = $region40
      $region39: #{tpu_custom_call.1} parent=5 // pred_region
        // Predicated region
        $region41: #{tpu_custom_call.1} parent=39 // pred_check
          %p231 = pneg %p36
        $region42: #{tpu_custom_call.1} parent=39 // pred_check_branch
          %233 = sbr.rel (%p231) target = $region44
        $region43: #{tpu_custom_call.1} parent=39 // pred_region
          %p234 = scmp.lt.s32.totalorder %s16, 1
          %s235 = scalar_select %p234, %s16, 1
          %s236 = smul.addr %s235, 8
          %s237 = smul.addr %s236, 8
          %s238 = scalar_lea.vmem %s0, %s237
        $region44: #{tpu_custom_call.1} parent=39 // pred_fallthru
          _
      $region40: #{tpu_custom_call.1} parent=5 // pred_fallthru
        _
      %p239 = scmp.le.s32.totalorder 1, %s16
      %p240 = scmp.lt.s32.totalorder %s16, 3
      %p241 = pnand %p239, %p240
      %p242 = pneg %p241
      // Predicated region
      $region45: #{tpu_custom_call.1} parent=5 // pred_check
        _
      $region46: #{tpu_custom_call.1} parent=5 // pred_check_branch
        %244 = sbr.rel (%p241) target = $region48
      $region47: #{tpu_custom_call.1} parent=5 // pred_region
        %s245 = ssub.s32 %s16, 1
        %p246 = scmp.lt.s32.totalorder %s21, 1
        %s247 = scalar_select %p246, %s21, 1
        %s248 = smul.addr %s247, 8
        %s249 = smul.addr %s248, 8
        %s250 = scalar_lea.vmem %s0, %s249
        %p251 = pneg %p42
        %p252 = pneg %p39
        %p253 = pneg %p63
        %p254 = pneg %p60
        %p255 = pneg %p84
        %p256 = pneg %p81
        %p257 = pneg %p105
        %p258 = pneg %p102
        %p259 = pneg %p126
        %p260 = pneg %p123
        %p261 = pneg %p147
        %p262 = pneg %p144
        %p263 = pneg %p168
        %p264 = pneg %p165
        %p265 = pneg %p194
        %p266 = pneg %p191
        %s267 = sand.u32 %s181, 1
        %s268 = scalar_lea.sflag [#allocation5], %s267
        %s269 = sand.u32 %s181, 1
        %s270 = smul.addr %s269, 64
        %s271 = scalar_lea.vmem [#allocation4], %s270
        %p272 = scmp.lt.s32.totalorder %s21, 1
        %s273 = scalar_select %p272, %s21, 1
        %s274 = smul.addr %s273, 8
        %s275 = smul.addr %s274, 8
        %s276 = scalar_lea.vmem %s0, %s275
        %v278 = vld [vmem:[%s276] sm:$0xff]
        %v279 = vld [vmem:[%s276 + $0x8] sm:$0xff]
        %v280 = vld [vmem:[%s276 + $0x10] sm:$0xff]
        %v281 = vld [vmem:[%s276 + $0x18] sm:$0xff]
        %v282 = vld [vmem:[%s276 + $0x20] sm:$0xff]
        %v283 = vld [vmem:[%s276 + $0x28] sm:$0xff]
        %v284 = vld [vmem:[%s276 + $0x30] sm:$0xff]
        %v285 = vld [vmem:[%s276 + $0x38] sm:$0xff]
        %286 = vadd.xlane.f32.xlu0 %v278
        %v287 = vpop.xlane.xlu0 %286
        %288 = vadd.xlane.f32.xlu0 %v279
        %v289 = vpop.xlane.xlu0 %288
        %290 = vadd.xlane.f32.xlu0 %v280
        %v291 = vpop.xlane.xlu0 %290
        %292 = vadd.xlane.f32.xlu0 %v281
        %v293 = vpop.xlane.xlu0 %292
        %294 = vadd.xlane.f32.xlu0 %v282
        %v295 = vpop.xlane.xlu0 %294
        %296 = vadd.xlane.f32.xlu0 %v283
        %v297 = vpop.xlane.xlu0 %296
        %298 = vadd.xlane.f32.xlu0 %v284
        %v299 = vpop.xlane.xlu0 %298
        %300 = vadd.xlane.f32.xlu0 %v285
        %v301 = vpop.xlane.xlu0 %300
        %v302 = vmul.f32 %v287, 0.0078125
        %v303 = vmul.f32 %v289, 0.0078125
        %v304 = vmul.f32 %v291, 0.0078125
        %v305 = vmul.f32 %v293, 0.0078125
        %v306 = vmul.f32 %v295, 0.0078125
        %v307 = vmul.f32 %v297, 0.0078125
        %v308 = vmul.f32 %v299, 0.0078125
        %v309 = vmul.f32 %v301, 0.0078125
        %v310 = vmul.f32 %v278, %v278
        %v311 = vmul.f32 %v279, %v279
        %v312 = vmul.f32 %v280, %v280
        %v313 = vmul.f32 %v281, %v281
        %v314 = vmul.f32 %v282, %v282
        %v315 = vmul.f32 %v283, %v283
        %v316 = vmul.f32 %v284, %v284
        %v317 = vmul.f32 %v285, %v285
        %318 = vadd.xlane.f32.xlu0 %v310
        %v319 = vpop.xlane.xlu0 %318
        %320 = vadd.xlane.f32.xlu0 %v311
        %v321 = vpop.xlane.xlu0 %320
        %322 = vadd.xlane.f32.xlu0 %v312
        %v323 = vpop.xlane.xlu0 %322
        %324 = vadd.xlane.f32.xlu0 %v313
        %v325 = vpop.xlane.xlu0 %324
        %326 = vadd.xlane.f32.xlu0 %v314
        %v327 = vpop.xlane.xlu0 %326
        %328 = vadd.xlane.f32.xlu0 %v315
        %v329 = vpop.xlane.xlu0 %328
        %330 = vadd.xlane.f32.xlu0 %v316
        %v331 = vpop.xlane.xlu0 %330
        %332 = vadd.xlane.f32.xlu0 %v317
        %v333 = vpop.xlane.xlu0 %332
        %v334 = vmul.f32 %v319, 0.0078125
        %v335 = vmul.f32 %v321, 0.0078125
        %v336 = vmul.f32 %v323, 0.0078125
        %v337 = vmul.f32 %v325, 0.0078125
        %v338 = vmul.f32 %v327, 0.0078125
        %v339 = vmul.f32 %v329, 0.0078125
        %v340 = vmul.f32 %v331, 0.0078125
        %v341 = vmul.f32 %v333, 0.0078125
        %vm342 = vcmask 7168
        %v343 = vsel %vm342, %v302, %v334
        %v344 = vsel %vm342, %v303, %v335
        %v345 = vsel %vm342, %v304, %v336
        %v346 = vsel %vm342, %v305, %v337
        %v347 = vsel %vm342, %v306, %v338
        %v348 = vsel %vm342, %v307, %v339
        %v349 = vsel %vm342, %v308, %v340
        %v350 = vsel %vm342, %v309, %v341
        %v351 = vld [vmem:[%s1] sm:$0xff]
        %v352 = vld [vmem:[%s1 + $0x8] sm:$0xff]
        %v353 = vld [vmem:[%s1 + $0x10] sm:$0xff]
        %v354 = vld [vmem:[%s1 + $0x18] sm:$0xff]
        %vm355 = vcmask 523264
        %v357 = vsel %vm355, %v351, 0
        %v360 = vsel %vm355, %v352, 0
        %v363 = vsel %vm355, %v353, 0
        %v366 = vsel %vm355, %v354, 0
        %368 = vmatpush.msra.mxu0 0.0
        %369 = vmatpush.msra.mxu0 0.0
        %370 = vmatpush.msra.mxu0 0.0
        %371 = vmatpush.msra.mxu0 0.0
        %372 = vmatpush.msra.mxu0 0.0
        %373 = vmatpush.msra.mxu0 0.0
        %374 = vmatpush.msra.mxu0 0.0
        %375 = vmatpush.msra.mxu0 0.0
        %376 = vmatpush.msra.mxu0 %v350
        %377 = vmatpush.msra.mxu0 %v349
        %378 = vmatpush.msra.mxu0 %v348
        %379 = vmatpush.msra.mxu0 %v347
        %380 = vmatpush.msra.mxu0 %v346
        %381 = vmatpush.msra.mxu0 %v345
        %382 = vmatpush.msra.mxu0 %v344
        %383 = vmatpush.msra.mxu0 %v343
        %384 = vmatmul.f32.gmra.mxu0 %v357
        %v385 = vpop.f32.mrf.mxu0
        %v386 = vadd.f32 0.0, %v385
        %387 = vmatmul.f32.gmra.mxu0 %v360
        %v388 = vpop.f32.mrf.mxu0
        %v389 = vadd.f32 0.0, %v388
        %390 = vmatmul.f32.gmra.mxu0 %v363
        %v391 = vpop.f32.mrf.mxu0
        %v392 = vadd.f32 0.0, %v391
        %393 = vmatmul.f32.gmra.mxu0 %v366
        %v394 = vpop.f32.mrf.mxu0
        %v395 = vadd.f32 0.0, %v394
        %396 = vdwg.mxu0
        %v397 = vld [vmem:[%s2] sm:$0xff]
        %v398 = vld [vmem:[%s2 + $0x8] sm:$0xff]
        %v399 = vld [vmem:[%s2 + $0x10] sm:$0xff]
        %v400 = vld [vmem:[%s2 + $0x18] sm:$0xff]
        %v401 = vld [vmem:[%s2 + $0x20] sm:$0xff]
        %v402 = vld [vmem:[%s2 + $0x28] sm:$0xff]
        %v403 = vld [vmem:[%s2 + $0x30] sm:$0xff]
        %v404 = vld [vmem:[%s2 + $0x38] sm:$0xff]
        %vm405 = vcmask 261120
        %v407 = vsel %vm405, %v397, 0
        %v410 = vsel %vm405, %v398, 0
        %v413 = vsel %vm405, %v399, 0
        %v416 = vsel %vm405, %v400, 0
        %v419 = vsel %vm405, %v401, 0
        %v422 = vsel %vm405, %v402, 0
        %v425 = vsel %vm405, %v403, 0
        %v428 = vsel %vm405, %v404, 0
        %430 = vmatpush.msra.mxu0 0.0
        %431 = vmatpush.msra.mxu0 0.0
        %432 = vmatpush.msra.mxu0 0.0
        %433 = vmatpush.msra.mxu0 0.0
        %434 = vmatpush.msra.mxu0 0.0
        %435 = vmatpush.msra.mxu0 0.0
        %436 = vmatpush.msra.mxu0 0.0
        %437 = vmatpush.msra.mxu0 0.0
        %438 = vmatpush.msra.mxu0 0.0
        %439 = vmatpush.msra.mxu0 0.0
        %440 = vmatpush.msra.mxu0 0.0
        %441 = vmatpush.msra.mxu0 0.0
        %442 = vmatpush.msra.mxu0 %v395
        %443 = vmatpush.msra.mxu0 %v392
        %444 = vmatpush.msra.mxu0 %v389
        %445 = vmatpush.msra.mxu0 %v386
        %446 = vmatmul.f32.gmra.mxu0 %v407
        %v447 = vpop.f32.mrf.mxu0
        %v448 = vadd.f32 0.0, %v447
        %449 = vmatmul.f32.gmra.mxu0 %v410
        %v450 = vpop.f32.mrf.mxu0
        %v451 = vadd.f32 0.0, %v450
        %452 = vmatmul.f32.gmra.mxu0 %v413
        %v453 = vpop.f32.mrf.mxu0
        %v454 = vadd.f32 0.0, %v453
        %455 = vmatmul.f32.gmra.mxu0 %v416
        %v456 = vpop.f32.mrf.mxu0
        %v457 = vadd.f32 0.0, %v456
        %458 = vmatmul.f32.gmra.mxu0 %v419
        %v459 = vpop.f32.mrf.mxu0
        %v460 = vadd.f32 0.0, %v459
        %461 = vmatmul.f32.gmra.mxu0 %v422
        %v462 = vpop.f32.mrf.mxu0
        %v463 = vadd.f32 0.0, %v462
        %464 = vmatmul.f32.gmra.mxu0 %v425
        %v465 = vpop.f32.mrf.mxu0
        %v466 = vadd.f32 0.0, %v465
        %467 = vmatmul.f32.gmra.mxu0 %v428
        %v468 = vpop.f32.mrf.mxu0
        %v469 = vadd.f32 0.0, %v468
        %470 = vdwg.mxu0
        %v471 = vmul.f32 %v448, %v448
        %v472 = vmul.f32 %v451, %v451
        %v473 = vmul.f32 %v454, %v454
        %v474 = vmul.f32 %v457, %v457
        %v475 = vmul.f32 %v460, %v460
        %v476 = vmul.f32 %v463, %v463
        %v477 = vmul.f32 %v466, %v466
        %v478 = vmul.f32 %v469, %v469
        %487 = vrot.lane.b32.xlu0 %v471, 1
        %v488 = vpop.permute.xlu0 %487
        %489 = vrot.lane.b32.xlu0 %v472, 1
        %v490 = vpop.permute.xlu0 %489
        %491 = vrot.lane.b32.xlu0 %v473, 1
        %v492 = vpop.permute.xlu0 %491
        %493 = vrot.lane.b32.xlu0 %v474, 1
        %v494 = vpop.permute.xlu0 %493
        %495 = vrot.lane.b32.xlu0 %v475, 1
        %v496 = vpop.permute.xlu0 %495
        %497 = vrot.lane.b32.xlu0 %v476, 1
        %v498 = vpop.permute.xlu0 %497
        %499 = vrot.lane.b32.xlu0 %v477, 1
        %v500 = vpop.permute.xlu0 %499
        %501 = vrot.lane.b32.xlu0 %v478, 1
        %v502 = vpop.permute.xlu0 %501
        %v511 = vsub.f32 %v448, %v488
        %v512 = vsub.f32 %v451, %v490
        %v513 = vsub.f32 %v454, %v492
        %v514 = vsub.f32 %v457, %v494
        %v515 = vsub.f32 %v460, %v496
        %v516 = vsub.f32 %v463, %v498
        %v517 = vsub.f32 %v466, %v500
        %v518 = vsub.f32 %v469, %v502
        %520 = vset.pattern.permute.xlu0 0
        %521 = vperm.xlu0 %520, %v448
        %v522 = vpop.permute.xlu0 %521
        %525 = vset.pattern.permute.xlu0 0
        %526 = vperm.xlu0 %525, %v451
        %v527 = vpop.permute.xlu0 %526
        %530 = vset.pattern.permute.xlu0 0
        %531 = vperm.xlu0 %530, %v454
        %v532 = vpop.permute.xlu0 %531
        %535 = vset.pattern.permute.xlu0 0
        %536 = vperm.xlu0 %535, %v457
        %v537 = vpop.permute.xlu0 %536
        %540 = vset.pattern.permute.xlu0 0
        %541 = vperm.xlu0 %540, %v460
        %v542 = vpop.permute.xlu0 %541
        %545 = vset.pattern.permute.xlu0 0
        %546 = vperm.xlu0 %545, %v463
        %v547 = vpop.permute.xlu0 %546
        %550 = vset.pattern.permute.xlu0 0
        %551 = vperm.xlu0 %550, %v466
        %v552 = vpop.permute.xlu0 %551
        %555 = vset.pattern.permute.xlu0 0
        %556 = vperm.xlu0 %555, %v469
        %v557 = vpop.permute.xlu0 %556
        %v559 = vsub.f32 %v278, %v522
        %v560 = vsub.f32 %v279, %v527
        %v561 = vsub.f32 %v280, %v532
        %v562 = vsub.f32 %v281, %v537
        %v563 = vsub.f32 %v282, %v542
        %v564 = vsub.f32 %v283, %v547
        %v565 = vsub.f32 %v284, %v552
        %v566 = vsub.f32 %v285, %v557
        %v567 = vadd.f32 %v511, 1e-05
        %v568 = vadd.f32 %v512, 1e-05
        %v569 = vadd.f32 %v513, 1e-05
        %v570 = vadd.f32 %v514, 1e-05
        %v571 = vadd.f32 %v515, 1e-05
        %v572 = vadd.f32 %v516, 1e-05
        %v573 = vadd.f32 %v517, 1e-05
        %v574 = vadd.f32 %v518, 1e-05
        %v575 = vrsqrt.pop %v567
        %v576 = vmul.f32 %v575, %v567
        %v577 = vmul.f32 %v576, %v575
        %v578 = vmul.f32 0.5, %v577
        %v579 = vsub.f32 1.5, %v578
        %v580 = vmul.f32 %v575, %v579
        %vm581 = vweird.f32 %v567
        %vm582 = vweird.f32 %v575
        %vm583 = vmor %vm581, %vm582
        %v584 = vsel %vm583, %v575, %v580
        %v585 = vrsqrt.pop %v568
        %v586 = vmul.f32 %v585, %v568
        %v587 = vmul.f32 %v586, %v585
        %v588 = vmul.f32 0.5, %v587
        %v589 = vsub.f32 1.5, %v588
        %v590 = vmul.f32 %v585, %v589
        %vm591 = vweird.f32 %v568
        %vm592 = vweird.f32 %v585
        %vm593 = vmor %vm591, %vm592
        %v594 = vsel %vm593, %v585, %v590
        %v595 = vrsqrt.pop %v569
        %v596 = vmul.f32 %v595, %v569
        %v597 = vmul.f32 %v596, %v595
        %v598 = vmul.f32 0.5, %v597
        %v599 = vsub.f32 1.5, %v598
        %v600 = vmul.f32 %v595, %v599
        %vm601 = vweird.f32 %v569
        %vm602 = vweird.f32 %v595
        %vm603 = vmor %vm601, %vm602
        %v604 = vsel %vm603, %v595, %v600
        %v605 = vrsqrt.pop %v570
        %v606 = vmul.f32 %v605, %v570
        %v607 = vmul.f32 %v606, %v605
        %v608 = vmul.f32 0.5, %v607
        %v609 = vsub.f32 1.5, %v608
        %v610 = vmul.f32 %v605, %v609
        %vm611 = vweird.f32 %v570
        %vm612 = vweird.f32 %v605
        %vm613 = vmor %vm611, %vm612
        %v614 = vsel %vm613, %v605, %v610
        %v615 = vrsqrt.pop %v571
        %v616 = vmul.f32 %v615, %v571
        %v617 = vmul.f32 %v616, %v615
        %v618 = vmul.f32 0.5, %v617
        %v619 = vsub.f32 1.5, %v618
        %v620 = vmul.f32 %v615, %v619
        %vm621 = vweird.f32 %v571
        %vm622 = vweird.f32 %v615
        %vm623 = vmor %vm621, %vm622
        %v624 = vsel %vm623, %v615, %v620
        %v625 = vrsqrt.pop %v572
        %v626 = vmul.f32 %v625, %v572
        %v627 = vmul.f32 %v626, %v625
        %v628 = vmul.f32 0.5, %v627
        %v629 = vsub.f32 1.5, %v628
        %v630 = vmul.f32 %v625, %v629
        %vm631 = vweird.f32 %v572
        %vm632 = vweird.f32 %v625
        %vm633 = vmor %vm631, %vm632
        %v634 = vsel %vm633, %v625, %v630
        %v635 = vrsqrt.pop %v573
        %v636 = vmul.f32 %v635, %v573
        %v637 = vmul.f32 %v636, %v635
        %v638 = vmul.f32 0.5, %v637
        %v639 = vsub.f32 1.5, %v638
        %v640 = vmul.f32 %v635, %v639
        %vm641 = vweird.f32 %v573
        %vm642 = vweird.f32 %v635
        %vm643 = vmor %vm641, %vm642
        %v644 = vsel %vm643, %v635, %v640
        %v645 = vrsqrt.pop %v574
        %v646 = vmul.f32 %v645, %v574
        %v647 = vmul.f32 %v646, %v645
        %v648 = vmul.f32 0.5, %v647
        %v649 = vsub.f32 1.5, %v648
        %v650 = vmul.f32 %v645, %v649
        %vm651 = vweird.f32 %v574
        %vm652 = vweird.f32 %v645
        %vm653 = vmor %vm651, %vm652
        %v654 = vsel %vm653, %v645, %v650
        %656 = vset.pattern.permute.xlu0 1
        %657 = vperm.xlu0 %656, %v584
        %v658 = vpop.permute.xlu0 %657
        %661 = vset.pattern.permute.xlu0 1
        %662 = vperm.xlu0 %661, %v594
        %v663 = vpop.permute.xlu0 %662
        %666 = vset.pattern.permute.xlu0 1
        %667 = vperm.xlu0 %666, %v604
        %v668 = vpop.permute.xlu0 %667
        %671 = vset.pattern.permute.xlu0 1
        %672 = vperm.xlu0 %671, %v614
        %v673 = vpop.permute.xlu0 %672
        %676 = vset.pattern.permute.xlu0 1
        %677 = vperm.xlu0 %676, %v624
        %v678 = vpop.permute.xlu0 %677
        %681 = vset.pattern.permute.xlu0 1
        %682 = vperm.xlu0 %681, %v634
        %v683 = vpop.permute.xlu0 %682
        %686 = vset.pattern.permute.xlu0 1
        %687 = vperm.xlu0 %686, %v644
        %v688 = vpop.permute.xlu0 %687
        %691 = vset.pattern.permute.xlu0 1
        %692 = vperm.xlu0 %691, %v654
        %v693 = vpop.permute.xlu0 %692
        %v695 = vmul.f32 %v559, %v658
        %v696 = vmul.f32 %v560, %v663
        %v697 = vmul.f32 %v561, %v668
        %v698 = vmul.f32 %v562, %v673
        %v699 = vmul.f32 %v563, %v678
        %v700 = vmul.f32 %v564, %v683
        %v701 = vmul.f32 %v565, %v688
        %v702 = vmul.f32 %v566, %v693
        %v703 = vpack.c.bf16 %v696, %v695
        %v704 = vpack.c.bf16 %v698, %v697
        %v705 = vpack.c.bf16 %v700, %v699
        %v706 = vpack.c.bf16 %v702, %v701
        %v707 = vld [vmem:[%s3] sm:$0xf]
        %v708 = vld [vmem:[%s3 + $0x4] sm:$0xf]
        %v709 = vld [vmem:[%s3 + $0x8] sm:$0xf]
        %v710 = vld [vmem:[%s3 + $0xc] sm:$0xf]
        %v711 = vld [vmem:[%s3 + $0x10] sm:$0xf]
        %v712 = vld [vmem:[%s3 + $0x14] sm:$0xf]
        %v713 = vld [vmem:[%s3 + $0x18] sm:$0xf]
        %v714 = vld [vmem:[%s3 + $0x1c] sm:$0xf]
        %v715 = vld [vmem:[%s3 + $0x20] sm:$0xf]
        %v716 = vld [vmem:[%s3 + $0x24] sm:$0xf]
        %v717 = vld [vmem:[%s3 + $0x28] sm:$0xf]
        %v718 = vld [vmem:[%s3 + $0x2c] sm:$0xf]
        %v719 = vld [vmem:[%s3 + $0x30] sm:$0xf]
        %v720 = vld [vmem:[%s3 + $0x34] sm:$0xf]
        %v721 = vld [vmem:[%s3 + $0x38] sm:$0xf]
        %v722 = vld [vmem:[%s3 + $0x3c] sm:$0xf]
        %v723 = vld [vmem:[%s3 + $0x40] sm:$0xf]
        %v724 = vld [vmem:[%s3 + $0x44] sm:$0xf]
        %v725 = vld [vmem:[%s3 + $0x48] sm:$0xf]
        %v726 = vld [vmem:[%s3 + $0x4c] sm:$0xf]
        %v727 = vld [vmem:[%s3 + $0x50] sm:$0xf]
        %v728 = vld [vmem:[%s3 + $0x54] sm:$0xf]
        %v729 = vld [vmem:[%s3 + $0x58] sm:$0xf]
        %v730 = vld [vmem:[%s3 + $0x5c] sm:$0xf]
        %v731 = vld [vmem:[%s4] sm:$0xff]
        %v732 = vld [vmem:[%s4 + $0x8] sm:$0xff]
        %v733 = vld [vmem:[%s4 + $0x10] sm:$0xff]
        %v734 = vld [vmem:[%s4 + $0x18] sm:$0xff]
        %v735 = vld [vmem:[%s4 + $0x20] sm:$0xff]
        %v736 = vld [vmem:[%s4 + $0x28] sm:$0xff]
        %v737 = vld [vmem:[%s4 + $0x30] sm:$0xff]
        %v738 = vld [vmem:[%s4 + $0x38] sm:$0xff]
        %v739 = vld [vmem:[%s4 + $0x40] sm:$0xff]
        %v740 = vld [vmem:[%s4 + $0x48] sm:$0xff]
        %v741 = vld [vmem:[%s4 + $0x50] sm:$0xff]
        %v742 = vld [vmem:[%s4 + $0x58] sm:$0xff]
        %v743 = vld [vmem:[%s4 + $0x60] sm:$0xff]
        %v744 = vld [vmem:[%s4 + $0x68] sm:$0xff]
        %v745 = vld [vmem:[%s4 + $0x70] sm:$0xff]
        %v746 = vld [vmem:[%s4 + $0x78] sm:$0xff]
        %v747 = vld [vmem:[%s4 + $0x80] sm:$0xff]
        %v748 = vld [vmem:[%s4 + $0x88] sm:$0xff]
        %v749 = vld [vmem:[%s4 + $0x90] sm:$0xff]
        %v750 = vld [vmem:[%s4 + $0x98] sm:$0xff]
        %v751 = vld [vmem:[%s4 + $0xa0] sm:$0xff]
        %v752 = vld [vmem:[%s4 + $0xa8] sm:$0xff]
        %v753 = vld [vmem:[%s4 + $0xb0] sm:$0xff]
        %v754 = vld [vmem:[%s4 + $0xb8] sm:$0xff]
        %756 = vset.pattern.permute.xlu0 0
        %757 = vperm.xlu0 %756, %v731
        %v758 = vpop.permute.xlu0 %757
        %761 = vset.pattern.permute.xlu0 0
        %762 = vperm.xlu0 %761, %v732
        %v763 = vpop.permute.xlu0 %762
        %766 = vset.pattern.permute.xlu0 0
        %767 = vperm.xlu0 %766, %v733
        %v768 = vpop.permute.xlu0 %767
        %771 = vset.pattern.permute.xlu0 0
        %772 = vperm.xlu0 %771, %v734
        %v773 = vpop.permute.xlu0 %772
        %776 = vset.pattern.permute.xlu0 0
        %777 = vperm.xlu0 %776, %v735
        %v778 = vpop.permute.xlu0 %777
        %781 = vset.pattern.permute.xlu0 0
        %782 = vperm.xlu0 %781, %v736
        %v783 = vpop.permute.xlu0 %782
        %786 = vset.pattern.permute.xlu0 0
        %787 = vperm.xlu0 %786, %v737
        %v788 = vpop.permute.xlu0 %787
        %791 = vset.pattern.permute.xlu0 0
        %792 = vperm.xlu0 %791, %v738
        %v793 = vpop.permute.xlu0 %792
        %796 = vset.pattern.permute.xlu0 0
        %797 = vperm.xlu0 %796, %v739
        %v798 = vpop.permute.xlu0 %797
        %801 = vset.pattern.permute.xlu0 0
        %802 = vperm.xlu0 %801, %v740
        %v803 = vpop.permute.xlu0 %802
        %806 = vset.pattern.permute.xlu0 0
        %807 = vperm.xlu0 %806, %v741
        %v808 = vpop.permute.xlu0 %807
        %811 = vset.pattern.permute.xlu0 0
        %812 = vperm.xlu0 %811, %v742
        %v813 = vpop.permute.xlu0 %812
        %816 = vset.pattern.permute.xlu0 0
        %817 = vperm.xlu0 %816, %v743
        %v818 = vpop.permute.xlu0 %817
        %821 = vset.pattern.permute.xlu0 0
        %822 = vperm.xlu0 %821, %v744
        %v823 = vpop.permute.xlu0 %822
        %826 = vset.pattern.permute.xlu0 0
        %827 = vperm.xlu0 %826, %v745
        %v828 = vpop.permute.xlu0 %827
        %831 = vset.pattern.permute.xlu0 0
        %832 = vperm.xlu0 %831, %v746
        %v833 = vpop.permute.xlu0 %832
        %836 = vset.pattern.permute.xlu0 0
        %837 = vperm.xlu0 %836, %v747
        %v838 = vpop.permute.xlu0 %837
        %841 = vset.pattern.permute.xlu0 0
        %842 = vperm.xlu0 %841, %v748
        %v843 = vpop.permute.xlu0 %842
        %846 = vset.pattern.permute.xlu0 0
        %847 = vperm.xlu0 %846, %v749
        %v848 = vpop.permute.xlu0 %847
        %851 = vset.pattern.permute.xlu0 0
        %852 = vperm.xlu0 %851, %v750
        %v853 = vpop.permute.xlu0 %852
        %856 = vset.pattern.permute.xlu0 0
        %857 = vperm.xlu0 %856, %v751
        %v858 = vpop.permute.xlu0 %857
        %861 = vset.pattern.permute.xlu0 0
        %862 = vperm.xlu0 %861, %v752
        %v863 = vpop.permute.xlu0 %862
        %866 = vset.pattern.permute.xlu0 0
        %867 = vperm.xlu0 %866, %v753
        %v868 = vpop.permute.xlu0 %867
        %871 = vset.pattern.permute.xlu0 0
        %872 = vperm.xlu0 %871, %v754
        %v873 = vpop.permute.xlu0 %872
        %v899 = vunpack.c.l.b16 %v707
        %v900 = vunpack.c.l.b16 %v708
        %v901 = vunpack.c.l.b16 %v709
        %v902 = vunpack.c.l.b16 %v710
        %v903 = vunpack.c.l.b16 %v711
        %v904 = vunpack.c.l.b16 %v712
        %v905 = vunpack.c.l.b16 %v713
        %v906 = vunpack.c.l.b16 %v714
        %v907 = vunpack.c.l.b16 %v715
        %v908 = vunpack.c.l.b16 %v716
        %v909 = vunpack.c.l.b16 %v717
        %v910 = vunpack.c.l.b16 %v718
        %v911 = vunpack.c.l.b16 %v719
        %v912 = vunpack.c.l.b16 %v720
        %v913 = vunpack.c.l.b16 %v721
        %v914 = vunpack.c.l.b16 %v722
        %v915 = vunpack.c.l.b16 %v723
        %v916 = vunpack.c.l.b16 %v724
        %v917 = vunpack.c.l.b16 %v725
        %v918 = vunpack.c.l.b16 %v726
        %v919 = vunpack.c.l.b16 %v727
        %v920 = vunpack.c.l.b16 %v728
        %v921 = vunpack.c.l.b16 %v729
        %v922 = vunpack.c.l.b16 %v730
        %v923 = vpack.c.b16 %v900, %v899
        %v924 = vpack.c.b16 %v902, %v901
        %v925 = vpack.c.b16 %v904, %v903
        %v926 = vpack.c.b16 %v906, %v905
        %v927 = vpack.c.b16 %v908, %v907
        %v928 = vpack.c.b16 %v910, %v909
        %v929 = vpack.c.b16 %v912, %v911
        %v930 = vpack.c.b16 %v914, %v913
        %v931 = vpack.c.b16 %v916, %v915
        %v932 = vpack.c.b16 %v918, %v917
        %v933 = vpack.c.b16 %v920, %v919
        %v934 = vpack.c.b16 %v922, %v921
        %v936 = vsel %vm355, %v923, 0
        %v939 = vsel %vm355, %v924, 0
        %v942 = vsel %vm355, %v925, 0
        %v945 = vsel %vm355, %v926, 0
        %v948 = vsel %vm355, %v927, 0
        %v951 = vsel %vm355, %v928, 0
        %v954 = vsel %vm355, %v929, 0
        %v957 = vsel %vm355, %v930, 0
        %v960 = vsel %vm355, %v931, 0
        %v963 = vsel %vm355, %v932, 0
        %v966 = vsel %vm355, %v933, 0
        %v969 = vsel %vm355, %v934, 0
        %971 = vmatpush.bf16.msra.mxu0 0
        %972 = vmatpush.bf16.msra.mxu0 0
        %973 = vmatpush.bf16.msra.mxu0 0
        %974 = vmatpush.bf16.msra.mxu0 0
        %975 = vmatpush.bf16.msra.mxu0 %v706
        %976 = vmatpush.bf16.msra.mxu0 %v705
        %977 = vmatpush.bf16.msra.mxu0 %v704
        %978 = vmatpush.bf16.msra.mxu0 %v703
        %979 = vmatmul.bf16.gmra.mxu0 %v936
        %v980 = vpop.f32.mrf.mxu0
        %v981 = vadd.f32 %v758, %v980
        %v982 = vpop.f32.mrf.mxu0
        %v983 = vadd.f32 %v763, %v982
        %984 = vmatmul.bf16.gmra.mxu0 %v939
        %v985 = vpop.f32.mrf.mxu0
        %v986 = vadd.f32 %v768, %v985
        %v987 = vpop.f32.mrf.mxu0
        %v988 = vadd.f32 %v773, %v987
        %989 = vmatmul.bf16.gmra.mxu0 %v942
        %v990 = vpop.f32.mrf.mxu0
        %v991 = vadd.f32 %v778, %v990
        %v992 = vpop.f32.mrf.mxu0
        %v993 = vadd.f32 %v783, %v992
        %994 = vmatmul.bf16.gmra.mxu0 %v945
        %v995 = vpop.f32.mrf.mxu0
        %v996 = vadd.f32 %v788, %v995
        %v997 = vpop.f32.mrf.mxu0
        %v998 = vadd.f32 %v793, %v997
        %999 = vmatmul.bf16.gmra.mxu0 %v948
        %v1000 = vpop.f32.mrf.mxu0
        %v1001 = vadd.f32 %v798, %v1000
        %v1002 = vpop.f32.mrf.mxu0
        %v1003 = vadd.f32 %v803, %v1002
        %1004 = vmatmul.bf16.gmra.mxu0 %v951
        %v1005 = vpop.f32.mrf.mxu0
        %v1006 = vadd.f32 %v808, %v1005
        %v1007 = vpop.f32.mrf.mxu0
        %v1008 = vadd.f32 %v813, %v1007
        %1009 = vmatmul.bf16.gmra.mxu0 %v954
        %v1010 = vpop.f32.mrf.mxu0
        %v1011 = vadd.f32 %v818, %v1010
        %v1012 = vpop.f32.mrf.mxu0
        %v1013 = vadd.f32 %v823, %v1012
        %1014 = vmatmul.bf16.gmra.mxu0 %v957
        %v1015 = vpop.f32.mrf.mxu0
        %v1016 = vadd.f32 %v828, %v1015
        %v1017 = vpop.f32.mrf.mxu0
        %v1018 = vadd.f32 %v833, %v1017
        %1019 = vmatmul.bf16.gmra.mxu0 %v960
        %v1020 = vpop.f32.mrf.mxu0
        %v1021 = vadd.f32 %v838, %v1020
        %v1022 = vpop.f32.mrf.mxu0
        %v1023 = vadd.f32 %v843, %v1022
        %1024 = vmatmul.bf16.gmra.mxu0 %v963
        %v1025 = vpop.f32.mrf.mxu0
        %v1026 = vadd.f32 %v848, %v1025
        %v1027 = vpop.f32.mrf.mxu0
        %v1028 = vadd.f32 %v853, %v1027
        %1029 = vmatmul.bf16.gmra.mxu0 %v966
        %v1030 = vpop.f32.mrf.mxu0
        %v1031 = vadd.f32 %v858, %v1030
        %v1032 = vpop.f32.mrf.mxu0
        %v1033 = vadd.f32 %v863, %v1032
        %1034 = vmatmul.bf16.gmra.mxu0 %v969
        %v1035 = vpop.f32.mrf.mxu0
        %v1036 = vadd.f32 %v868, %v1035
        %v1037 = vpop.f32.mrf.mxu0
        %v1038 = vadd.f32 %v873, %v1037
        %1039 = vdwg.mxu0
        %1040 = vst [vmem:[#allocation2] sm:$0xff] %v981
        %1041 = vst [vmem:[#allocation2 + $0x8] sm:$0xff] %v983
        %1042 = vst [vmem:[#allocation2 + $0x10] sm:$0xff] %v986
        %1043 = vst [vmem:[#allocation2 + $0x18] sm:$0xff] %v988
        %1044 = vst [vmem:[#allocation2 + $0x20] sm:$0xff] %v991
        %1045 = vst [vmem:[#allocation2 + $0x28] sm:$0xff] %v993
        %1046 = vst [vmem:[#allocation2 + $0x30] sm:$0xff] %v996
        %1047 = vst [vmem:[#allocation2 + $0x38] sm:$0xff] %v998
        %1048 = vst [vmem:[#allocation2 + $0x40] sm:$0xff] %v1001
        %1049 = vst [vmem:[#allocation2 + $0x48] sm:$0xff] %v1003
        %1050 = vst [vmem:[#allocation2 + $0x50] sm:$0xff] %v1006
        %1051 = vst [vmem:[#allocation2 + $0x58] sm:$0xff] %v1008
        %1052 = vst [vmem:[#allocation2 + $0x60] sm:$0xff] %v1011
        %1053 = vst [vmem:[#allocation2 + $0x68] sm:$0xff] %v1013
        %1054 = vst [vmem:[#allocation2 + $0x70] sm:$0xff] %v1016
        %1055 = vst [vmem:[#allocation2 + $0x78] sm:$0xff] %v1018
        %1056 = vst [vmem:[#allocation2 + $0x80] sm:$0xff] %v1021
        %1057 = vst [vmem:[#allocation2 + $0x88] sm:$0xff] %v1023
        %1058 = vst [vmem:[#allocation2 + $0x90] sm:$0xff] %v1026
        %1059 = vst [vmem:[#allocation2 + $0x98] sm:$0xff] %v1028
        %1060 = vst [vmem:[#allocation2 + $0xa0] sm:$0xff] %v1031
        %1061 = vst [vmem:[#allocation2 + $0xa8] sm:$0xff] %v1033
        %1062 = vst [vmem:[#allocation2 + $0xb0] sm:$0xff] %v1036
        %1063 = vst [vmem:[#allocation2 + $0xb8] sm:$0xff] %v1038
        loop: start=0, step=1, limit=2
        $region49: #{tpu_custom_call.1} parent=47 // loop_pre_header
          _
        $region50: #{tpu_custom_call.1} parent=47 // loop_header
          %s1065 = sphi 0, %s1069
          %p1066 = scmp.ge.s32.totalorder %s1065, 2
        $region51: #{tpu_custom_call.1} parent=47 // loop_header_branch
          %1068 = sbr.rel (%p1066) target = $region55
        $region52: #{tpu_custom_call.1} parent=47 // loop_body
          %s1070 = smul.u32 %s1065, 96
          %s1071 = smul.u32 %s1065, 32
          %s1072 = sadd.s32 %s1070, 32
          %s1073 = scalar_lea.vmem [#allocation2], %s1072
          %v1074 = vld [vmem:[%s1073] sm:$0xff]
          %v1075 = vld [vmem:[%s1073 + $0x8] sm:$0xff]
          %v1076 = vld [vmem:[%s1073 + $0x10] sm:$0xff]
          %v1077 = vld [vmem:[%s1073 + $0x18] sm:$0xff]
          %v1078 = vpack.c.bf16 %v1075, %v1074
          %v1079 = vpack.c.bf16 %v1077, %v1076
          %s1080 = sadd.s32 %s1070, 64
          %s1081 = scalar_lea.vmem [#allocation2], %s1080
          %v1082 = vld [vmem:[%s1081] sm:$0xff]
          %v1083 = vld [vmem:[%s1081 + $0x8] sm:$0xff]
          %v1084 = vld [vmem:[%s1081 + $0x10] sm:$0xff]
          %v1085 = vld [vmem:[%s1081 + $0x18] sm:$0xff]
          %v1086 = vpack.c.bf16 %v1083, %v1082
          %v1087 = vpack.c.bf16 %v1085, %v1084
          %s1088 = sadd.s32 0, %s1070
          %s1089 = scalar_lea.vmem [#allocation2], %s1088
          %v1090 = vld [vmem:[%s1089] sm:$0xff]
          %v1091 = vld [vmem:[%s1089 + $0x8] sm:$0xff]
          %v1092 = vld [vmem:[%s1089 + $0x10] sm:$0xff]
          %v1093 = vld [vmem:[%s1089 + $0x18] sm:$0xff]
          %v1094 = vpack.c.bf16 %v1091, %v1090
          %v1095 = vpack.c.bf16 %v1093, %v1092
          %1096 = vxpose.xlu0.c.b16.start [1/8] %v1094, 128
          %1097 = vxpose.xlu0.c.b16.cont [2/8] %v1095, 128
          %1098 = vxpose.xlu0.c.b16.cont [3/8] 0, 128
          %1099 = vxpose.xlu0.c.b16.cont [4/8] 0, 128
          %1100 = vxpose.xlu0.c.b16.cont [5/8] 0, 128
          %1101 = vxpose.xlu0.c.b16.cont [6/8] 0, 128
          %1102 = vxpose.xlu0.c.b16.cont [7/8] 0, 128
          %1103 = vxpose.xlu0.c.b16.end [8/8] 0, 128
          %v1104 = vpop.trf.xlu0
          %v1105 = vpop.trf.xlu0
          %v1106 = vpop.trf.xlu0
          %v1107 = vpop.trf.xlu0
          %v1108 = vpop.trf.xlu0
          %v1109 = vpop.trf.xlu0
          %v1110 = vpop.trf.xlu0
          %v1111 = vpop.trf.xlu0
          %v1113 = vsel %vm405, %v1104, 0
          %v1116 = vsel %vm405, %v1105, 0
          %v1119 = vsel %vm405, %v1106, 0
          %v1122 = vsel %vm405, %v1107, 0
          %v1125 = vsel %vm405, %v1108, 0
          %v1128 = vsel %vm405, %v1109, 0
          %v1131 = vsel %vm405, %v1110, 0
          %v1134 = vsel %vm405, %v1111, 0
          %1136 = vmatpush.bf16.msra.mxu0 0
          %1137 = vmatpush.bf16.msra.mxu0 0
          %1138 = vmatpush.bf16.msra.mxu0 0
          %1139 = vmatpush.bf16.msra.mxu0 0
          %1140 = vmatpush.bf16.msra.mxu0 0
          %1141 = vmatpush.bf16.msra.mxu0 0
          %1142 = vmatpush.bf16.msra.mxu0 %v1079
          %1143 = vmatpush.bf16.msra.mxu0 %v1078
          %1144 = vmatmul.bf16.gmra.mxu0 %v1113
          %v1145 = vpop.f32.mrf.mxu0
          %v1146 = vadd.f32 0.0, %v1145
          %v1147 = vpop.f32.mrf.mxu0
          %v1148 = vadd.f32 0.0, %v1147
          %1149 = vmatmul.bf16.gmra.mxu0 %v1116
          %v1150 = vpop.f32.mrf.mxu0
          %v1151 = vadd.f32 0.0, %v1150
          %v1152 = vpop.f32.mrf.mxu0
          %v1153 = vadd.f32 0.0, %v1152
          %1154 = vmatmul.bf16.gmra.mxu0 %v1119
          %v1155 = vpop.f32.mrf.mxu0
          %v1156 = vadd.f32 0.0, %v1155
          %v1157 = vpop.f32.mrf.mxu0
          %v1158 = vadd.f32 0.0, %v1157
          %1159 = vmatmul.bf16.gmra.mxu0 %v1122
          %v1160 = vpop.f32.mrf.mxu0
          %v1161 = vadd.f32 0.0, %v1160
          %v1162 = vpop.f32.mrf.mxu0
          %v1163 = vadd.f32 0.0, %v1162
          %1164 = vmatmul.bf16.gmra.mxu0 %v1125
          %v1165 = vpop.f32.mrf.mxu0
          %v1166 = vadd.f32 0.0, %v1165
          %v1167 = vpop.f32.mrf.mxu0
          %v1168 = vadd.f32 0.0, %v1167
          %1169 = vmatmul.bf16.gmra.mxu0 %v1128
          %v1170 = vpop.f32.mrf.mxu0
          %v1171 = vadd.f32 0.0, %v1170
          %v1172 = vpop.f32.mrf.mxu0
          %v1173 = vadd.f32 0.0, %v1172
          %1174 = vmatmul.bf16.gmra.mxu0 %v1131
          %v1175 = vpop.f32.mrf.mxu0
          %v1176 = vadd.f32 0.0, %v1175
          %v1177 = vpop.f32.mrf.mxu0
          %v1178 = vadd.f32 0.0, %v1177
          %1179 = vmatmul.bf16.gmra.mxu0 %v1134
          %v1180 = vpop.f32.mrf.mxu0
          %v1181 = vadd.f32 0.0, %v1180
          %v1182 = vpop.f32.mrf.mxu0
          %v1183 = vadd.f32 0.0, %v1182
          %1184 = vdwg.mxu0
          %1185 = vmax.xlane.f32.xlu0 %v1146
          %v1186 = vpop.xlane.xlu0 %1185
          %1187 = vmax.xlane.f32.xlu0 %v1148
          %v1188 = vpop.xlane.xlu0 %1187
          %1189 = vmax.xlane.f32.xlu0 %v1151
          %v1190 = vpop.xlane.xlu0 %1189
          %1191 = vmax.xlane.f32.xlu0 %v1153
          %v1192 = vpop.xlane.xlu0 %1191
          %1193 = vmax.xlane.f32.xlu0 %v1156
          %v1194 = vpop.xlane.xlu0 %1193
          %1195 = vmax.xlane.f32.xlu0 %v1158
          %v1196 = vpop.xlane.xlu0 %1195
          %1197 = vmax.xlane.f32.xlu0 %v1161
          %v1198 = vpop.xlane.xlu0 %1197
          %1199 = vmax.xlane.f32.xlu0 %v1163
          %v1200 = vpop.xlane.xlu0 %1199
          %1201 = vmax.xlane.f32.xlu0 %v1166
          %v1202 = vpop.xlane.xlu0 %1201
          %1203 = vmax.xlane.f32.xlu0 %v1168
          %v1204 = vpop.xlane.xlu0 %1203
          %1205 = vmax.xlane.f32.xlu0 %v1171
          %v1206 = vpop.xlane.xlu0 %1205
          %1207 = vmax.xlane.f32.xlu0 %v1173
          %v1208 = vpop.xlane.xlu0 %1207
          %1209 = vmax.xlane.f32.xlu0 %v1176
          %v1210 = vpop.xlane.xlu0 %1209
          %1211 = vmax.xlane.f32.xlu0 %v1178
          %v1212 = vpop.xlane.xlu0 %1211
          %1213 = vmax.xlane.f32.xlu0 %v1181
          %v1214 = vpop.xlane.xlu0 %1213
          %1215 = vmax.xlane.f32.xlu0 %v1183
          %v1216 = vpop.xlane.xlu0 %1215
          %v1217 = vsub.f32 %v1146, %v1186
          %v1218 = vsub.f32 %v1148, %v1188
          %v1219 = vsub.f32 %v1151, %v1190
          %v1220 = vsub.f32 %v1153, %v1192
          %v1221 = vsub.f32 %v1156, %v1194
          %v1222 = vsub.f32 %v1158, %v1196
          %v1223 = vsub.f32 %v1161, %v1198
          %v1224 = vsub.f32 %v1163, %v1200
          %v1225 = vsub.f32 %v1166, %v1202
          %v1226 = vsub.f32 %v1168, %v1204
          %v1227 = vsub.f32 %v1171, %v1206
          %v1228 = vsub.f32 %v1173, %v1208
          %v1229 = vsub.f32 %v1176, %v1210
          %v1230 = vsub.f32 %v1178, %v1212
          %v1231 = vsub.f32 %v1181, %v1214
          %v1232 = vsub.f32 %v1183, %v1216
          %v1233 = vmul.f32 %v1217, 1.442695
          %v1234 = vpow.pop %v1233
          %v1235 = vmul.f32 %v1218, 1.442695
          %v1236 = vpow.pop %v1235
          %v1237 = vmul.f32 %v1219, 1.442695
          %v1238 = vpow.pop %v1237
          %v1239 = vmul.f32 %v1220, 1.442695
          %v1240 = vpow.pop %v1239
          %v1241 = vmul.f32 %v1221, 1.442695
          %v1242 = vpow.pop %v1241
          %v1243 = vmul.f32 %v1222, 1.442695
          %v1244 = vpow.pop %v1243
          %v1245 = vmul.f32 %v1223, 1.442695
          %v1246 = vpow.pop %v1245
          %v1247 = vmul.f32 %v1224, 1.442695
          %v1248 = vpow.pop %v1247
          %v1249 = vmul.f32 %v1225, 1.442695
          %v1250 = vpow.pop %v1249
          %v1251 = vmul.f32 %v1226, 1.442695
          %v1252 = vpow.pop %v1251
          %v1253 = vmul.f32 %v1227, 1.442695
          %v1254 = vpow.pop %v1253
          %v1255 = vmul.f32 %v1228, 1.442695
          %v1256 = vpow.pop %v1255
          %v1257 = vmul.f32 %v1229, 1.442695
          %v1258 = vpow.pop %v1257
          %v1259 = vmul.f32 %v1230, 1.442695
          %v1260 = vpow.pop %v1259
          %v1261 = vmul.f32 %v1231, 1.442695
          %v1262 = vpow.pop %v1261
          %v1263 = vmul.f32 %v1232, 1.442695
          %v1264 = vpow.pop %v1263
          %1265 = vadd.xlane.f32.xlu0 %v1234
          %v1266 = vpop.xlane.xlu0 %1265
          %1267 = vadd.xlane.f32.xlu0 %v1236
          %v1268 = vpop.xlane.xlu0 %1267
          %1269 = vadd.xlane.f32.xlu0 %v1238
          %v1270 = vpop.xlane.xlu0 %1269
          %1271 = vadd.xlane.f32.xlu0 %v1240
          %v1272 = vpop.xlane.xlu0 %1271
          %1273 = vadd.xlane.f32.xlu0 %v1242
          %v1274 = vpop.xlane.xlu0 %1273
          %1275 = vadd.xlane.f32.xlu0 %v1244
          %v1276 = vpop.xlane.xlu0 %1275
          %1277 = vadd.xlane.f32.xlu0 %v1246
          %v1278 = vpop.xlane.xlu0 %1277
          %1279 = vadd.xlane.f32.xlu0 %v1248
          %v1280 = vpop.xlane.xlu0 %1279
          %1281 = vadd.xlane.f32.xlu0 %v1250
          %v1282 = vpop.xlane.xlu0 %1281
          %1283 = vadd.xlane.f32.xlu0 %v1252
          %v1284 = vpop.xlane.xlu0 %1283
          %1285 = vadd.xlane.f32.xlu0 %v1254
          %v1286 = vpop.xlane.xlu0 %1285
          %1287 = vadd.xlane.f32.xlu0 %v1256
          %v1288 = vpop.xlane.xlu0 %1287
          %1289 = vadd.xlane.f32.xlu0 %v1258
          %v1290 = vpop.xlane.xlu0 %1289
          %1291 = vadd.xlane.f32.xlu0 %v1260
          %v1292 = vpop.xlane.xlu0 %1291
          %1293 = vadd.xlane.f32.xlu0 %v1262
          %v1294 = vpop.xlane.xlu0 %1293
          %1295 = vadd.xlane.f32.xlu0 %v1264
          %v1296 = vpop.xlane.xlu0 %1295
          %v1297 = vrcp.pop %v1266
          %v1298 = vrcp.pop %v1268
          %v1299 = vrcp.pop %v1270
          %v1300 = vrcp.pop %v1272
          %v1301 = vrcp.pop %v1274
          %v1302 = vrcp.pop %v1276
          %v1303 = vrcp.pop %v1278
          %v1304 = vrcp.pop %v1280
          %v1305 = vrcp.pop %v1282
          %v1306 = vrcp.pop %v1284
          %v1307 = vrcp.pop %v1286
          %v1308 = vrcp.pop %v1288
          %v1309 = vrcp.pop %v1290
          %v1310 = vrcp.pop %v1292
          %v1311 = vrcp.pop %v1294
          %v1312 = vrcp.pop %v1296
          %v1313 = vmul.f32 %v1234, %v1297
          %v1314 = vmul.f32 %v1236, %v1298
          %v1315 = vmul.f32 %v1238, %v1299
          %v1316 = vmul.f32 %v1240, %v1300
          %v1317 = vmul.f32 %v1242, %v1301
          %v1318 = vmul.f32 %v1244, %v1302
          %v1319 = vmul.f32 %v1246, %v1303
          %v1320 = vmul.f32 %v1248, %v1304
          %v1321 = vmul.f32 %v1250, %v1305
          %v1322 = vmul.f32 %v1252, %v1306
          %v1323 = vmul.f32 %v1254, %v1307
          %v1324 = vmul.f32 %v1256, %v1308
          %v1325 = vmul.f32 %v1258, %v1309
          %v1326 = vmul.f32 %v1260, %v1310
          %v1327 = vmul.f32 %v1262, %v1311
          %v1328 = vmul.f32 %v1264, %v1312
          %v1329 = vpack.c.bf16 %v1314, %v1313
          %v1330 = vpack.c.bf16 %v1316, %v1315
          %v1331 = vpack.c.bf16 %v1318, %v1317
          %v1332 = vpack.c.bf16 %v1320, %v1319
          %v1333 = vpack.c.bf16 %v1322, %v1321
          %v1334 = vpack.c.bf16 %v1324, %v1323
          %v1335 = vpack.c.bf16 %v1326, %v1325
          %v1336 = vpack.c.bf16 %v1328, %v1327
          %1337 = vmatpush.bf16.xpose.msra.mxu0 %v1336
          %1338 = vmatpush.bf16.xpose.msra.mxu0 %v1335
          %1339 = vmatpush.bf16.xpose.msra.mxu0 %v1334
          %1340 = vmatpush.bf16.xpose.msra.mxu0 %v1333
          %1341 = vmatpush.bf16.xpose.msra.mxu0 %v1332
          %1342 = vmatpush.bf16.xpose.msra.mxu0 %v1331
          %1343 = vmatpush.bf16.xpose.msra.mxu0 %v1330
          %1344 = vmatpush.bf16.xpose.msra.mxu0 %v1329
          %1345 = vmatmul.bf16.gmra.mxu0 %v1086
          %v1346 = vpop.f32.mrf.mxu0
          %v1347 = vadd.f32 0.0, %v1346
          %v1348 = vpop.f32.mrf.mxu0
          %v1349 = vadd.f32 0.0, %v1348
          %1350 = vmatmul.bf16.gmra.mxu0 %v1087
          %v1351 = vpop.f32.mrf.mxu0
          %v1352 = vadd.f32 0.0, %v1351
          %v1353 = vpop.f32.mrf.mxu0
          %v1354 = vadd.f32 0.0, %v1353
          %1355 = vdwg.mxu0
          %s1356 = sadd.s32 0, %s1071
          %s1357 = scalar_lea.vmem [#allocation3], %s1356
          %1358 = vst [vmem:[%s1357] sm:$0xff] %v1347
          %1359 = vst [vmem:[%s1357 + $0x8] sm:$0xff] %v1349
          %1360 = vst [vmem:[%s1357 + $0x10] sm:$0xff] %v1352
          %1361 = vst [vmem:[%s1357 + $0x18] sm:$0xff] %v1354
        $region53: #{tpu_custom_call.1} parent=47 // loop_footer
          %s1069 = sadd.s32 1, %s1065
        $region54: #{tpu_custom_call.1} parent=47 // loop_footer_branch
          %1064 = sbr.rel target = $region50
        $region55: #{tpu_custom_call.1} parent=47 // loop_exit
          _
        %v1362 = vld [vmem:[%s5] sm:$0xf]
        %v1363 = vld [vmem:[%s5 + $0x4] sm:$0xf]
        %v1364 = vld [vmem:[%s5 + $0x8] sm:$0xf]
        %v1365 = vld [vmem:[%s5 + $0xc] sm:$0xf]
        %v1366 = vld [vmem:[%s5 + $0x10] sm:$0xf]
        %v1367 = vld [vmem:[%s5 + $0x14] sm:$0xf]
        %v1368 = vld [vmem:[%s5 + $0x18] sm:$0xf]
        %v1369 = vld [vmem:[%s5 + $0x1c] sm:$0xf]
        %v1370 = vld [vmem:[#allocation3] sm:$0xff]
        %v1371 = vld [vmem:[#allocation3 + $0x8] sm:$0xff]
        %v1372 = vld [vmem:[#allocation3 + $0x10] sm:$0xff]
        %v1373 = vld [vmem:[#allocation3 + $0x18] sm:$0xff]
        %v1374 = vld [vmem:[#allocation3 + $0x20] sm:$0xff]
        %v1375 = vld [vmem:[#allocation3 + $0x28] sm:$0xff]
        %v1376 = vld [vmem:[#allocation3 + $0x30] sm:$0xff]
        %v1377 = vld [vmem:[#allocation3 + $0x38] sm:$0xff]
        %v1378 = vpack.c.bf16 %v1371, %v1370
        %v1379 = vpack.c.bf16 %v1373, %v1372
        %v1380 = vpack.c.bf16 %v1375, %v1374
        %v1381 = vpack.c.bf16 %v1377, %v1376
        %v1390 = vunpack.c.l.b16 %v1362
        %v1391 = vunpack.c.l.b16 %v1363
        %v1392 = vunpack.c.l.b16 %v1364
        %v1393 = vunpack.c.l.b16 %v1365
        %v1394 = vunpack.c.l.b16 %v1366
        %v1395 = vunpack.c.l.b16 %v1367
        %v1396 = vunpack.c.l.b16 %v1368
        %v1397 = vunpack.c.l.b16 %v1369
        %v1398 = vpack.c.b16 %v1391, %v1390
        %v1399 = vpack.c.b16 %v1393, %v1392
        %v1400 = vpack.c.b16 %v1395, %v1394
        %v1401 = vpack.c.b16 %v1397, %v1396
        %v1403 = vsel %vm355, %v1398, 0
        %v1406 = vsel %vm355, %v1399, 0
        %v1409 = vsel %vm355, %v1400, 0
        %v1412 = vsel %vm355, %v1401, 0
        %1414 = vmatpush.bf16.msra.mxu0 0
        %1415 = vmatpush.bf16.msra.mxu0 0
        %1416 = vmatpush.bf16.msra.mxu0 0
        %1417 = vmatpush.bf16.msra.mxu0 0
        %1418 = vmatpush.bf16.msra.mxu0 %v1381
        %1419 = vmatpush.bf16.msra.mxu0 %v1380
        %1420 = vmatpush.bf16.msra.mxu0 %v1379
        %1421 = vmatpush.bf16.msra.mxu0 %v1378
        %1422 = vmatmul.bf16.gmra.mxu0 %v1403
        %v1423 = vpop.f32.mrf.mxu0
        %v1424 = vadd.f32 0.0, %v1423
        %v1425 = vpop.f32.mrf.mxu0
        %v1426 = vadd.f32 0.0, %v1425
        %1427 = vmatmul.bf16.gmra.mxu0 %v1406
        %v1428 = vpop.f32.mrf.mxu0
        %v1429 = vadd.f32 0.0, %v1428
        %v1430 = vpop.f32.mrf.mxu0
        %v1431 = vadd.f32 0.0, %v1430
        %1432 = vmatmul.bf16.gmra.mxu0 %v1409
        %v1433 = vpop.f32.mrf.mxu0
        %v1434 = vadd.f32 0.0, %v1433
        %v1435 = vpop.f32.mrf.mxu0
        %v1436 = vadd.f32 0.0, %v1435
        %1437 = vmatmul.bf16.gmra.mxu0 %v1412
        %v1438 = vpop.f32.mrf.mxu0
        %v1439 = vadd.f32 0.0, %v1438
        %v1440 = vpop.f32.mrf.mxu0
        %v1441 = vadd.f32 0.0, %v1440
        %1442 = vdwg.mxu0
        %v1443 = vld [vmem:[%s276] sm:$0xff]
        %v1444 = vld [vmem:[%s276 + $0x8] sm:$0xff]
        %v1445 = vld [vmem:[%s276 + $0x10] sm:$0xff]
        %v1446 = vld [vmem:[%s276 + $0x18] sm:$0xff]
        %v1447 = vld [vmem:[%s276 + $0x20] sm:$0xff]
        %v1448 = vld [vmem:[%s276 + $0x28] sm:$0xff]
        %v1449 = vld [vmem:[%s276 + $0x30] sm:$0xff]
        %v1450 = vld [vmem:[%s276 + $0x38] sm:$0xff]
        %v1451 = vadd.f32 %v1443, %v1424
        %v1452 = vadd.f32 %v1444, %v1426
        %v1453 = vadd.f32 %v1445, %v1429
        %v1454 = vadd.f32 %v1446, %v1431
        %v1455 = vadd.f32 %v1447, %v1434
        %v1456 = vadd.f32 %v1448, %v1436
        %v1457 = vadd.f32 %v1449, %v1439
        %v1458 = vadd.f32 %v1450, %v1441
        %v1459 = vld [vmem:[%s6] sm:$0xff]
        %v1460 = vld [vmem:[%s6 + $0x8] sm:$0xff]
        %v1461 = vld [vmem:[%s6 + $0x10] sm:$0xff]
        %v1462 = vld [vmem:[%s6 + $0x18] sm:$0xff]
        %v1463 = vld [vmem:[%s6 + $0x20] sm:$0xff]
        %v1464 = vld [vmem:[%s6 + $0x28] sm:$0xff]
        %v1465 = vld [vmem:[%s6 + $0x30] sm:$0xff]
        %v1466 = vld [vmem:[%s6 + $0x38] sm:$0xff]
        %1468 = vset.pattern.permute.xlu0 0
        %1469 = vperm.xlu0 %1468, %v1459
        %v1470 = vpop.permute.xlu0 %1469
        %1473 = vset.pattern.permute.xlu0 0
        %1474 = vperm.xlu0 %1473, %v1460
        %v1475 = vpop.permute.xlu0 %1474
        %1478 = vset.pattern.permute.xlu0 0
        %1479 = vperm.xlu0 %1478, %v1461
        %v1480 = vpop.permute.xlu0 %1479
        %1483 = vset.pattern.permute.xlu0 0
        %1484 = vperm.xlu0 %1483, %v1462
        %v1485 = vpop.permute.xlu0 %1484
        %1488 = vset.pattern.permute.xlu0 0
        %1489 = vperm.xlu0 %1488, %v1463
        %v1490 = vpop.permute.xlu0 %1489
        %1493 = vset.pattern.permute.xlu0 0
        %1494 = vperm.xlu0 %1493, %v1464
        %v1495 = vpop.permute.xlu0 %1494
        %1498 = vset.pattern.permute.xlu0 0
        %1499 = vperm.xlu0 %1498, %v1465
        %v1500 = vpop.permute.xlu0 %1499
        %1503 = vset.pattern.permute.xlu0 0
        %1504 = vperm.xlu0 %1503, %v1466
        %v1505 = vpop.permute.xlu0 %1504
        %v1507 = vadd.f32 %v1451, %v1470
        %v1508 = vadd.f32 %v1452, %v1475
        %v1509 = vadd.f32 %v1453, %v1480
        %v1510 = vadd.f32 %v1454, %v1485
        %v1511 = vadd.f32 %v1455, %v1490
        %v1512 = vadd.f32 %v1456, %v1495
        %v1513 = vadd.f32 %v1457, %v1500
        %v1514 = vadd.f32 %v1458, %v1505
        %1515 = vst [vmem:[%s271] sm:$0xff] %v1507
        %1516 = vst [vmem:[%s271 + $0x8] sm:$0xff] %v1508
        %1517 = vst [vmem:[%s271 + $0x10] sm:$0xff] %v1509
        %1518 = vst [vmem:[%s271 + $0x18] sm:$0xff] %v1510
        %1519 = vst [vmem:[%s271 + $0x20] sm:$0xff] %v1511
        %1520 = vst [vmem:[%s271 + $0x28] sm:$0xff] %v1512
        %1521 = vst [vmem:[%s271 + $0x30] sm:$0xff] %v1513
        %1522 = vst [vmem:[%s271 + $0x38] sm:$0xff] %v1514
        %s1523 = sand.u32 %s181, 1
        %s1524 = scalar_lea.sflag [#allocation5], %s1523
        %s1525 = sand.u32 %s181, 1
        %s1526 = smul.addr %s1525, 64
        %s1527 = scalar_lea.vmem [#allocation4], %s1526
        // Predicated region
        $region56: #{tpu_custom_call.1} parent=47 // pred_check
          %p1528 = pneg %p191
        $region57: #{tpu_custom_call.1} parent=47 // pred_check_branch
          %1530 = sbr.rel (%p1528) target = $region59
        $region58: #{tpu_custom_call.1} parent=47 // pred_region
          %1532 = vsyncadd %s1524, 0
          %s1533 = smul.addr %s21, 8
          %s1534 = smul.addr %s1533, 8
          %s1535 = scalar_lea.hbm %s7, %s1534
          %s1536 = sshll.u32 %s1527, 4
          %s1537 = int_to_ptr.vmem [resolvable:$true] %s1536
          %s1538 = sshll.u32 %s1535, 4
          %s1539 = int_to_ptr.hbm [resolvable:$true] %s1538
          %1544 = dma.vmem_to_hbm [thread:$0]  %s1537, 1024, %s1539, %s1524, 128, 128, 8
        $region59: #{tpu_custom_call.1} parent=47 // pred_fallthru
          _
      $region48: #{tpu_custom_call.1} parent=5 // pred_fallthru
        _
      %p1545 = scmp.le.s32.totalorder 2, %s16
      // Predicated region
      $region60: #{tpu_custom_call.1} parent=5 // pred_check
        %p1546 = pneg %p1545
      $region61: #{tpu_custom_call.1} parent=5 // pred_check_branch
        %1548 = sbr.rel (%p1546) target = $region63
      $region62: #{tpu_custom_call.1} parent=5 // pred_region
        %s1549 = ssub.s32 %s16, 2
        // Predicated region
        $region64: #{tpu_custom_call.1} parent=62 // pred_check
          %p1550 = pneg %p197
        $region65: #{tpu_custom_call.1} parent=62 // pred_check_branch
          %1552 = sbr.rel (%p1550) target = $region67
        $region66: #{tpu_custom_call.1} parent=62 // pred_region
          %s1553 = sand.u32 %s182, 1
          %s1554 = scalar_lea.sflag [#allocation5], %s1553
          %s1555 = sand.u32 %s182, 1
          %s1556 = smul.addr %s1555, 64
          %s1557 = scalar_lea.vmem [#allocation4], %s1556
          %1559 = dma.done %s1554, 1024
        $region67: #{tpu_custom_call.1} parent=62 // pred_fallthru
          _
      $region63: #{tpu_custom_call.1} parent=5 // pred_fallthru
        _
    $region6: #{tpu_custom_call.1} parent=1 // loop_footer
      %s20 = sadd.s32 1, %s16
    $region7: #{tpu_custom_call.1} parent=1 // loop_footer_branch
      %15 = sbr.rel target = $region3
    $region8: #{tpu_custom_call.1} parent=1 // loop_exit
      _
    %1560 = vsyncpa [#allocation5], 1
    %s1561 = scalar_lea.sflag [#allocation5], 1
    %1562 = vsyncpa %s1561, 1

// kernel: tpu_custom_call.1
$region0: #{tpu_custom_call.1}
  #allocation0 [shape = 'u32[]', space=smem, size = 0x4, offset = 0x4, fixed_abs, tag = 'smem constant byte address 0x4 - core index']
  #allocation1 [shape = 'u32[72,128]{1,0:T(1,128)}', space=vmem, size = 0x9000, scoped, tag = 'internal scratch']
  #allocation2 [shape = 'f32[192,128]{1,0:T(8,128)}', space=vmem, size = 0x18000, scoped, tag = 'scratch operand']
  #allocation3 [shape = 'f32[64,128]{1,0:T(8,128)}', space=vmem, size = 0x8000, scoped, tag = 'scratch operand']
  %s0 = inlined_call_operand.vmem [shape: f32[2,64,128], index: 0, kind: input, shape index: {}]
  %s1 = inlined_call_operand.vmem [shape: f32[32,64], index: 1, kind: input, shape index: {}]
  %s2 = inlined_call_operand.vmem [shape: f32[64,32], index: 2, kind: input, shape index: {}]
  %s3 = inlined_call_operand.vmem [shape: bf16[192,64], index: 3, kind: input, shape index: {}]
  %s4 = inlined_call_operand.vmem [shape: f32[192,1], index: 4, kind: input, shape index: {}]
  %s5 = inlined_call_operand.vmem [shape: bf16[64,64], index: 5, kind: input, shape index: {}]
  %s6 = inlined_call_operand.vmem [shape: f32[64,1], index: 6, kind: input, shape index: {}]
  %s7 = inlined_call_operand.hbm [shape: f32[2,64,128], index: 7, kind: output, shape index: {}]
  %s8 = sld [smem:[#allocation0]]
  $region68: #{tpu_custom_call.1} parent=0
    _
  %s10 = ssub.s32 1, %s8
  %s11 = scalar_select 0, %s10, %s8
  $region1: #{tpu_custom_call.1} parent=0
    #allocation4 [shape = 'u8[65536]{0}', space=vmem, size = 0x10000, scoped, tag = 'output window, operand 0']
    #allocation5 [shape = 's32[2]{0}', space=sflag, size = 0x8, scoped, tag = 'scoped memory for tpu_custom_call.1']
    %12 = vsyncpa [#allocation5], 0
    %s13 = scalar_lea.sflag [#allocation5], 1
    %14 = vsyncpa %s13, 0
    loop: start=0, step=1, limit=4
    $region2: #{tpu_custom_call.1} parent=1 // loop_pre_header
      _
    $region3: #{tpu_custom_call.1} parent=1 // loop_header
      %s16 = sphi 0, %s20
      %p17 = scmp.ge.s32.totalorder %s16, 4
      %s26 = sphi 0, %s28
      %s29 = sphi 0, %s26
      %s30 = sphi 0, %s29
      %s46 = sphi 0, %s30
      %s50 = sphi 0, %s50
      %s52 = sphi 0, %s50
      %s53 = sphi 0, %s52
      %s67 = sphi 0, %s53
      %s71 = sphi 0, %s71
      %s73 = sphi 0, %s71
      %s74 = sphi 0, %s73
      %s88 = sphi 0, %s74
      %s92 = sphi 0, %s92
      %s94 = sphi 0, %s92
      %s95 = sphi 0, %s94
      %s109 = sphi 0, %s95
      %s113 = sphi 0, %s113
      %s115 = sphi 0, %s113
      %s116 = sphi 0, %s115
      %s130 = sphi 0, %s116
      %s134 = sphi 0, %s134
      %s136 = sphi 0, %s134
      %s137 = sphi 0, %s136
      %s151 = sphi 0, %s137
      %s155 = sphi 0, %s155
      %s157 = sphi 0, %s155
      %s158 = sphi 0, %s157
      %s172 = sphi 0, %s158
      %s178 = sphi 0, %s180
      %s181 = sphi 0, %s178
      %s182 = sphi 0, %s181
      %s198 = sphi 0, %s182
    $region4: #{tpu_custom_call.1} parent=1 // loop_header_branch
      %19 = sbr.rel (%p17) target = $region8
    $region5: #{tpu_custom_call.1} parent=1 // loop_body
      %s21 = ssub.s32 %s16, 1
      %s22 = ssub.s32 %s16, 2
      %s23 = sadd.s32 %s16, 1
      %s24 = ssub.s32 %s16, %s23
      %p25 = scmp.eq.s32.totalorder %s24, 0
      %s27 = sadd.s32 %s26, 1
      %s28 = scalar_select %p25, %s26, %s27
      %p31 = pneg %p25
      %p32 = scmp.eq.s32.totalorder %s16, 1
      %p33 = por %p31, %p32
      %p34 = scmp.ne.s32.totalorder %s26, %s29
      %p35 = scmp.eq.s32.totalorder %s16, 0
      %p36 = por %p34, %p35
      %p37 = scmp.ne.s32.totalorder %s26, %s29
      %p38 = scmp.eq.s32.totalorder %s21, 1
      %p39 = por %p37, %p38
      %p40 = scmp.ne.s32.totalorder %s29, %s30
      %p41 = scmp.eq.s32.totalorder %s21, 0
      %p42 = por %p40, %p41
      %p43 = scmp.ne.s32.totalorder %s29, %s30
      %p44 = scmp.eq.s32.totalorder %s22, 1
      %p45 = por %p43, %p44
      %p47 = scmp.ne.s32.totalorder %s30, %s46
      %p48 = scmp.eq.s32.totalorder %s22, 0
      %p49 = por %p47, %p48
      %s51 = sadd.s32 %s50, 1
      %p54 = scmp.eq.s32.totalorder %s16, 1
      %p55 = scmp.ne.s32.totalorder %s50, %s52
      %p56 = scmp.eq.s32.totalorder %s16, 0
      %p57 = por %p55, %p56
      %p58 = scmp.ne.s32.totalorder %s50, %s52
      %p59 = scmp.eq.s32.totalorder %s21, 1
      %p60 = por %p58, %p59
      %p61 = scmp.ne.s32.totalorder %s52, %s53
      %p62 = scmp.eq.s32.totalorder %s21, 0
      %p63 = por %p61, %p62
      %p64 = scmp.ne.s32.totalorder %s52, %s53
      %p65 = scmp.eq.s32.totalorder %s22, 1
      %p66 = por %p64, %p65
      %p68 = scmp.ne.s32.totalorder %s53, %s67
      %p69 = scmp.eq.s32.totalorder %s22, 0
      %p70 = por %p68, %p69
      %s72 = sadd.s32 %s71, 1
      %p75 = scmp.eq.s32.totalorder %s16, 1
      %p76 = scmp.ne.s32.totalorder %s71, %s73
      %p77 = scmp.eq.s32.totalorder %s16, 0
      %p78 = por %p76, %p77
      %p79 = scmp.ne.s32.totalorder %s71, %s73
      %p80 = scmp.eq.s32.totalorder %s21, 1
      %p81 = por %p79, %p80
      %p82 = scmp.ne.s32.totalorder %s73, %s74
      %p83 = scmp.eq.s32.totalorder %s21, 0
      %p84 = por %p82, %p83
      %p85 = scmp.ne.s32.totalorder %s73, %s74
      %p86 = scmp.eq.s32.totalorder %s22, 1
      %p87 = por %p85, %p86
      %p89 = scmp.ne.s32.totalorder %s74, %s88
      %p90 = scmp.eq.s32.totalorder %s22, 0
      %p91 = por %p89, %p90
      %s93 = sadd.s32 %s92, 1
      %p96 = scmp.eq.s32.totalorder %s16, 1
      %p97 = scmp.ne.s32.totalorder %s92, %s94
      %p98 = scmp.eq.s32.totalorder %s16, 0
      %p99 = por %p97, %p98
      %p100 = scmp.ne.s32.totalorder %s92, %s94
      %p101 = scmp.eq.s32.totalorder %s21, 1
      %p102 = por %p100, %p101
      %p103 = scmp.ne.s32.totalorder %s94, %s95
      %p104 = scmp.eq.s32.totalorder %s21, 0
      %p105 = por %p103, %p104
      %p106 = scmp.ne.s32.totalorder %s94, %s95
      %p107 = scmp.eq.s32.totalorder %s22, 1
      %p108 = por %p106, %p107
      %p110 = scmp.ne.s32.totalorder %s95, %s109
      %p111 = scmp.eq.s32.totalorder %s22, 0
      %p112 = por %p110, %p111
      %s114 = sadd.s32 %s113, 1
      %p117 = scmp.eq.s32.totalorder %s16, 1
      %p118 = scmp.ne.s32.totalorder %s113, %s115
      %p119 = scmp.eq.s32.totalorder %s16, 0
      %p120 = por %p118, %p119
      %p121 = scmp.ne.s32.totalorder %s113, %s115
      %p122 = scmp.eq.s32.totalorder %s21, 1
      %p123 = por %p121, %p122
      %p124 = scmp.ne.s32.totalorder %s115, %s116
      %p125 = scmp.eq.s32.totalorder %s21, 0
      %p126 = por %p124, %p125
      %p127 = scmp.ne.s32.totalorder %s115, %s116
      %p128 = scmp.eq.s32.totalorder %s22, 1
      %p129 = por %p127, %p128
      %p131 = scmp.ne.s32.totalorder %s116, %s130
      %p132 = scmp.eq.s32.totalorder %s22, 0
      %p133 = por %p131, %p132
      %s135 = sadd.s32 %s134, 1
      %p138 = scmp.eq.s32.totalorder %s16, 1
      %p139 = scmp.ne.s32.totalorder %s134, %s136
      %p140 = scmp.eq.s32.totalorder %s16, 0
      %p141 = por %p139, %p140
      %p142 = scmp.ne.s32.totalorder %s134, %s136
      %p143 = scmp.eq.s32.totalorder %s21, 1
      %p144 = por %p142, %p143
      %p145 = scmp.ne.s32.totalorder %s136, %s137
      %p146 = scmp.eq.s32.totalorder %s21, 0
      %p147 = por %p145, %p146
      %p148 = scmp.ne.s32.totalorder %s136, %s137
      %p149 = scmp.eq.s32.totalorder %s22, 1
      %p150 = por %p148, %p149
      %p152 = scmp.ne.s32.totalorder %s137, %s151
      %p153 = scmp.eq.s32.totalorder %s22, 0
      %p154 = por %p152, %p153
      %s156 = sadd.s32 %s155, 1
      %p159 = scmp.eq.s32.totalorder %s16, 1
      %p160 = scmp.ne.s32.totalorder %s155, %s157
      %p161 = scmp.eq.s32.totalorder %s16, 0
      %p162 = por %p160, %p161
      %p163 = scmp.ne.s32.totalorder %s155, %s157
      %p164 = scmp.eq.s32.totalorder %s21, 1
      %p165 = por %p163, %p164
      %p166 = scmp.ne.s32.totalorder %s157, %s158
      %p167 = scmp.eq.s32.totalorder %s21, 0
      %p168 = por %p166, %p167
      %p169 = scmp.ne.s32.totalorder %s157, %s158
      %p170 = scmp.eq.s32.totalorder %s22, 1
      %p171 = por %p169, %p170
      %p173 = scmp.ne.s32.totalorder %s158, %s172
      %p174 = scmp.eq.s32.totalorder %s22, 0
      %p175 = por %p173, %p174
      %s176 = ssub.s32 %s16, %s23
      %p177 = scmp.eq.s32.totalorder %s176, 0
      %s179 = sadd.s32 %s178, 1
      %s180 = scalar_select %p177, %s178, %s179
      %p183 = pneg %p177
      %p184 = scmp.eq.s32.totalorder %s16, 1
      %p185 = por %p183, %p184
      %p186 = scmp.ne.s32.totalorder %s178, %s181
      %p187 = scmp.eq.s32.totalorder %s16, 0
      %p188 = por %p186, %p187
      %p189 = scmp.ne.s32.totalorder %s178, %s181
      %p190 = scmp.eq.s32.totalorder %s21, 1
      %p191 = por %p189, %p190
      %p192 = scmp.ne.s32.totalorder %s181, %s182
      %p193 = scmp.eq.s32.totalorder %s21, 0
      %p194 = por %p192, %p193
      %p195 = scmp.ne.s32.totalorder %s181, %s182
      %p196 = scmp.eq.s32.totalorder %s22, 1
      %p197 = por %p195, %p196
      %p199 = scmp.ne.s32.totalorder %s182, %s198
      %p200 = scmp.eq.s32.totalorder %s22, 0
      %p201 = por %p199, %p200
      %p202 = scmp.le.s32.totalorder 1, %s16
      %p203 = scmp.lt.s32.totalorder %s16, 3
      %p204 = pnand %p202, %p203
      %p205 = pneg %p204
      // Predicated region
      $region9: #{tpu_custom_call.1} parent=5 // pred_check
        _
      $region10: #{tpu_custom_call.1} parent=5 // pred_check_branch
        %207 = sbr.rel (%p204) target = $region12
      $region11: #{tpu_custom_call.1} parent=5 // pred_region
        %s208 = ssub.s32 %s16, 1
        // Predicated region
        $region13: #{tpu_custom_call.1} parent=11 // pred_check
          %p209 = pneg %p63
        $region14: #{tpu_custom_call.1} parent=11 // pred_check_branch
          %211 = sbr.rel (%p209) target = $region16
        $region15: #{tpu_custom_call.1} parent=11 // pred_region
          _
        $region16: #{tpu_custom_call.1} parent=11 // pred_fallthru
          _
        // Predicated region
        $region17: #{tpu_custom_call.1} parent=11 // pred_check
          %p212 = pneg %p84
        $region18: #{tpu_custom_call.1} parent=11 // pred_check_branch
          %214 = sbr.rel (%p212) target = $region20
        $region19: #{tpu_custom_call.1} parent=11 // pred_region
          _
        $region20: #{tpu_custom_call.1} parent=11 // pred_fallthru
          _
        // Predicated region
        $region21: #{tpu_custom_call.1} parent=11 // pred_check
          %p215 = pneg %p105
        $region22: #{tpu_custom_call.1} parent=11 // pred_check_branch
          %217 = sbr.rel (%p215) target = $region24
        $region23: #{tpu_custom_call.1} parent=11 // pred_region
          _
        $region24: #{tpu_custom_call.1} parent=11 // pred_fallthru
          _
        // Predicated region
        $region25: #{tpu_custom_call.1} parent=11 // pred_check
          %p218 = pneg %p126
        $region26: #{tpu_custom_call.1} parent=11 // pred_check_branch
          %220 = sbr.rel (%p218) target = $region28
        $region27: #{tpu_custom_call.1} parent=11 // pred_region
          _
        $region28: #{tpu_custom_call.1} parent=11 // pred_fallthru
          _
        // Predicated region
        $region29: #{tpu_custom_call.1} parent=11 // pred_check
          %p221 = pneg %p147
        $region30: #{tpu_custom_call.1} parent=11 // pred_check_branch
          %223 = sbr.rel (%p221) target = $region32
        $region31: #{tpu_custom_call.1} parent=11 // pred_region
          _
        $region32: #{tpu_custom_call.1} parent=11 // pred_fallthru
          _
        // Predicated region
        $region33: #{tpu_custom_call.1} parent=11 // pred_check
          %p224 = pneg %p168
        $region34: #{tpu_custom_call.1} parent=11 // pred_check_branch
          %226 = sbr.rel (%p224) target = $region36
        $region35: #{tpu_custom_call.1} parent=11 // pred_region
          _
        $region36: #{tpu_custom_call.1} parent=11 // pred_fallthru
          _
      $region12: #{tpu_custom_call.1} parent=5 // pred_fallthru
        _
      %p227 = scmp.lt.s32.totalorder %s16, 2
      // Predicated region
      $region37: #{tpu_custom_call.1} parent=5 // pred_check
        %p228 = pneg %p227
      $region38: #{tpu_custom_call.1} parent=5 // pred_check_branch
        %230 = sbr.rel (%p228) target = $region40
      $region39: #{tpu_custom_call.1} parent=5 // pred_region
        // Predicated region
        $region41: #{tpu_custom_call.1} parent=39 // pred_check
          %p231 = pneg %p36
        $region42: #{tpu_custom_call.1} parent=39 // pred_check_branch
          %233 = sbr.rel (%p231) target = $region44
        $region43: #{tpu_custom_call.1} parent=39 // pred_region
          %p234 = scmp.lt.s32.totalorder %s16, 1
          %s235 = scalar_select %p234, %s16, 1
          %s236 = smul.addr %s235, 8
          %s237 = smul.addr %s236, 8
          %s238 = scalar_lea.vmem %s0, %s237
        $region44: #{tpu_custom_call.1} parent=39 // pred_fallthru
          _
      $region40: #{tpu_custom_call.1} parent=5 // pred_fallthru
        _
      %p239 = scmp.le.s32.totalorder 1, %s16
      %p240 = scmp.lt.s32.totalorder %s16, 3
      %p241 = pnand %p239, %p240
      %p242 = pneg %p241
      // Predicated region
      $region45: #{tpu_custom_call.1} parent=5 // pred_check
        _
      $region46: #{tpu_custom_call.1} parent=5 // pred_check_branch
        %244 = sbr.rel (%p241) target = $region48
      $region47: #{tpu_custom_call.1} parent=5 // pred_region
        %s245 = ssub.s32 %s16, 1
        %p246 = scmp.lt.s32.totalorder %s21, 1
        %s247 = scalar_select %p246, %s21, 1
        %s248 = smul.addr %s247, 8
        %s249 = smul.addr %s248, 8
        %s250 = scalar_lea.vmem %s0, %s249
        %p251 = pneg %p42
        %p252 = pneg %p39
        %p253 = pneg %p63
        %p254 = pneg %p60
        %p255 = pneg %p84
        %p256 = pneg %p81
        %p257 = pneg %p105
        %p258 = pneg %p102
        %p259 = pneg %p126
        %p260 = pneg %p123
        %p261 = pneg %p147
        %p262 = pneg %p144
        %p263 = pneg %p168
        %p264 = pneg %p165
        %p265 = pneg %p194
        %p266 = pneg %p191
        %s267 = sand.u32 %s181, 1
        %s268 = scalar_lea.sflag [#allocation5], %s267
        %s269 = sand.u32 %s181, 1
        %s270 = smul.addr %s269, 64
        %s271 = scalar_lea.vmem [#allocation4], %s270
        %p272 = scmp.lt.s32.totalorder %s21, 1
        %s273 = scalar_select %p272, %s21, 1
        %s274 = smul.addr %s273, 8
        %s275 = smul.addr %s274, 8
        %s276 = scalar_lea.vmem %s0, %s275
        %v278 = vld [vmem:[%s276] sm:$0xff]
        %v279 = vld [vmem:[%s276 + $0x8] sm:$0xff]
        %v280 = vld [vmem:[%s276 + $0x10] sm:$0xff]
        %v281 = vld [vmem:[%s276 + $0x18] sm:$0xff]
        %v282 = vld [vmem:[%s276 + $0x20] sm:$0xff]
        %v283 = vld [vmem:[%s276 + $0x28] sm:$0xff]
        %v284 = vld [vmem:[%s276 + $0x30] sm:$0xff]
        %v285 = vld [vmem:[%s276 + $0x38] sm:$0xff]
        %286 = vadd.xlane.f32.xlu0 %v278
        %v287 = vpop.xlane.xlu0 %286
        %288 = vadd.xlane.f32.xlu0 %v279
        %v289 = vpop.xlane.xlu0 %288
        %290 = vadd.xlane.f32.xlu0 %v280
        %v291 = vpop.xlane.xlu0 %290
        %292 = vadd.xlane.f32.xlu0 %v281
        %v293 = vpop.xlane.xlu0 %292
        %294 = vadd.xlane.f32.xlu0 %v282
        %v295 = vpop.xlane.xlu0 %294
        %296 = vadd.xlane.f32.xlu0 %v283
        %v297 = vpop.xlane.xlu0 %296
        %298 = vadd.xlane.f32.xlu0 %v284
        %v299 = vpop.xlane.xlu0 %298
        %300 = vadd.xlane.f32.xlu0 %v285
        %v301 = vpop.xlane.xlu0 %300
        %v302 = vmul.f32 %v287, 0.0078125
        %v303 = vmul.f32 %v289, 0.0078125
        %v304 = vmul.f32 %v291, 0.0078125
        %v305 = vmul.f32 %v293, 0.0078125
        %v306 = vmul.f32 %v295, 0.0078125
        %v307 = vmul.f32 %v297, 0.0078125
        %v308 = vmul.f32 %v299, 0.0078125
        %v309 = vmul.f32 %v301, 0.0078125
        %v310 = vmul.f32 %v278, %v278
        %v311 = vmul.f32 %v279, %v279
        %v312 = vmul.f32 %v280, %v280
        %v313 = vmul.f32 %v281, %v281
        %v314 = vmul.f32 %v282, %v282
        %v315 = vmul.f32 %v283, %v283
        %v316 = vmul.f32 %v284, %v284
        %v317 = vmul.f32 %v285, %v285
        %318 = vadd.xlane.f32.xlu0 %v310
        %v319 = vpop.xlane.xlu0 %318
        %320 = vadd.xlane.f32.xlu0 %v311
        %v321 = vpop.xlane.xlu0 %320
        %322 = vadd.xlane.f32.xlu0 %v312
        %v323 = vpop.xlane.xlu0 %322
        %324 = vadd.xlane.f32.xlu0 %v313
        %v325 = vpop.xlane.xlu0 %324
        %326 = vadd.xlane.f32.xlu0 %v314
        %v327 = vpop.xlane.xlu0 %326
        %328 = vadd.xlane.f32.xlu0 %v315
        %v329 = vpop.xlane.xlu0 %328
        %330 = vadd.xlane.f32.xlu0 %v316
        %v331 = vpop.xlane.xlu0 %330
        %332 = vadd.xlane.f32.xlu0 %v317
        %v333 = vpop.xlane.xlu0 %332
        %v334 = vmul.f32 %v319, 0.0078125
        %v335 = vmul.f32 %v321, 0.0078125
        %v336 = vmul.f32 %v323, 0.0078125
        %v337 = vmul.f32 %v325, 0.0078125
        %v338 = vmul.f32 %v327, 0.0078125
        %v339 = vmul.f32 %v329, 0.0078125
        %v340 = vmul.f32 %v331, 0.0078125
        %v341 = vmul.f32 %v333, 0.0078125
        %vm342 = vcmask 7168
        %v343 = vsel %vm342, %v302, %v334
        %v344 = vsel %vm342, %v303, %v335
        %v345 = vsel %vm342, %v304, %v336
        %v346 = vsel %vm342, %v305, %v337
        %v347 = vsel %vm342, %v306, %v338
        %v348 = vsel %vm342, %v307, %v339
        %v349 = vsel %vm342, %v308, %v340
        %v350 = vsel %vm342, %v309, %v341
        %v351 = vld [vmem:[%s1] sm:$0xff]
        %v352 = vld [vmem:[%s1 + $0x8] sm:$0xff]
        %v353 = vld [vmem:[%s1 + $0x10] sm:$0xff]
        %v354 = vld [vmem:[%s1 + $0x18] sm:$0xff]
        %vm355 = vcmask 523264
        %v357 = vsel %vm355, %v351, 0
        %v360 = vsel %vm355, %v352, 0
        %v363 = vsel %vm355, %v353, 0
        %v366 = vsel %vm355, %v354, 0
        %368 = vmatpush.msra.mxu0 0.0
        %369 = vmatpush.msra.mxu0 0.0
        %370 = vmatpush.msra.mxu0 0.0
        %371 = vmatpush.msra.mxu0 0.0
        %372 = vmatpush.msra.mxu0 0.0
        %373 = vmatpush.msra.mxu0 0.0
        %374 = vmatpush.msra.mxu0 0.0
        %375 = vmatpush.msra.mxu0 0.0
        %376 = vmatpush.msra.mxu0 %v350
        %377 = vmatpush.msra.mxu0 %v349
        %378 = vmatpush.msra.mxu0 %v348
        %379 = vmatpush.msra.mxu0 %v347
        %380 = vmatpush.msra.mxu0 %v346
        %381 = vmatpush.msra.mxu0 %v345
        %382 = vmatpush.msra.mxu0 %v344
        %383 = vmatpush.msra.mxu0 %v343
        %384 = vmatmul.f32.gmra.mxu0 %v357
        %v385 = vpop.f32.mrf.mxu0
        %v386 = vadd.f32 0.0, %v385
        %387 = vmatmul.f32.gmra.mxu0 %v360
        %v388 = vpop.f32.mrf.mxu0
        %v389 = vadd.f32 0.0, %v388
        %390 = vmatmul.f32.gmra.mxu0 %v363
        %v391 = vpop.f32.mrf.mxu0
        %v392 = vadd.f32 0.0, %v391
        %393 = vmatmul.f32.gmra.mxu0 %v366
        %v394 = vpop.f32.mrf.mxu0
        %v395 = vadd.f32 0.0, %v394
        %396 = vdwg.mxu0
        %v397 = vld [vmem:[%s2] sm:$0xff]
        %v398 = vld [vmem:[%s2 + $0x8] sm:$0xff]
        %v399 = vld [vmem:[%s2 + $0x10] sm:$0xff]
        %v400 = vld [vmem:[%s2 + $0x18] sm:$0xff]
        %v401 = vld [vmem:[%s2 + $0x20] sm:$0xff]
        %v402 = vld [vmem:[%s2 + $0x28] sm:$0xff]
        %v403 = vld [vmem:[%s2 + $0x30] sm:$0xff]
        %v404 = vld [vmem:[%s2 + $0x38] sm:$0xff]
        %vm405 = vcmask 261120
        %v407 = vsel %vm405, %v397, 0
        %v410 = vsel %vm405, %v398, 0
        %v413 = vsel %vm405, %v399, 0
        %v416 = vsel %vm405, %v400, 0
        %v419 = vsel %vm405, %v401, 0
        %v422 = vsel %vm405, %v402, 0
        %v425 = vsel %vm405, %v403, 0
        %v428 = vsel %vm405, %v404, 0
        %430 = vmatpush.msra.mxu0 0.0
        %431 = vmatpush.msra.mxu0 0.0
        %432 = vmatpush.msra.mxu0 0.0
        %433 = vmatpush.msra.mxu0 0.0
        %434 = vmatpush.msra.mxu0 0.0
        %435 = vmatpush.msra.mxu0 0.0
        %436 = vmatpush.msra.mxu0 0.0
        %437 = vmatpush.msra.mxu0 0.0
        %438 = vmatpush.msra.mxu0 0.0
        %439 = vmatpush.msra.mxu0 0.0
        %440 = vmatpush.msra.mxu0 0.0
        %441 = vmatpush.msra.mxu0 0.0
        %442 = vmatpush.msra.mxu0 %v395
        %443 = vmatpush.msra.mxu0 %v392
        %444 = vmatpush.msra.mxu0 %v389
        %445 = vmatpush.msra.mxu0 %v386
        %446 = vmatmul.f32.gmra.mxu0 %v407
        %v447 = vpop.f32.mrf.mxu0
        %v448 = vadd.f32 0.0, %v447
        %449 = vmatmul.f32.gmra.mxu0 %v410
        %v450 = vpop.f32.mrf.mxu0
        %v451 = vadd.f32 0.0, %v450
        %452 = vmatmul.f32.gmra.mxu0 %v413
        %v453 = vpop.f32.mrf.mxu0
        %v454 = vadd.f32 0.0, %v453
        %455 = vmatmul.f32.gmra.mxu0 %v416
        %v456 = vpop.f32.mrf.mxu0
        %v457 = vadd.f32 0.0, %v456
        %458 = vmatmul.f32.gmra.mxu0 %v419
        %v459 = vpop.f32.mrf.mxu0
        %v460 = vadd.f32 0.0, %v459
        %461 = vmatmul.f32.gmra.mxu0 %v422
        %v462 = vpop.f32.mrf.mxu0
        %v463 = vadd.f32 0.0, %v462
        %464 = vmatmul.f32.gmra.mxu0 %v425
        %v465 = vpop.f32.mrf.mxu0
        %v466 = vadd.f32 0.0, %v465
        %467 = vmatmul.f32.gmra.mxu0 %v428
        %v468 = vpop.f32.mrf.mxu0
        %v469 = vadd.f32 0.0, %v468
        %470 = vdwg.mxu0
        %v471 = vmul.f32 %v448, %v448
        %v472 = vmul.f32 %v451, %v451
        %v473 = vmul.f32 %v454, %v454
        %v474 = vmul.f32 %v457, %v457
        %v475 = vmul.f32 %v460, %v460
        %v476 = vmul.f32 %v463, %v463
        %v477 = vmul.f32 %v466, %v466
        %v478 = vmul.f32 %v469, %v469
        %487 = vrot.lane.b32.xlu0 %v471, 1
        %v488 = vpop.permute.xlu0 %487
        %489 = vrot.lane.b32.xlu0 %v472, 1
        %v490 = vpop.permute.xlu0 %489
        %491 = vrot.lane.b32.xlu0 %v473, 1
        %v492 = vpop.permute.xlu0 %491
        %493 = vrot.lane.b32.xlu0 %v474, 1
        %v494 = vpop.permute.xlu0 %493
        %495 = vrot.lane.b32.xlu0 %v475, 1
        %v496 = vpop.permute.xlu0 %495
        %497 = vrot.lane.b32.xlu0 %v476, 1
        %v498 = vpop.permute.xlu0 %497
        %499 = vrot.lane.b32.xlu0 %v477, 1
        %v500 = vpop.permute.xlu0 %499
        %501 = vrot.lane.b32.xlu0 %v478, 1
        %v502 = vpop.permute.xlu0 %501
        %v511 = vsub.f32 %v448, %v488
        %v512 = vsub.f32 %v451, %v490
        %v513 = vsub.f32 %v454, %v492
        %v514 = vsub.f32 %v457, %v494
        %v515 = vsub.f32 %v460, %v496
        %v516 = vsub.f32 %v463, %v498
        %v517 = vsub.f32 %v466, %v500
        %v518 = vsub.f32 %v469, %v502
        %520 = vset.pattern.permute.xlu0 0
        %521 = vperm.xlu0 %520, %v448
        %v522 = vpop.permute.xlu0 %521
        %525 = vset.pattern.permute.xlu0 0
        %526 = vperm.xlu0 %525, %v451
        %v527 = vpop.permute.xlu0 %526
        %530 = vset.pattern.permute.xlu0 0
        %531 = vperm.xlu0 %530, %v454
        %v532 = vpop.permute.xlu0 %531
        %535 = vset.pattern.permute.xlu0 0
        %536 = vperm.xlu0 %535, %v457
        %v537 = vpop.permute.xlu0 %536
        %540 = vset.pattern.permute.xlu0 0
        %541 = vperm.xlu0 %540, %v460
        %v542 = vpop.permute.xlu0 %541
        %545 = vset.pattern.permute.xlu0 0
        %546 = vperm.xlu0 %545, %v463
        %v547 = vpop.permute.xlu0 %546
        %550 = vset.pattern.permute.xlu0 0
        %551 = vperm.xlu0 %550, %v466
        %v552 = vpop.permute.xlu0 %551
        %555 = vset.pattern.permute.xlu0 0
        %556 = vperm.xlu0 %555, %v469
        %v557 = vpop.permute.xlu0 %556
        %v559 = vsub.f32 %v278, %v522
        %v560 = vsub.f32 %v279, %v527
        %v561 = vsub.f32 %v280, %v532
        %v562 = vsub.f32 %v281, %v537
        %v563 = vsub.f32 %v282, %v542
        %v564 = vsub.f32 %v283, %v547
        %v565 = vsub.f32 %v284, %v552
        %v566 = vsub.f32 %v285, %v557
        %v567 = vadd.f32 %v511, 1e-05
        %v568 = vadd.f32 %v512, 1e-05
        %v569 = vadd.f32 %v513, 1e-05
        %v570 = vadd.f32 %v514, 1e-05
        %v571 = vadd.f32 %v515, 1e-05
        %v572 = vadd.f32 %v516, 1e-05
        %v573 = vadd.f32 %v517, 1e-05
        %v574 = vadd.f32 %v518, 1e-05
        %v575 = vrsqrt.pop %v567
        %v576 = vmul.f32 %v575, %v567
        %v577 = vmul.f32 %v576, %v575
        %v578 = vmul.f32 0.5, %v577
        %v579 = vsub.f32 1.5, %v578
        %v580 = vmul.f32 %v575, %v579
        %vm581 = vweird.f32 %v567
        %vm582 = vweird.f32 %v575
        %vm583 = vmor %vm581, %vm582
        %v584 = vsel %vm583, %v575, %v580
        %v585 = vrsqrt.pop %v568
        %v586 = vmul.f32 %v585, %v568
        %v587 = vmul.f32 %v586, %v585
        %v588 = vmul.f32 0.5, %v587
        %v589 = vsub.f32 1.5, %v588
        %v590 = vmul.f32 %v585, %v589
        %vm591 = vweird.f32 %v568
        %vm592 = vweird.f32 %v585
        %vm593 = vmor %vm591, %vm592
        %v594 = vsel %vm593, %v585, %v590
        %v595 = vrsqrt.pop %v569
        %v596 = vmul.f32 %v595, %v569
        %v597 = vmul.f32 %v596, %v595
        %v598 = vmul.f32 0.5, %v597
        %v599 = vsub.f32 1.5, %v598
        %v600 = vmul.f32 %v595, %v599
        %vm601 = vweird.f32 %v569
        %vm602 = vweird.f32 %v595
        %vm603 = vmor %vm601, %vm602
        %v604 = vsel %vm603, %v595, %v600
        %v605 = vrsqrt.pop %v570
        %v606 = vmul.f32 %v605, %v570
        %v607 = vmul.f32 %v606, %v605
        %v608 = vmul.f32 0.5, %v607
        %v609 = vsub.f32 1.5, %v608
        %v610 = vmul.f32 %v605, %v609
        %vm611 = vweird.f32 %v570
        %vm612 = vweird.f32 %v605
        %vm613 = vmor %vm611, %vm612
        %v614 = vsel %vm613, %v605, %v610
        %v615 = vrsqrt.pop %v571
        %v616 = vmul.f32 %v615, %v571
        %v617 = vmul.f32 %v616, %v615
        %v618 = vmul.f32 0.5, %v617
        %v619 = vsub.f32 1.5, %v618
        %v620 = vmul.f32 %v615, %v619
        %vm621 = vweird.f32 %v571
        %vm622 = vweird.f32 %v615
        %vm623 = vmor %vm621, %vm622
        %v624 = vsel %vm623, %v615, %v620
        %v625 = vrsqrt.pop %v572
        %v626 = vmul.f32 %v625, %v572
        %v627 = vmul.f32 %v626, %v625
        %v628 = vmul.f32 0.5, %v627
        %v629 = vsub.f32 1.5, %v628
        %v630 = vmul.f32 %v625, %v629
        %vm631 = vweird.f32 %v572
        %vm632 = vweird.f32 %v625
        %vm633 = vmor %vm631, %vm632
        %v634 = vsel %vm633, %v625, %v630
        %v635 = vrsqrt.pop %v573
        %v636 = vmul.f32 %v635, %v573
        %v637 = vmul.f32 %v636, %v635
        %v638 = vmul.f32 0.5, %v637
        %v639 = vsub.f32 1.5, %v638
        %v640 = vmul.f32 %v635, %v639
        %vm641 = vweird.f32 %v573
        %vm642 = vweird.f32 %v635
        %vm643 = vmor %vm641, %vm642
        %v644 = vsel %vm643, %v635, %v640
        %v645 = vrsqrt.pop %v574
        %v646 = vmul.f32 %v645, %v574
        %v647 = vmul.f32 %v646, %v645
        %v648 = vmul.f32 0.5, %v647
        %v649 = vsub.f32 1.5, %v648
        %v650 = vmul.f32 %v645, %v649
        %vm651 = vweird.f32 %v574
        %vm652 = vweird.f32 %v645
        %vm653 = vmor %vm651, %vm652
        %v654 = vsel %vm653, %v645, %v650
        %656 = vset.pattern.permute.xlu0 1
        %657 = vperm.xlu0 %656, %v584
        %v658 = vpop.permute.xlu0 %657
        %661 = vset.pattern.permute.xlu0 1
        %662 = vperm.xlu0 %661, %v594
        %v663 = vpop.permute.xlu0 %662
        %666 = vset.pattern.permute.xlu0 1
        %667 = vperm.xlu0 %666, %v604
        %v668 = vpop.permute.xlu0 %667
        %671 = vset.pattern.permute.xlu0 1
        %672 = vperm.xlu0 %671, %v614
        %v673 = vpop.permute.xlu0 %672
        %676 = vset.pattern.permute.xlu0 1
        %677 = vperm.xlu0 %676, %v624
        %v678 = vpop.permute.xlu0 %677
        %681 = vset.pattern.permute.xlu0 1
        %682 = vperm.xlu0 %681, %v634
        %v683 = vpop.permute.xlu0 %682
        %686 = vset.pattern.permute.xlu0 1
        %687 = vperm.xlu0 %686, %v644
        %v688 = vpop.permute.xlu0 %687
        %691 = vset.pattern.permute.xlu0 1
        %692 = vperm.xlu0 %691, %v654
        %v693 = vpop.permute.xlu0 %692
        %v695 = vmul.f32 %v559, %v658
        %v696 = vmul.f32 %v560, %v663
        %v697 = vmul.f32 %v561, %v668
        %v698 = vmul.f32 %v562, %v673
        %v699 = vmul.f32 %v563, %v678
        %v700 = vmul.f32 %v564, %v683
        %v701 = vmul.f32 %v565, %v688
        %v702 = vmul.f32 %v566, %v693
        %v703 = vpack.c.bf16 %v696, %v695
        %v704 = vpack.c.bf16 %v698, %v697
        %v705 = vpack.c.bf16 %v700, %v699
        %v706 = vpack.c.bf16 %v702, %v701
        %v707 = vld [vmem:[%s3] sm:$0xf]
        %v708 = vld [vmem:[%s3 + $0x4] sm:$0xf]
        %v709 = vld [vmem:[%s3 + $0x8] sm:$0xf]
        %v710 = vld [vmem:[%s3 + $0xc] sm:$0xf]
        %v711 = vld [vmem:[%s3 + $0x10] sm:$0xf]
        %v712 = vld [vmem:[%s3 + $0x14] sm:$0xf]
        %v713 = vld [vmem:[%s3 + $0x18] sm:$0xf]
        %v714 = vld [vmem:[%s3 + $0x1c] sm:$0xf]
        %v715 = vld [vmem:[%s3 + $0x20] sm:$0xf]
        %v716 = vld [vmem:[%s3 + $0x24] sm:$0xf]
        %v717 = vld [vmem:[%s3 + $0x28] sm:$0xf]
        %v718 = vld [vmem:[%s3 + $0x2c] sm:$0xf]
        %v719 = vld [vmem:[%s3 + $0x30] sm:$0xf]
        %v720 = vld [vmem:[%s3 + $0x34] sm:$0xf]
        %v721 = vld [vmem:[%s3 + $0x38] sm:$0xf]
        %v722 = vld [vmem:[%s3 + $0x3c] sm:$0xf]
        %v723 = vld [vmem:[%s3 + $0x40] sm:$0xf]
        %v724 = vld [vmem:[%s3 + $0x44] sm:$0xf]
        %v725 = vld [vmem:[%s3 + $0x48] sm:$0xf]
        %v726 = vld [vmem:[%s3 + $0x4c] sm:$0xf]
        %v727 = vld [vmem:[%s3 + $0x50] sm:$0xf]
        %v728 = vld [vmem:[%s3 + $0x54] sm:$0xf]
        %v729 = vld [vmem:[%s3 + $0x58] sm:$0xf]
        %v730 = vld [vmem:[%s3 + $0x5c] sm:$0xf]
        %v731 = vld [vmem:[%s4] sm:$0xff]
        %v732 = vld [vmem:[%s4 + $0x8] sm:$0xff]
        %v733 = vld [vmem:[%s4 + $0x10] sm:$0xff]
        %v734 = vld [vmem:[%s4 + $0x18] sm:$0xff]
        %v735 = vld [vmem:[%s4 + $0x20] sm:$0xff]
        %v736 = vld [vmem:[%s4 + $0x28] sm:$0xff]
        %v737 = vld [vmem:[%s4 + $0x30] sm:$0xff]
        %v738 = vld [vmem:[%s4 + $0x38] sm:$0xff]
        %v739 = vld [vmem:[%s4 + $0x40] sm:$0xff]
        %v740 = vld [vmem:[%s4 + $0x48] sm:$0xff]
        %v741 = vld [vmem:[%s4 + $0x50] sm:$0xff]
        %v742 = vld [vmem:[%s4 + $0x58] sm:$0xff]
        %v743 = vld [vmem:[%s4 + $0x60] sm:$0xff]
        %v744 = vld [vmem:[%s4 + $0x68] sm:$0xff]
        %v745 = vld [vmem:[%s4 + $0x70] sm:$0xff]
        %v746 = vld [vmem:[%s4 + $0x78] sm:$0xff]
        %v747 = vld [vmem:[%s4 + $0x80] sm:$0xff]
        %v748 = vld [vmem:[%s4 + $0x88] sm:$0xff]
        %v749 = vld [vmem:[%s4 + $0x90] sm:$0xff]
        %v750 = vld [vmem:[%s4 + $0x98] sm:$0xff]
        %v751 = vld [vmem:[%s4 + $0xa0] sm:$0xff]
        %v752 = vld [vmem:[%s4 + $0xa8] sm:$0xff]
        %v753 = vld [vmem:[%s4 + $0xb0] sm:$0xff]
        %v754 = vld [vmem:[%s4 + $0xb8] sm:$0xff]
        %756 = vset.pattern.permute.xlu0 0
        %757 = vperm.xlu0 %756, %v731
        %v758 = vpop.permute.xlu0 %757
        %761 = vset.pattern.permute.xlu0 0
        %762 = vperm.xlu0 %761, %v732
        %v763 = vpop.permute.xlu0 %762
        %766 = vset.pattern.permute.xlu0 0
        %767 = vperm.xlu0 %766, %v733
        %v768 = vpop.permute.xlu0 %767
        %771 = vset.pattern.permute.xlu0 0
        %772 = vperm.xlu0 %771, %v734
        %v773 = vpop.permute.xlu0 %772
        %776 = vset.pattern.permute.xlu0 0
        %777 = vperm.xlu0 %776, %v735
        %v778 = vpop.permute.xlu0 %777
        %781 = vset.pattern.permute.xlu0 0
        %782 = vperm.xlu0 %781, %v736
        %v783 = vpop.permute.xlu0 %782
        %786 = vset.pattern.permute.xlu0 0
        %787 = vperm.xlu0 %786, %v737
        %v788 = vpop.permute.xlu0 %787
        %791 = vset.pattern.permute.xlu0 0
        %792 = vperm.xlu0 %791, %v738
        %v793 = vpop.permute.xlu0 %792
        %796 = vset.pattern.permute.xlu0 0
        %797 = vperm.xlu0 %796, %v739
        %v798 = vpop.permute.xlu0 %797
        %801 = vset.pattern.permute.xlu0 0
        %802 = vperm.xlu0 %801, %v740
        %v803 = vpop.permute.xlu0 %802
        %806 = vset.pattern.permute.xlu0 0
        %807 = vperm.xlu0 %806, %v741
        %v808 = vpop.permute.xlu0 %807
        %811 = vset.pattern.permute.xlu0 0
        %812 = vperm.xlu0 %811, %v742
        %v813 = vpop.permute.xlu0 %812
        %816 = vset.pattern.permute.xlu0 0
        %817 = vperm.xlu0 %816, %v743
        %v818 = vpop.permute.xlu0 %817
        %821 = vset.pattern.permute.xlu0 0
        %822 = vperm.xlu0 %821, %v744
        %v823 = vpop.permute.xlu0 %822
        %826 = vset.pattern.permute.xlu0 0
        %827 = vperm.xlu0 %826, %v745
        %v828 = vpop.permute.xlu0 %827
        %831 = vset.pattern.permute.xlu0 0
        %832 = vperm.xlu0 %831, %v746
        %v833 = vpop.permute.xlu0 %832
        %836 = vset.pattern.permute.xlu0 0
        %837 = vperm.xlu0 %836, %v747
        %v838 = vpop.permute.xlu0 %837
        %841 = vset.pattern.permute.xlu0 0
        %842 = vperm.xlu0 %841, %v748
        %v843 = vpop.permute.xlu0 %842
        %846 = vset.pattern.permute.xlu0 0
        %847 = vperm.xlu0 %846, %v749
        %v848 = vpop.permute.xlu0 %847
        %851 = vset.pattern.permute.xlu0 0
        %852 = vperm.xlu0 %851, %v750
        %v853 = vpop.permute.xlu0 %852
        %856 = vset.pattern.permute.xlu0 0
        %857 = vperm.xlu0 %856, %v751
        %v858 = vpop.permute.xlu0 %857
        %861 = vset.pattern.permute.xlu0 0
        %862 = vperm.xlu0 %861, %v752
        %v863 = vpop.permute.xlu0 %862
        %866 = vset.pattern.permute.xlu0 0
        %867 = vperm.xlu0 %866, %v753
        %v868 = vpop.permute.xlu0 %867
        %871 = vset.pattern.permute.xlu0 0
        %872 = vperm.xlu0 %871, %v754
        %v873 = vpop.permute.xlu0 %872
        %v899 = vunpack.c.l.b16 %v707
        %v900 = vunpack.c.l.b16 %v708
        %v901 = vunpack.c.l.b16 %v709
        %v902 = vunpack.c.l.b16 %v710
        %v903 = vunpack.c.l.b16 %v711
        %v904 = vunpack.c.l.b16 %v712
        %v905 = vunpack.c.l.b16 %v713
        %v906 = vunpack.c.l.b16 %v714
        %v907 = vunpack.c.l.b16 %v715
        %v908 = vunpack.c.l.b16 %v716
        %v909 = vunpack.c.l.b16 %v717
        %v910 = vunpack.c.l.b16 %v718
        %v911 = vunpack.c.l.b16 %v719
        %v912 = vunpack.c.l.b16 %v720
        %v913 = vunpack.c.l.b16 %v721
        %v914 = vunpack.c.l.b16 %v722
        %v915 = vunpack.c.l.b16 %v723
        %v916 = vunpack.c.l.b16 %v724
        %v917 = vunpack.c.l.b16 %v725
        %v918 = vunpack.c.l.b16 %v726
        %v919 = vunpack.c.l.b16 %v727
        %v920 = vunpack.c.l.b16 %v728
        %v921 = vunpack.c.l.b16 %v729
        %v922 = vunpack.c.l.b16 %v730
        %v923 = vpack.c.b16 %v900, %v899
        %v924 = vpack.c.b16 %v902, %v901
        %v925 = vpack.c.b16 %v904, %v903
        %v926 = vpack.c.b16 %v906, %v905
        %v927 = vpack.c.b16 %v908, %v907
        %v928 = vpack.c.b16 %v910, %v909
        %v929 = vpack.c.b16 %v912, %v911
        %v930 = vpack.c.b16 %v914, %v913
        %v931 = vpack.c.b16 %v916, %v915
        %v932 = vpack.c.b16 %v918, %v917
        %v933 = vpack.c.b16 %v920, %v919
        %v934 = vpack.c.b16 %v922, %v921
        %v936 = vsel %vm355, %v923, 0
        %v939 = vsel %vm355, %v924, 0
        %v942 = vsel %vm355, %v925, 0
        %v945 = vsel %vm355, %v926, 0
        %v948 = vsel %vm355, %v927, 0
        %v951 = vsel %vm355, %v928, 0
        %v954 = vsel %vm355, %v929, 0
        %v957 = vsel %vm355, %v930, 0
        %v960 = vsel %vm355, %v931, 0
        %v963 = vsel %vm355, %v932, 0
        %v966 = vsel %vm355, %v933, 0
        %v969 = vsel %vm355, %v934, 0
        %971 = vmatpush.bf16.msra.mxu0 0
        %972 = vmatpush.bf16.msra.mxu0 0
        %973 = vmatpush.bf16.msra.mxu0 0
        %974 = vmatpush.bf16.msra.mxu0 0
        %975 = vmatpush.bf16.msra.mxu0 %v706
        %976 = vmatpush.bf16.msra.mxu0 %v705
        %977 = vmatpush.bf16.msra.mxu0 %v704
        %978 = vmatpush.bf16.msra.mxu0 %v703
        %979 = vmatmul.bf16.gmra.mxu0 %v936
        %v980 = vpop.f32.mrf.mxu0
        %v981 = vadd.f32 %v758, %v980
        %v982 = vpop.f32.mrf.mxu0
        %v983 = vadd.f32 %v763, %v982
        %984 = vmatmul.bf16.gmra.mxu0 %v939
        %v985 = vpop.f32.mrf.mxu0
        %v986 = vadd.f32 %v768, %v985
        %v987 = vpop.f32.mrf.mxu0
        %v988 = vadd.f32 %v773, %v987
        %989 = vmatmul.bf16.gmra.mxu0 %v942
        %v990 = vpop.f32.mrf.mxu0
        %v991 = vadd.f32 %v778, %v990
        %v992 = vpop.f32.mrf.mxu0
        %v993 = vadd.f32 %v783, %v992
        %994 = vmatmul.bf16.gmra.mxu0 %v945
        %v995 = vpop.f32.mrf.mxu0
        %v996 = vadd.f32 %v788, %v995
        %v997 = vpop.f32.mrf.mxu0
        %v998 = vadd.f32 %v793, %v997
        %999 = vmatmul.bf16.gmra.mxu0 %v948
        %v1000 = vpop.f32.mrf.mxu0
        %v1001 = vadd.f32 %v798, %v1000
        %v1002 = vpop.f32.mrf.mxu0
        %v1003 = vadd.f32 %v803, %v1002
        %1004 = vmatmul.bf16.gmra.mxu0 %v951
        %v1005 = vpop.f32.mrf.mxu0
        %v1006 = vadd.f32 %v808, %v1005
        %v1007 = vpop.f32.mrf.mxu0
        %v1008 = vadd.f32 %v813, %v1007
        %1009 = vmatmul.bf16.gmra.mxu0 %v954
        %v1010 = vpop.f32.mrf.mxu0
        %v1011 = vadd.f32 %v818, %v1010
        %v1012 = vpop.f32.mrf.mxu0
        %v1013 = vadd.f32 %v823, %v1012
        %1014 = vmatmul.bf16.gmra.mxu0 %v957
        %v1015 = vpop.f32.mrf.mxu0
        %v1016 = vadd.f32 %v828, %v1015
        %v1017 = vpop.f32.mrf.mxu0
        %v1018 = vadd.f32 %v833, %v1017
        %1019 = vmatmul.bf16.gmra.mxu0 %v960
        %v1020 = vpop.f32.mrf.mxu0
        %v1021 = vadd.f32 %v838, %v1020
        %v1022 = vpop.f32.mrf.mxu0
        %v1023 = vadd.f32 %v843, %v1022
        %1024 = vmatmul.bf16.gmra.mxu0 %v963
        %v1025 = vpop.f32.mrf.mxu0
        %v1026 = vadd.f32 %v848, %v1025
        %v1027 = vpop.f32.mrf.mxu0
        %v1028 = vadd.f32 %v853, %v1027
        %1029 = vmatmul.bf16.gmra.mxu0 %v966
        %v1030 = vpop.f32.mrf.mxu0
        %v1031 = vadd.f32 %v858, %v1030
        %v1032 = vpop.f32.mrf.mxu0
        %v1033 = vadd.f32 %v863, %v1032
        %1034 = vmatmul.bf16.gmra.mxu0 %v969
        %v1035 = vpop.f32.mrf.mxu0
        %v1036 = vadd.f32 %v868, %v1035
        %v1037 = vpop.f32.mrf.mxu0
        %v1038 = vadd.f32 %v873, %v1037
        %1039 = vdwg.mxu0
        %1040 = vst [vmem:[#allocation2] sm:$0xff] %v981
        %1041 = vst [vmem:[#allocation2 + $0x8] sm:$0xff] %v983
        %1042 = vst [vmem:[#allocation2 + $0x10] sm:$0xff] %v986
        %1043 = vst [vmem:[#allocation2 + $0x18] sm:$0xff] %v988
        %1044 = vst [vmem:[#allocation2 + $0x20] sm:$0xff] %v991
        %1045 = vst [vmem:[#allocation2 + $0x28] sm:$0xff] %v993
        %1046 = vst [vmem:[#allocation2 + $0x30] sm:$0xff] %v996
        %1047 = vst [vmem:[#allocation2 + $0x38] sm:$0xff] %v998
        %1048 = vst [vmem:[#allocation2 + $0x40] sm:$0xff] %v1001
        %1049 = vst [vmem:[#allocation2 + $0x48] sm:$0xff] %v1003
        %1050 = vst [vmem:[#allocation2 + $0x50] sm:$0xff] %v1006
        %1051 = vst [vmem:[#allocation2 + $0x58] sm:$0xff] %v1008
        %1052 = vst [vmem:[#allocation2 + $0x60] sm:$0xff] %v1011
        %1053 = vst [vmem:[#allocation2 + $0x68] sm:$0xff] %v1013
        %1054 = vst [vmem:[#allocation2 + $0x70] sm:$0xff] %v1016
        %1055 = vst [vmem:[#allocation2 + $0x78] sm:$0xff] %v1018
        %1056 = vst [vmem:[#allocation2 + $0x80] sm:$0xff] %v1021
        %1057 = vst [vmem:[#allocation2 + $0x88] sm:$0xff] %v1023
        %1058 = vst [vmem:[#allocation2 + $0x90] sm:$0xff] %v1026
        %1059 = vst [vmem:[#allocation2 + $0x98] sm:$0xff] %v1028
        %1060 = vst [vmem:[#allocation2 + $0xa0] sm:$0xff] %v1031
        %1061 = vst [vmem:[#allocation2 + $0xa8] sm:$0xff] %v1033
        %1062 = vst [vmem:[#allocation2 + $0xb0] sm:$0xff] %v1036
        %1063 = vst [vmem:[#allocation2 + $0xb8] sm:$0xff] %v1038
        loop: start=0, step=1, limit=2
        $region49: #{tpu_custom_call.1} parent=47 // loop_pre_header
          _
        $region50: #{tpu_custom_call.1} parent=47 // loop_header
          %s1065 = sphi 0, %s1069
          %p1066 = scmp.ge.s32.totalorder %s1065, 2
        $region51: #{tpu_custom_call.1} parent=47 // loop_header_branch
          %1068 = sbr.rel (%p1066) target = $region55
        $region52: #{tpu_custom_call.1} parent=47 // loop_body
          %s1070 = smul.u32 %s1065, 96
          %s1071 = smul.u32 %s1065, 32
          %s1072 = sadd.s32 %s1070, 32
          %s1073 = scalar_lea.vmem [#allocation2], %s1072
          %v1074 = vld [vmem:[%s1073] sm:$0xff]
          %v1075 = vld [vmem:[%s1073 + $0x8] sm:$0xff]
          %v1076 = vld [vmem:[%s1073 + $0x10] sm:$0xff]
          %v1077 = vld [vmem:[%s1073 + $0x18] sm:$0xff]
          %v1078 = vpack.c.bf16 %v1075, %v1074
          %v1079 = vpack.c.bf16 %v1077, %v1076
          %s1080 = sadd.s32 %s1070, 64
          %s1081 = scalar_lea.vmem [#allocation2], %s1080
          %v1082 = vld [vmem:[%s1081] sm:$0xff]
          %v1083 = vld [vmem:[%s1081 + $0x8] sm:$0xff]
          %v1084 = vld [vmem:[%s1081 + $0x10] sm:$0xff]
          %v1085 = vld [vmem:[%s1081 + $0x18] sm:$0xff]
          %v1086 = vpack.c.bf16 %v1083, %v1082
          %v1087 = vpack.c.bf16 %v1085, %v1084
          %s1088 = sadd.s32 0, %s1070
          %s1089 = scalar_lea.vmem [#allocation2], %s1088
          %v1090 = vld [vmem:[%s1089] sm:$0xff]
          %v1091 = vld [vmem:[%s1089 + $0x8] sm:$0xff]
          %v1092 = vld [vmem:[%s1089 + $0x10] sm:$0xff]
          %v1093 = vld [vmem:[%s1089 + $0x18] sm:$0xff]
          %v1094 = vpack.c.bf16 %v1091, %v1090
          %v1095 = vpack.c.bf16 %v1093, %v1092
          %1096 = vxpose.xlu0.c.b16.start [1/8] %v1094, 128
          %1097 = vxpose.xlu0.c.b16.cont [2/8] %v1095, 128
          %1098 = vxpose.xlu0.c.b16.cont [3/8] 0, 128
          %1099 = vxpose.xlu0.c.b16.cont [4/8] 0, 128
          %1100 = vxpose.xlu0.c.b16.cont [5/8] 0, 128
          %1101 = vxpose.xlu0.c.b16.cont [6/8] 0, 128
          %1102 = vxpose.xlu0.c.b16.cont [7/8] 0, 128
          %1103 = vxpose.xlu0.c.b16.end [8/8] 0, 128
          %v1104 = vpop.trf.xlu0
          %v1105 = vpop.trf.xlu0
          %v1106 = vpop.trf.xlu0
          %v1107 = vpop.trf.xlu0
          %v1108 = vpop.trf.xlu0
          %v1109 = vpop.trf.xlu0
          %v1110 = vpop.trf.xlu0
          %v1111 = vpop.trf.xlu0
          %v1113 = vsel %vm405, %v1104, 0
          %v1116 = vsel %vm405, %v1105, 0
          %v1119 = vsel %vm405, %v1106, 0
          %v1122 = vsel %vm405, %v1107, 0
          %v1125 = vsel %vm405, %v1108, 0
          %v1128 = vsel %vm405, %v1109, 0
          %v1131 = vsel %vm405, %v1110, 0
          %v1134 = vsel %vm405, %v1111, 0
          %1136 = vmatpush.bf16.msra.mxu0 0
          %1137 = vmatpush.bf16.msra.mxu0 0
          %1138 = vmatpush.bf16.msra.mxu0 0
          %1139 = vmatpush.bf16.msra.mxu0 0
          %1140 = vmatpush.bf16.msra.mxu0 0
          %1141 = vmatpush.bf16.msra.mxu0 0
          %1142 = vmatpush.bf16.msra.mxu0 %v1079
          %1143 = vmatpush.bf16.msra.mxu0 %v1078
          %1144 = vmatmul.bf16.gmra.mxu0 %v1113
          %v1145 = vpop.f32.mrf.mxu0
          %v1146 = vadd.f32 0.0, %v1145
          %v1147 = vpop.f32.mrf.mxu0
          %v1148 = vadd.f32 0.0, %v1147
          %1149 = vmatmul.bf16.gmra.mxu0 %v1116
          %v1150 = vpop.f32.mrf.mxu0
          %v1151 = vadd.f32 0.0, %v1150
          %v1152 = vpop.f32.mrf.mxu0
          %v1153 = vadd.f32 0.0, %v1152
          %1154 = vmatmul.bf16.gmra.mxu0 %v1119
          %v1155 = vpop.f32.mrf.mxu0
          %v1156 = vadd.f32 0.0, %v1155
          %v1157 = vpop.f32.mrf.mxu0
          %v1158 = vadd.f32 0.0, %v1157
          %1159 = vmatmul.bf16.gmra.mxu0 %v1122
          %v1160 = vpop.f32.mrf.mxu0
          %v1161 = vadd.f32 0.0, %v1160
          %v1162 = vpop.f32.mrf.mxu0
          %v1163 = vadd.f32 0.0, %v1162
          %1164 = vmatmul.bf16.gmra.mxu0 %v1125
          %v1165 = vpop.f32.mrf.mxu0
          %v1166 = vadd.f32 0.0, %v1165
          %v1167 = vpop.f32.mrf.mxu0
          %v1168 = vadd.f32 0.0, %v1167
          %1169 = vmatmul.bf16.gmra.mxu0 %v1128
          %v1170 = vpop.f32.mrf.mxu0
          %v1171 = vadd.f32 0.0, %v1170
          %v1172 = vpop.f32.mrf.mxu0
          %v1173 = vadd.f32 0.0, %v1172
          %1174 = vmatmul.bf16.gmra.mxu0 %v1131
          %v1175 = vpop.f32.mrf.mxu0
          %v1176 = vadd.f32 0.0, %v1175
          %v1177 = vpop.f32.mrf.mxu0
          %v1178 = vadd.f32 0.0, %v1177
          %1179 = vmatmul.bf16.gmra.mxu0 %v1134
          %v1180 = vpop.f32.mrf.mxu0
          %v1181 = vadd.f32 0.0, %v1180
          %v1182 = vpop.f32.mrf.mxu0
          %v1183 = vadd.f32 0.0, %v1182
          %1184 = vdwg.mxu0
          %1185 = vmax.xlane.f32.xlu0 %v1146
          %v1186 = vpop.xlane.xlu0 %1185
          %1187 = vmax.xlane.f32.xlu0 %v1148
          %v1188 = vpop.xlane.xlu0 %1187
          %1189 = vmax.xlane.f32.xlu0 %v1151
          %v1190 = vpop.xlane.xlu0 %1189
          %1191 = vmax.xlane.f32.xlu0 %v1153
          %v1192 = vpop.xlane.xlu0 %1191
          %1193 = vmax.xlane.f32.xlu0 %v1156
          %v1194 = vpop.xlane.xlu0 %1193
          %1195 = vmax.xlane.f32.xlu0 %v1158
          %v1196 = vpop.xlane.xlu0 %1195
          %1197 = vmax.xlane.f32.xlu0 %v1161
          %v1198 = vpop.xlane.xlu0 %1197
          %1199 = vmax.xlane.f32.xlu0 %v1163
          %v1200 = vpop.xlane.xlu0 %1199
          %1201 = vmax.xlane.f32.xlu0 %v1166
          %v1202 = vpop.xlane.xlu0 %1201
          %1203 = vmax.xlane.f32.xlu0 %v1168
          %v1204 = vpop.xlane.xlu0 %1203
          %1205 = vmax.xlane.f32.xlu0 %v1171
          %v1206 = vpop.xlane.xlu0 %1205
          %1207 = vmax.xlane.f32.xlu0 %v1173
          %v1208 = vpop.xlane.xlu0 %1207
          %1209 = vmax.xlane.f32.xlu0 %v1176
          %v1210 = vpop.xlane.xlu0 %1209
          %1211 = vmax.xlane.f32.xlu0 %v1178
          %v1212 = vpop.xlane.xlu0 %1211
          %1213 = vmax.xlane.f32.xlu0 %v1181
          %v1214 = vpop.xlane.xlu0 %1213
          %1215 = vmax.xlane.f32.xlu0 %v1183
          %v1216 = vpop.xlane.xlu0 %1215
          %v1217 = vsub.f32 %v1146, %v1186
          %v1218 = vsub.f32 %v1148, %v1188
          %v1219 = vsub.f32 %v1151, %v1190
          %v1220 = vsub.f32 %v1153, %v1192
          %v1221 = vsub.f32 %v1156, %v1194
          %v1222 = vsub.f32 %v1158, %v1196
          %v1223 = vsub.f32 %v1161, %v1198
          %v1224 = vsub.f32 %v1163, %v1200
          %v1225 = vsub.f32 %v1166, %v1202
          %v1226 = vsub.f32 %v1168, %v1204
          %v1227 = vsub.f32 %v1171, %v1206
          %v1228 = vsub.f32 %v1173, %v1208
          %v1229 = vsub.f32 %v1176, %v1210
          %v1230 = vsub.f32 %v1178, %v1212
          %v1231 = vsub.f32 %v1181, %v1214
          %v1232 = vsub.f32 %v1183, %v1216
          %v1233 = vmul.f32 %v1217, 1.442695
          %v1234 = vpow.pop %v1233
          %v1235 = vmul.f32 %v1218, 1.442695
          %v1236 = vpow.pop %v1235
          %v1237 = vmul.f32 %v1219, 1.442695
          %v1238 = vpow.pop %v1237
          %v1239 = vmul.f32 %v1220, 1.442695
          %v1240 = vpow.pop %v1239
          %v1241 = vmul.f32 %v1221, 1.442695
          %v1242 = vpow.pop %v1241
          %v1243 = vmul.f32 %v1222, 1.442695
          %v1244 = vpow.pop %v1243
          %v1245 = vmul.f32 %v1223, 1.442695
          %v1246 = vpow.pop %v1245
          %v1247 = vmul.f32 %v1224, 1.442695
          %v1248 = vpow.pop %v1247
          %v1249 = vmul.f32 %v1225, 1.442695
          %v1250 = vpow.pop %v1249
          %v1251 = vmul.f32 %v1226, 1.442695
          %v1252 = vpow.pop %v1251
          %v1253 = vmul.f32 %v1227, 1.442695
          %v1254 = vpow.pop %v1253
          %v1255 = vmul.f32 %v1228, 1.442695
          %v1256 = vpow.pop %v1255
          %v1257 = vmul.f32 %v1229, 1.442695
          %v1258 = vpow.pop %v1257
          %v1259 = vmul.f32 %v1230, 1.442695
          %v1260 = vpow.pop %v1259
          %v1261 = vmul.f32 %v1231, 1.442695
          %v1262 = vpow.pop %v1261
          %v1263 = vmul.f32 %v1232, 1.442695
          %v1264 = vpow.pop %v1263
          %1265 = vadd.xlane.f32.xlu0 %v1234
          %v1266 = vpop.xlane.xlu0 %1265
          %1267 = vadd.xlane.f32.xlu0 %v1236
          %v1268 = vpop.xlane.xlu0 %1267
          %1269 = vadd.xlane.f32.xlu0 %v1238
          %v1270 = vpop.xlane.xlu0 %1269
          %1271 = vadd.xlane.f32.xlu0 %v1240
          %v1272 = vpop.xlane.xlu0 %1271
          %1273 = vadd.xlane.f32.xlu0 %v1242
          %v1274 = vpop.xlane.xlu0 %1273
          %1275 = vadd.xlane.f32.xlu0 %v1244
          %v1276 = vpop.xlane.xlu0 %1275
          %1277 = vadd.xlane.f32.xlu0 %v1246
          %v1278 = vpop.xlane.xlu0 %1277
          %1279 = vadd.xlane.f32.xlu0 %v1248
          %v1280 = vpop.xlane.xlu0 %1279
          %1281 = vadd.xlane.f32.xlu0 %v1250
          %v1282 = vpop.xlane.xlu0 %1281
          %1283 = vadd.xlane.f32.xlu0 %v1252
          %v1284 = vpop.xlane.xlu0 %1283
          %1285 = vadd.xlane.f32.xlu0 %v1254
          %v1286 = vpop.xlane.xlu0 %1285
          %1287 = vadd.xlane.f32.xlu0 %v1256
          %v1288 = vpop.xlane.xlu0 %1287
          %1289 = vadd.xlane.f32.xlu0 %v1258
          %v1290 = vpop.xlane.xlu0 %1289
          %1291 = vadd.xlane.f32.xlu0 %v1260
          %v1292 = vpop.xlane.xlu0 %1291
          %1293 = vadd.xlane.f32.xlu0 %v1262
          %v1294 = vpop.xlane.xlu0 %1293
          %1295 = vadd.xlane.f32.xlu0 %v1264
          %v1296 = vpop.xlane.xlu0 %1295
          %v1297 = vrcp.pop %v1266
          %v1298 = vrcp.pop %v1268
          %v1299 = vrcp.pop %v1270
          %v1300 = vrcp.pop %v1272
          %v1301 = vrcp.pop %v1274
          %v1302 = vrcp.pop %v1276
          %v1303 = vrcp.pop %v1278
          %v1304 = vrcp.pop %v1280
          %v1305 = vrcp.pop %v1282
          %v1306 = vrcp.pop %v1284
          %v1307 = vrcp.pop %v1286
          %v1308 = vrcp.pop %v1288
          %v1309 = vrcp.pop %v1290
          %v1310 = vrcp.pop %v1292
          %v1311 = vrcp.pop %v1294
          %v1312 = vrcp.pop %v1296
          %v1313 = vmul.f32 %v1234, %v1297
          %v1314 = vmul.f32 %v1236, %v1298
          %v1315 = vmul.f32 %v1238, %v1299
          %v1316 = vmul.f32 %v1240, %v1300
          %v1317 = vmul.f32 %v1242, %v1301
          %v1318 = vmul.f32 %v1244, %v1302
          %v1319 = vmul.f32 %v1246, %v1303
          %v1320 = vmul.f32 %v1248, %v1304
          %v1321 = vmul.f32 %v1250, %v1305
          %v1322 = vmul.f32 %v1252, %v1306
          %v1323 = vmul.f32 %v1254, %v1307
          %v1324 = vmul.f32 %v1256, %v1308
          %v1325 = vmul.f32 %v1258, %v1309
          %v1326 = vmul.f32 %v1260, %v1310
          %v1327 = vmul.f32 %v1262, %v1311
          %v1328 = vmul.f32 %v1264, %v1312
          %v1329 = vpack.c.bf16 %v1314, %v1313
          %v1330 = vpack.c.bf16 %v1316, %v1315
          %v1331 = vpack.c.bf16 %v1318, %v1317
          %v1332 = vpack.c.bf16 %v1320, %v1319
          %v1333 = vpack.c.bf16 %v1322, %v1321
          %v1334 = vpack.c.bf16 %v1324, %v1323
          %v1335 = vpack.c.bf16 %v1326, %v1325
          %v1336 = vpack.c.bf16 %v1328, %v1327
          %1337 = vmatpush.bf16.xpose.msra.mxu0 %v1336
          %1338 = vmatpush.bf16.xpose.msra.mxu0 %v1335
          %1339 = vmatpush.bf16.xpose.msra.mxu0 %v1334
          %1340 = vmatpush.bf16.xpose.msra.mxu0 %v1333
          %1341 = vmatpush.bf16.xpose.msra.mxu0 %v1332
          %1342 = vmatpush.bf16.xpose.msra.mxu0 %v1331
          %1343 = vmatpush.bf16.xpose.msra.mxu0 %v1330
          %1344 = vmatpush.bf16.xpose.msra.mxu0 %v1329
          %1345 = vmatmul.bf16.gmra.mxu0 %v1086
          %v1346 = vpop.f32.mrf.mxu0
          %v1347 = vadd.f32 0.0, %v1346
          %v1348 = vpop.f32.mrf.mxu0
          %v1349 = vadd.f32 0.0, %v1348
          %1350 = vmatmul.bf16.gmra.mxu0 %v1087
          %v1351 = vpop.f32.mrf.mxu0
          %v1352 = vadd.f32 0.0, %v1351
          %v1353 = vpop.f32.mrf.mxu0
          %v1354 = vadd.f32 0.0, %v1353
          %1355 = vdwg.mxu0
          %s1356 = sadd.s32 0, %s1071
          %s1357 = scalar_lea.vmem [#allocation3], %s1356
          %1358 = vst [vmem:[%s1357] sm:$0xff] %v1347
          %1359 = vst [vmem:[%s1357 + $0x8] sm:$0xff] %v1349
          %1360 = vst [vmem:[%s1357 + $0x10] sm:$0xff] %v1352
          %1361 = vst [vmem:[%s1357 + $0x18] sm:$0xff] %v1354
        $region53: #{tpu_custom_call.1} parent=47 // loop_footer
          %s1069 = sadd.s32 1, %s1065
        $region54: #{tpu_custom_call.1} parent=47 // loop_footer_branch
          %1064 = sbr.rel target = $region50
        $region55: #{tpu_custom_call.1} parent=47 // loop_exit
          _
        %v1362 = vld [vmem:[%s5] sm:$0xf]
        %v1363 = vld [vmem:[%s5 + $0x4] sm:$0xf]
        %v1364 = vld [vmem:[%s5 + $0x8] sm:$0xf]
        %v1365 = vld [vmem:[%s5 + $0xc] sm:$0xf]
        %v1366 = vld [vmem:[%s5 + $0x10] sm:$0xf]
        %v1367 = vld [vmem:[%s5 + $0x14] sm:$0xf]
        %v1368 = vld [vmem:[%s5 + $0x18] sm:$0xf]
        %v1369 = vld [vmem:[%s5 + $0x1c] sm:$0xf]
        %v1370 = vld [vmem:[#allocation3] sm:$0xff]
        %v1371 = vld [vmem:[#allocation3 + $0x8] sm:$0xff]
        %v1372 = vld [vmem:[#allocation3 + $0x10] sm:$0xff]
        %v1373 = vld [vmem:[#allocation3 + $0x18] sm:$0xff]
        %v1374 = vld [vmem:[#allocation3 + $0x20] sm:$0xff]
        %v1375 = vld [vmem:[#allocation3 + $0x28] sm:$0xff]
        %v1376 = vld [vmem:[#allocation3 + $0x30] sm:$0xff]
        %v1377 = vld [vmem:[#allocation3 + $0x38] sm:$0xff]
        %v1378 = vpack.c.bf16 %v1371, %v1370
        %v1379 = vpack.c.bf16 %v1373, %v1372
        %v1380 = vpack.c.bf16 %v1375, %v1374
        %v1381 = vpack.c.bf16 %v1377, %v1376
        %v1390 = vunpack.c.l.b16 %v1362
        %v1391 = vunpack.c.l.b16 %v1363
        %v1392 = vunpack.c.l.b16 %v1364
        %v1393 = vunpack.c.l.b16 %v1365
        %v1394 = vunpack.c.l.b16 %v1366
        %v1395 = vunpack.c.l.b16 %v1367
        %v1396 = vunpack.c.l.b16 %v1368
        %v1397 = vunpack.c.l.b16 %v1369
        %v1398 = vpack.c.b16 %v1391, %v1390
        %v1399 = vpack.c.b16 %v1393, %v1392
        %v1400 = vpack.c.b16 %v1395, %v1394
        %v1401 = vpack.c.b16 %v1397, %v1396
        %v1403 = vsel %vm355, %v1398, 0
        %v1406 = vsel %vm355, %v1399, 0
        %v1409 = vsel %vm355, %v1400, 0
        %v1412 = vsel %vm355, %v1401, 0
        %1414 = vmatpush.bf16.msra.mxu0 0
        %1415 = vmatpush.bf16.msra.mxu0 0
        %1416 = vmatpush.bf16.msra.mxu0 0
        %1417 = vmatpush.bf16.msra.mxu0 0
        %1418 = vmatpush.bf16.msra.mxu0 %v1381
        %1419 = vmatpush.bf16.msra.mxu0 %v1380
        %1420 = vmatpush.bf16.msra.mxu0 %v1379
        %1421 = vmatpush.bf16.msra.mxu0 %v1378
        %1422 = vmatmul.bf16.gmra.mxu0 %v1403
        %v1423 = vpop.f32.mrf.mxu0
        %v1424 = vadd.f32 0.0, %v1423
        %v1425 = vpop.f32.mrf.mxu0
        %v1426 = vadd.f32 0.0, %v1425
        %1427 = vmatmul.bf16.gmra.mxu0 %v1406
        %v1428 = vpop.f32.mrf.mxu0
        %v1429 = vadd.f32 0.0, %v1428
        %v1430 = vpop.f32.mrf.mxu0
        %v1431 = vadd.f32 0.0, %v1430
        %1432 = vmatmul.bf16.gmra.mxu0 %v1409
        %v1433 = vpop.f32.mrf.mxu0
        %v1434 = vadd.f32 0.0, %v1433
        %v1435 = vpop.f32.mrf.mxu0
        %v1436 = vadd.f32 0.0, %v1435
        %1437 = vmatmul.bf16.gmra.mxu0 %v1412
        %v1438 = vpop.f32.mrf.mxu0
        %v1439 = vadd.f32 0.0, %v1438
        %v1440 = vpop.f32.mrf.mxu0
        %v1441 = vadd.f32 0.0, %v1440
        %1442 = vdwg.mxu0
        %v1443 = vld [vmem:[%s276] sm:$0xff]
        %v1444 = vld [vmem:[%s276 + $0x8] sm:$0xff]
        %v1445 = vld [vmem:[%s276 + $0x10] sm:$0xff]
        %v1446 = vld [vmem:[%s276 + $0x18] sm:$0xff]
        %v1447 = vld [vmem:[%s276 + $0x20] sm:$0xff]
        %v1448 = vld [vmem:[%s276 + $0x28] sm:$0xff]
        %v1449 = vld [vmem:[%s276 + $0x30] sm:$0xff]
        %v1450 = vld [vmem:[%s276 + $0x38] sm:$0xff]
        %v1451 = vadd.f32 %v1443, %v1424
        %v1452 = vadd.f32 %v1444, %v1426
        %v1453 = vadd.f32 %v1445, %v1429
        %v1454 = vadd.f32 %v1446, %v1431
        %v1455 = vadd.f32 %v1447, %v1434
        %v1456 = vadd.f32 %v1448, %v1436
        %v1457 = vadd.f32 %v1449, %v1439
        %v1458 = vadd.f32 %v1450, %v1441
        %v1459 = vld [vmem:[%s6] sm:$0xff]
        %v1460 = vld [vmem:[%s6 + $0x8] sm:$0xff]
        %v1461 = vld [vmem:[%s6 + $0x10] sm:$0xff]
        %v1462 = vld [vmem:[%s6 + $0x18] sm:$0xff]
        %v1463 = vld [vmem:[%s6 + $0x20] sm:$0xff]
        %v1464 = vld [vmem:[%s6 + $0x28] sm:$0xff]
        %v1465 = vld [vmem:[%s6 + $0x30] sm:$0xff]
        %v1466 = vld [vmem:[%s6 + $0x38] sm:$0xff]
        %1468 = vset.pattern.permute.xlu0 0
        %1469 = vperm.xlu0 %1468, %v1459
        %v1470 = vpop.permute.xlu0 %1469
        %1473 = vset.pattern.permute.xlu0 0
        %1474 = vperm.xlu0 %1473, %v1460
        %v1475 = vpop.permute.xlu0 %1474
        %1478 = vset.pattern.permute.xlu0 0
        %1479 = vperm.xlu0 %1478, %v1461
        %v1480 = vpop.permute.xlu0 %1479
        %1483 = vset.pattern.permute.xlu0 0
        %1484 = vperm.xlu0 %1483, %v1462
        %v1485 = vpop.permute.xlu0 %1484
        %1488 = vset.pattern.permute.xlu0 0
        %1489 = vperm.xlu0 %1488, %v1463
        %v1490 = vpop.permute.xlu0 %1489
        %1493 = vset.pattern.permute.xlu0 0
        %1494 = vperm.xlu0 %1493, %v1464
        %v1495 = vpop.permute.xlu0 %1494
        %1498 = vset.pattern.permute.xlu0 0
        %1499 = vperm.xlu0 %1498, %v1465
        %v1500 = vpop.permute.xlu0 %1499
        %1503 = vset.pattern.permute.xlu0 0
        %1504 = vperm.xlu0 %1503, %v1466
        %v1505 = vpop.permute.xlu0 %1504
        %v1507 = vadd.f32 %v1451, %v1470
        %v1508 = vadd.f32 %v1452, %v1475
        %v1509 = vadd.f32 %v1453, %v1480
        %v1510 = vadd.f32 %v1454, %v1485
        %v1511 = vadd.f32 %v1455, %v1490
        %v1512 = vadd.f32 %v1456, %v1495
        %v1513 = vadd.f32 %v1457, %v1500
        %v1514 = vadd.f32 %v1458, %v1505
        %1515 = vst [vmem:[%s271] sm:$0xff] %v1507
        %1516 = vst [vmem:[%s271 + $0x8] sm:$0xff] %v1508
        %1517 = vst [vmem:[%s271 + $0x10] sm:$0xff] %v1509
        %1518 = vst [vmem:[%s271 + $0x18] sm:$0xff] %v1510
        %1519 = vst [vmem:[%s271 + $0x20] sm:$0xff] %v1511
        %1520 = vst [vmem:[%s271 + $0x28] sm:$0xff] %v1512
        %1521 = vst [vmem:[%s271 + $0x30] sm:$0xff] %v1513
        %1522 = vst [vmem:[%s271 + $0x38] sm:$0xff] %v1514
        %s1523 = sand.u32 %s181, 1
        %s1524 = scalar_lea.sflag [#allocation5], %s1523
        %s1525 = sand.u32 %s181, 1
        %s1526 = smul.addr %s1525, 64
        %s1527 = scalar_lea.vmem [#allocation4], %s1526
        // Predicated region
        $region56: #{tpu_custom_call.1} parent=47 // pred_check
          %p1528 = pneg %p191
        $region57: #{tpu_custom_call.1} parent=47 // pred_check_branch
          %1530 = sbr.rel (%p1528) target = $region59
        $region58: #{tpu_custom_call.1} parent=47 // pred_region
          %1532 = vsyncadd %s1524, 0
          %s1533 = smul.addr %s21, 8
          %s1534 = smul.addr %s1533, 8
          %s1535 = scalar_lea.hbm %s7, %s1534
          %s1536 = sshll.u32 %s1527, 4
          %s1537 = int_to_ptr.vmem [resolvable:$true] %s1536
          %s1538 = sshll.u32 %s1535, 4
          %s1539 = int_to_ptr.hbm [resolvable:$true] %s1538
          %1544 = dma.vmem_to_hbm [thread:$0]  %s1537, 1024, %s1539, %s1524, 128, 128, 8
        $region59: #{tpu_custom_call.1} parent=47 // pred_fallthru
          _
      $region48: #{tpu_custom_call.1} parent=5 // pred_fallthru
        _
      %p1545 = scmp.le.s32.totalorder 2, %s16
      // Predicated region
      $region60: #{tpu_custom_call.1} parent=5 // pred_check
        %p1546 = pneg %p1545
      $region61: #{tpu_custom_call.1} parent=5 // pred_check_branch
        %1548 = sbr.rel (%p1546) target = $region63
      $region62: #{tpu_custom_call.1} parent=5 // pred_region
        %s1549 = ssub.s32 %s16, 2
        // Predicated region
        $region64: #{tpu_custom_call.1} parent=62 // pred_check
          %p1550 = pneg %p197
        $region65: #{tpu_custom_call.1} parent=62 // pred_check_branch
          %1552 = sbr.rel (%p1550) target = $region67
        $region66: #{tpu_custom_call.1} parent=62 // pred_region
          %s1553 = sand.u32 %s182, 1
          %s1554 = scalar_lea.sflag [#allocation5], %s1553
          %s1555 = sand.u32 %s182, 1
          %s1556 = smul.addr %s1555, 64
          %s1557 = scalar_lea.vmem [#allocation4], %s1556
          %1559 = dma.done %s1554, 1024
        $region67: #{tpu_custom_call.1} parent=62 // pred_fallthru
          _
      $region63: #{tpu_custom_call.1} parent=5 // pred_fallthru
        _
    $region6: #{tpu_custom_call.1} parent=1 // loop_footer
      %s20 = sadd.s32 1, %s16
    $region7: #{tpu_custom_call.1} parent=1 // loop_footer_branch
      %15 = sbr.rel target = $region3
    $region8: #{tpu_custom_call.1} parent=1 // loop_exit
      _
    %1560 = vsyncpa [#allocation5], 1
    %s1561 = scalar_lea.sflag [#allocation5], 1
    %1562 = vsyncpa %s1561, 1

</llo_original>
